<compile_context>
chip_gen: v7x
topology: tpu7x:2x2x1
jax: 0.10.0
libtpu: 0.0.40
codegen_flags: <defaults>
</compile_context>

<pallas_src>
import math
from functools import partial

import jax
import jax.numpy as jnp
from jax.experimental import pallas as pl
from jax.experimental.pallas import tpu as pltpu

# ---- small deterministic config (mirrors the torch config fields used) ----
B = 2             # batch
S = 8             # sequence length
T = B * S         # flattened token rows
H = 32            # hidden_size
NH = 4            # num_attention_heads
DH = H // NH      # attention_head_size
I = 64            # intermediate_size
NUM_LAYERS = 2    # num_hidden_layers
LN_EPS = 1e-12    # layer_norm_eps
THRESHOLD = 0.5   # TopKBinarizer threshold

S_SHIFT = S.bit_length() - 1
assert S == (1 << S_SHIFT), "in-kernel block mask uses a shift; S must be a power of two"


def _layernorm(x, gamma, beta, eps):
    mu = jnp.mean(x, axis=-1, keepdims=True)
    d = x - mu
    var = jnp.mean(d * d, axis=-1, keepdims=True)
    return d * jax.lax.rsqrt(var + eps) * gamma + beta


def _gelu_tanh(x):
    c = math.sqrt(2.0 / math.pi)
    return 0.5 * x * (1.0 + jnp.tanh(c * (x + 0.044715 * x * x * x)))


def _softmax_masked(s):
    # s already carries the -1e30 block mask; masked entries underflow to exact 0.
    s = s - jnp.max(s, axis=-1, keepdims=True)
    e = jnp.exp(s)
    return e * pl.reciprocal(jnp.sum(e, axis=-1, keepdims=True), approx=True)


def fused_encoder_kernel(x_ref, wqkvg_ref, bqkv_ref, gdb_ref, wos_ref, bo_ref,
                         ln1g_ref, ln1b_ref, wi_ref, bi_ref, wo2_ref, bo2_ref,
                         ln2g_ref, ln2b_ref, out_ref):
    # Block-diagonal additive mask (0 within a batch element, -1e30 across),
    # generated in-kernel from iotas; computed once, reused by every
    # head / expert / layer.  Equivalent to per-batch softmax (masked probs == 0).
    row = jax.lax.broadcasted_iota(jnp.int32, (T, T), 0)
    col = jax.lax.broadcasted_iota(jnp.int32, (T, T), 1)
    amask = jnp.where((row >> S_SHIFT) == (col >> S_SHIFT), 0.0, -1e30).astype(jnp.float32)

    scale = 1.0 / math.sqrt(DH)
    dn_nt = (((1,), (0,)), ((), ()))   # [M,K] @ [K,N]
    dn_tt = (((1,), (1,)), ((), ()))   # [M,K] @ [N,K]^T (contract last of both)

    h = x_ref[...].astype(jnp.float32)                 # [T, H], carried across layers

    for l in range(NUM_LAYERS):                        # static, fully unrolled
        # ---- fused Q|K|V (+ gate-diff logit) projection: one [T,H]@[H,3H+1] matmul ----
        raw = jax.lax.dot_general(h.astype(jnp.bfloat16), wqkvg_ref[l], dn_nt,
                                  preferred_element_type=jnp.float32)       # [T, 3H+1]

        # MoE gate: expert 1 iff (g1 - g0) > 0 (ties -> expert 0, like torch.argmax).
        g = raw[:, 3 * H:3 * H + 1] + gdb_ref[l]                            # [T, 1]
        keep0 = (g <= 0.0).astype(jnp.float32)

        # Token routing on the un-biased projections:
        #   Linear(keep*x) == keep*(x@W) + b   (keep is a 0/1 per-row scalar,
        #   bias added to every row, exactly as the torch reference).
        qkv_nb = raw[:, :3 * H]
        e0 = keep0 * qkv_nb                             # expert-0 rows
        e1 = qkv_nb - e0                                # expert-1 rows (keep0+keep1==1)

        bqkv = bqkv_ref[l]                              # [1, 3H]
        bq, bk, bv = bqkv[:, 0:H], bqkv[:, H:2 * H], bqkv[:, 2 * H:3 * H]
        q0 = (e0[:, 0:H] + bq).astype(jnp.bfloat16)
        k0 = (e0[:, H:2 * H] + bk).astype(jnp.bfloat16)
        q1 = (e1[:, 0:H] + bq).astype(jnp.bfloat16)
        k1 = (e1[:, H:2 * H] + bk).astype(jnp.bfloat16)
        v1 = (e1[:, 2 * H:3 * H] + bv).astype(jnp.bfloat16)
        vs = (qkv_nb[:, 2 * H:3 * H] + 2.0 * bv).astype(jnp.bfloat16)       # v0 + v1

        # ---- per-head attention; torch accumulation is
        #      fcl_h = hm1_h * p0_h @ (v0_h + v1_h) + hm2_h * p1_h @ v1_h,
        #      with hm1/hm2 folded host-side into the output-dense rows (wos). ----
        ctx = []
        for (q, k, v) in ((q0, k0, vs), (q1, k1, v1)):
            for hd in range(NH):
                sl = slice(hd * DH, (hd + 1) * DH)
                s = jax.lax.dot_general(q[:, sl], k[:, sl], dn_tt,
                                        preferred_element_type=jnp.float32)  # [T, T]
                p = _softmax_masked(s * scale + amask)
                ctx.append(jax.lax.dot_general(p.astype(jnp.bfloat16), v[:, sl], dn_nt,
                                               preferred_element_type=jnp.float32))
        ctx = jnp.concatenate(ctx, axis=-1).astype(jnp.bfloat16)             # [T, 2H]

        # ---- attention output dense: one [T,2H]@[2H,H] matmul ----
        attn = jax.lax.dot_general(ctx, wos_ref[l], dn_nt,
                                   preferred_element_type=jnp.float32) + bo_ref[l]
        h1 = _layernorm(attn + h, ln1g_ref[l], ln1b_ref[l], LN_EPS)

        # ---- BertIntermediate (gelu_new) + BertOutput ----
        inter = _gelu_tanh(
            jax.lax.dot_general(h1.astype(jnp.bfloat16), wi_ref[l], dn_nt,
                                preferred_element_type=jnp.float32) + bi_ref[l])
        out2 = jax.lax.dot_general(inter.astype(jnp.bfloat16), wo2_ref[l], dn_nt,
                                   preferred_element_type=jnp.float32) + bo2_ref[l]
        h = _layernorm(out2 + h1, ln2g_ref[l], ln2b_ref[l], LN_EPS)

    out_ref[...] = h.astype(out_ref.dtype)


def topk_binarize(scores, threshold):
    """TopKBinarizer.forward on a per-head score vector (host glue, plain JAX)."""
    j = int(threshold * scores.size)
    idx = jnp.argsort(-scores)                 # descending
    mask = scores
    mask = mask.at[idx[j:]].set(0.0)
    mask = mask.at[idx[:j]].set(1.0)
    return mask


def _stack_layer_params(params, threshold):
    """Host-side prep: fused weight layouts + head-mask folding, stacked over layers."""
    cols = [[] for _ in range(13)]
    for p in params:
        hm1 = topk_binarize(p['hm1_scores'], threshold)
        hm2 = topk_binarize(p['hm2_scores'], threshold)
        gdw = (p['gate_w'][:, 1] - p['gate_w'][:, 0]).reshape(H, 1)
        gdb = (p['gate_b'][0, 1] - p['gate_b'][0, 0]).reshape(1, 1)
        wo_heads = p['attn_out_w'].reshape(NH, DH, H)   # output-dense rows split by head
        layer_vals = [
            jnp.concatenate([p['wq'], p['wk'], p['wv'], gdw], axis=1),        # [H, 3H+1]
            jnp.concatenate([p['bq'], p['bk'], p['bv']], axis=1),             # [1, 3H]
            gdb,                                                              # [1, 1]
            jnp.concatenate([(hm1[:, None, None] * wo_heads).reshape(H, H),
                             (hm2[:, None, None] * wo_heads).reshape(H, H)],
                            axis=0),                                          # [2H, H]
            p['attn_out_b'],                                                  # [1, H]
            p['ln1_g'], p['ln1_b'],
            p['inter_w'], p['inter_b'],
            p['out_w'], p['out_b'],
            p['ln2_g'], p['ln2_b'],
        ]
        for c, v in zip(cols, layer_vals):
            c.append(v)
    stacked = [jnp.stack(c, axis=0) for c in cols]
    # bf16 MXU operands (weights only); biases / LN params stay f32.
    bf16_idx = {0, 3, 7, 9}   # wqkvg, wos, inter_w, out_w
    return [a.astype(jnp.bfloat16) if i in bf16_idx else a for i, a in enumerate(stacked)]


def bert_encoder_forward(hidden_states, params, threshold):
    """Mirrors BertEncoder.forward (output_attentions=False, output_hidden_states=False)."""
    x2 = hidden_states.reshape(T, H).astype(jnp.float32)
    stacked = _stack_layer_params(params, threshold)
    args = [x2] + stacked

    in_specs = [pl.BlockSpec(a.shape, lambda i, _n=a.ndim: (0,) * _n) for a in args]
    out_specs = pl.BlockSpec((T, H), lambda i: (0, 0))

    flops_per_layer = (2 * T * H * (3 * H + 1)             # fused qkv + gate
                       + 2 * (2 * NH * 2 * T * T * DH)     # scores + context, 2 experts
                       + 2 * T * (2 * H) * H               # merged attention output dense
                       + 2 * T * H * I + 2 * T * I * H)    # FFN
    cost = pl.CostEstimate(
        flops=NUM_LAYERS * flops_per_layer,
        transcendentals=NUM_LAYERS * (2 * NH * T * T + T * I),
        bytes_accessed=int(sum(a.size * a.dtype.itemsize for a in args) + T * H * 4),
    )

    out2d = pl.pallas_call(
        fused_encoder_kernel,
        out_shape=jax.ShapeDtypeStruct((T, H), jnp.float32),
        grid=(1,),
        in_specs=in_specs,
        out_specs=out_specs,
        compiler_params=pltpu.CompilerParams(dimension_semantics=("arbitrary",)),
        cost_estimate=cost,
    )(*args)

    return (out2d.reshape(B, S, H),)


def init_params(key):
    params = []
    for layer in range(NUM_LAYERS):
        keys = jax.random.split(jax.random.fold_in(key, layer), 12)

        def nrm(k, shape, scale=0.02):
            return scale * jax.random.normal(k, shape, dtype=jnp.float32)

        p = {
            'wq': nrm(keys[0], (H, H)), 'bq': jnp.zeros((1, H), jnp.float32),
            'wk': nrm(keys[1], (H, H)), 'bk': jnp.zeros((1, H), jnp.float32),
            'wv': nrm(keys[2], (H, H)), 'bv': jnp.zeros((1, H), jnp.float32),
            'gate_w': nrm(keys[3], (H, 2)), 'gate_b': jnp.zeros((1, 2), jnp.float32),
            'attn_out_w': nrm(keys[4], (H, H)), 'attn_out_b': jnp.zeros((1, H), jnp.float32),
            'ln1_g': jnp.ones((1, H), jnp.float32), 'ln1_b': jnp.zeros((1, H), jnp.float32),
            'inter_w': nrm(keys[5], (H, I)), 'inter_b': jnp.zeros((1, I), jnp.float32),
            'out_w': nrm(keys[6], (I, H)), 'out_b': jnp.zeros((1, H), jnp.float32),
            'ln2_g': jnp.ones((1, H), jnp.float32), 'ln2_b': jnp.zeros((1, H), jnp.float32),
            'hm1_scores': jax.random.normal(keys[7], (NH,), jnp.float32),
            'hm2_scores': jax.random.normal(keys[8], (NH,), jnp.float32),
        }
        params.append(p)
    return params


if __name__ == "__main__":
    key = jax.random.PRNGKey(0)
    pkey, xkey = jax.random.split(key)
    params = init_params(pkey)
    x = jax.random.normal(xkey, (B, S, H), dtype=jnp.float32)

    fwd = jax.jit(partial(bert_encoder_forward, threshold=THRESHOLD))
    (hidden_out,) = fwd(x, params)
    jax.block_until_ready(hidden_out)

    assert hidden_out.shape == (B, S, H)
    assert bool(jnp.all(jnp.isfinite(hidden_out)))
    print("KERNEL_OK")
</pallas_src>

<mosaic_0001>
module attributes {stable_mosaic.version = 11 : i64} {
  func.func @fused_encoder_kernel(%arg0: i32, %arg1: memref<16x32xf32, #tpu.memory_space<vmem>>, %arg2: memref<2x32x97xbf16, #tpu.memory_space<vmem>>, %arg3: memref<2x1x96xf32, #tpu.memory_space<vmem>>, %arg4: memref<2x1x1xf32, #tpu.memory_space<vmem>>, %arg5: memref<2x64x32xbf16, #tpu.memory_space<vmem>>, %arg6: memref<2x1x32xf32, #tpu.memory_space<vmem>>, %arg7: memref<2x1x32xf32, #tpu.memory_space<vmem>>, %arg8: memref<2x1x32xf32, #tpu.memory_space<vmem>>, %arg9: memref<2x32x64xbf16, #tpu.memory_space<vmem>>, %arg10: memref<2x1x64xf32, #tpu.memory_space<vmem>>, %arg11: memref<2x64x32xbf16, #tpu.memory_space<vmem>>, %arg12: memref<2x1x32xf32, #tpu.memory_space<vmem>>, %arg13: memref<2x1x32xf32, #tpu.memory_space<vmem>>, %arg14: memref<2x1x32xf32, #tpu.memory_space<vmem>>, %arg15: memref<16x32xf32, #tpu.memory_space<vmem>>) attributes {dimension_semantics = [#tpu.dimension_semantics<arbitrary>], iteration_bounds = array<i64: 1>, scalar_prefetch = 0 : i64, scratch_operands = 0 : i64, tpu.core_type = #tpu.core_type<tc>, window_params = [{pipeline_mode = #tpu.pipeline_mode<synchronous>, transform_indices = @transform_0, window_bounds = array<i64: 16, 32>}, {pipeline_mode = #tpu.pipeline_mode<synchronous>, transform_indices = @transform_1, window_bounds = array<i64: 2, 32, 97>}, {pipeline_mode = #tpu.pipeline_mode<synchronous>, transform_indices = @transform_2, window_bounds = array<i64: 2, 1, 96>}, {pipeline_mode = #tpu.pipeline_mode<synchronous>, transform_indices = @transform_3, window_bounds = array<i64: 2, 1, 1>}, {pipeline_mode = #tpu.pipeline_mode<synchronous>, transform_indices = @transform_4, window_bounds = array<i64: 2, 64, 32>}, {pipeline_mode = #tpu.pipeline_mode<synchronous>, transform_indices = @transform_5, window_bounds = array<i64: 2, 1, 32>}, {pipeline_mode = #tpu.pipeline_mode<synchronous>, transform_indices = @transform_6, window_bounds = array<i64: 2, 1, 32>}, {pipeline_mode = #tpu.pipeline_mode<synchronous>, transform_indices = @transform_7, window_bounds = array<i64: 2, 1, 32>}, {pipeline_mode = #tpu.pipeline_mode<synchronous>, transform_indices = @transform_8, window_bounds = array<i64: 2, 32, 64>}, {pipeline_mode = #tpu.pipeline_mode<synchronous>, transform_indices = @transform_9, window_bounds = array<i64: 2, 1, 64>}, {pipeline_mode = #tpu.pipeline_mode<synchronous>, transform_indices = @transform_10, window_bounds = array<i64: 2, 64, 32>}, {pipeline_mode = #tpu.pipeline_mode<synchronous>, transform_indices = @transform_11, window_bounds = array<i64: 2, 1, 32>}, {pipeline_mode = #tpu.pipeline_mode<synchronous>, transform_indices = @transform_12, window_bounds = array<i64: 2, 1, 32>}, {pipeline_mode = #tpu.pipeline_mode<synchronous>, transform_indices = @transform_13, window_bounds = array<i64: 2, 1, 32>}, {pipeline_mode = #tpu.pipeline_mode<synchronous>, transform_indices = @transform_14, window_bounds = array<i64: 16, 32>}]} {
    %0 = tpu.iota {dimensions = array<i32: 0>} : vector<16x16xi32>
    %1 = tpu.iota {dimensions = array<i32: 1>} : vector<16x16xi32>
    %c3_i32 = arith.constant 3 : i32
    %2 = vector.broadcast %c3_i32 : i32 to vector<16x16xi32>
    %3 = arith.shrsi %0, %2 : vector<16x16xi32>
    %c3_i32_0 = arith.constant 3 : i32
    %4 = vector.broadcast %c3_i32_0 : i32 to vector<16x16xi32>
    %5 = arith.shrsi %1, %4 : vector<16x16xi32>
    %6 = arith.cmpi eq, %3, %5 : vector<16x16xi32>
    %cst = arith.constant 0.000000e+00 : f32
    %cst_1 = arith.constant -1.000000e+30 : f32
    %7 = vector.broadcast %cst : f32 to vector<16x16xf32>
    %8 = vector.broadcast %cst_1 : f32 to vector<16x16xf32>
    %9 = arith.select %6, %7, %8 : vector<16x16xi1>, vector<16x16xf32>
    %c0 = arith.constant 0 : index
    %c0_2 = arith.constant 0 : index
    %10 = vector.load %arg1[%c0, %c0_2] : memref<16x32xf32, #tpu.memory_space<vmem>>, vector<16x32xf32>
    %11 = arith.truncf %10 : vector<16x32xf32> to vector<16x32xbf16>
    %c0_3 = arith.constant 0 : index
    %c0_4 = arith.constant 0 : index
    %c0_5 = arith.constant 0 : index
    %12 = vector.load %arg2[%c0_3, %c0_4, %c0_5] : memref<2x32x97xbf16, #tpu.memory_space<vmem>>, vector<1x32x97xbf16>
    %13 = vector.shape_cast %12 : vector<1x32x97xbf16> to vector<32x97xbf16>
    %cst_6 = arith.constant dense<0.000000e+00> : vector<16x97xf32>
    %14 = tpu.matmul %11, %13, %cst_6 {dimension_numbers = #tpu.dot_dimension_numbers<[1], [0], [0], [1], [0, 0, 1, 1], [], []>} : vector<16x32xbf16>, vector<32x97xbf16>, vector<16x97xf32> -> vector<16x97xf32>
    %15 = vector.extract_strided_slice %14 {offsets = [0, 96], sizes = [16, 1], strides = [1, 1]} : vector<16x97xf32> to vector<16x1xf32>
    %c0_7 = arith.constant 0 : index
    %c0_8 = arith.constant 0 : index
    %c0_9 = arith.constant 0 : index
    %16 = vector.load %arg4[%c0_7, %c0_8, %c0_9] : memref<2x1x1xf32, #tpu.memory_space<vmem>>, vector<1x1x1xf32>
    %17 = vector.shape_cast %16 : vector<1x1x1xf32> to vector<1x1xf32>
    %18 = vector.broadcast %17 : vector<1x1xf32> to vector<16x1xf32>
    %19 = arith.addf %15, %18 : vector<16x1xf32>
    %cst_10 = arith.constant 0.000000e+00 : f32
    %20 = vector.broadcast %cst_10 : f32 to vector<16x1xf32>
    %21 = arith.cmpf ole, %19, %20 : vector<16x1xf32>
    %22 = arith.extui %21 : vector<16x1xi1> to vector<16x1xi32>
    %23 = arith.sitofp %22 : vector<16x1xi32> to vector<16x1xf32>
    %24 = vector.extract_strided_slice %14 {offsets = [0, 0], sizes = [16, 96], strides = [1, 1]} : vector<16x97xf32> to vector<16x96xf32>
    %25 = vector.broadcast %23 : vector<16x1xf32> to vector<16x96xf32>
    %26 = arith.mulf %25, %24 : vector<16x96xf32>
    %27 = arith.subf %24, %26 : vector<16x96xf32>
    %c0_11 = arith.constant 0 : index
    %c0_12 = arith.constant 0 : index
    %c0_13 = arith.constant 0 : index
    %28 = vector.load %arg3[%c0_11, %c0_12, %c0_13] : memref<2x1x96xf32, #tpu.memory_space<vmem>>, vector<1x1x96xf32>
    %29 = vector.shape_cast %28 : vector<1x1x96xf32> to vector<1x96xf32>
    %30 = vector.extract_strided_slice %29 {offsets = [0, 0], sizes = [1, 32], strides = [1, 1]} : vector<1x96xf32> to vector<1x32xf32>
    %31 = vector.extract_strided_slice %29 {offsets = [0, 32], sizes = [1, 32], strides = [1, 1]} : vector<1x96xf32> to vector<1x32xf32>
    %32 = vector.extract_strided_slice %29 {offsets = [0, 64], sizes = [1, 32], strides = [1, 1]} : vector<1x96xf32> to vector<1x32xf32>
    %33 = vector.extract_strided_slice %26 {offsets = [0, 0], sizes = [16, 32], strides = [1, 1]} : vector<16x96xf32> to vector<16x32xf32>
    %34 = vector.broadcast %30 : vector<1x32xf32> to vector<16x32xf32>
    %35 = arith.addf %33, %34 : vector<16x32xf32>
    %36 = arith.truncf %35 : vector<16x32xf32> to vector<16x32xbf16>
    %37 = vector.extract_strided_slice %26 {offsets = [0, 32], sizes = [16, 32], strides = [1, 1]} : vector<16x96xf32> to vector<16x32xf32>
    %38 = vector.broadcast %31 : vector<1x32xf32> to vector<16x32xf32>
    %39 = arith.addf %37, %38 : vector<16x32xf32>
    %40 = arith.truncf %39 : vector<16x32xf32> to vector<16x32xbf16>
    %41 = vector.extract_strided_slice %27 {offsets = [0, 0], sizes = [16, 32], strides = [1, 1]} : vector<16x96xf32> to vector<16x32xf32>
    %42 = vector.broadcast %30 : vector<1x32xf32> to vector<16x32xf32>
    %43 = arith.addf %41, %42 : vector<16x32xf32>
    %44 = arith.truncf %43 : vector<16x32xf32> to vector<16x32xbf16>
    %45 = vector.extract_strided_slice %27 {offsets = [0, 32], sizes = [16, 32], strides = [1, 1]} : vector<16x96xf32> to vector<16x32xf32>
    %46 = vector.broadcast %31 : vector<1x32xf32> to vector<16x32xf32>
    %47 = arith.addf %45, %46 : vector<16x32xf32>
    %48 = arith.truncf %47 : vector<16x32xf32> to vector<16x32xbf16>
    %49 = vector.extract_strided_slice %27 {offsets = [0, 64], sizes = [16, 32], strides = [1, 1]} : vector<16x96xf32> to vector<16x32xf32>
    %50 = vector.broadcast %32 : vector<1x32xf32> to vector<16x32xf32>
    %51 = arith.addf %49, %50 : vector<16x32xf32>
    %52 = arith.truncf %51 : vector<16x32xf32> to vector<16x32xbf16>
    %53 = vector.extract_strided_slice %24 {offsets = [0, 64], sizes = [16, 32], strides = [1, 1]} : vector<16x96xf32> to vector<16x32xf32>
    %cst_14 = arith.constant 2.000000e+00 : f32
    %54 = vector.broadcast %cst_14 : f32 to vector<1x32xf32>
    %55 = arith.mulf %54, %32 : vector<1x32xf32>
    %56 = vector.broadcast %55 : vector<1x32xf32> to vector<16x32xf32>
    %57 = arith.addf %53, %56 : vector<16x32xf32>
    %58 = arith.truncf %57 : vector<16x32xf32> to vector<16x32xbf16>
    %59 = vector.extract_strided_slice %36 {offsets = [0, 0], sizes = [16, 8], strides = [1, 1]} : vector<16x32xbf16> to vector<16x8xbf16>
    %60 = vector.extract_strided_slice %40 {offsets = [0, 0], sizes = [16, 8], strides = [1, 1]} : vector<16x32xbf16> to vector<16x8xbf16>
    %cst_15 = arith.constant dense<0.000000e+00> : vector<16x16xf32>
    %61 = tpu.matmul %59, %60, %cst_15 {dimension_numbers = #tpu.dot_dimension_numbers<[1], [1], [0], [0], [0, 0, 1, 0], [], []>} : vector<16x8xbf16>, vector<16x8xbf16>, vector<16x16xf32> -> vector<16x16xf32>
    %cst_16 = arith.constant 0.353553385 : f32
    %62 = vector.broadcast %cst_16 : f32 to vector<16x16xf32>
    %63 = arith.mulf %61, %62 : vector<16x16xf32>
    %64 = arith.addf %63, %9 : vector<16x16xf32>
    %cst_17 = arith.constant dense<0xFF800000> : vector<16xf32>
    %65 = vector.multi_reduction <maximumf>, %64, %cst_17 [1] : vector<16x16xf32> to vector<16xf32>
    %66 = vector.shape_cast %65 : vector<16xf32> to vector<16x1xf32>
    %67 = vector.broadcast %66 : vector<16x1xf32> to vector<16x16xf32>
    %68 = arith.subf %64, %67 : vector<16x16xf32>
    %69 = math.exp %68 : vector<16x16xf32>
    %cst_18 = arith.constant dense<0.000000e+00> : vector<16xf32>
    %70 = vector.multi_reduction <add>, %69, %cst_18 [1] : vector<16x16xf32> to vector<16xf32>
    %71 = vector.shape_cast %70 : vector<16xf32> to vector<16x1xf32>
    %72 = tpu.reciprocal %71 {approx = true} : vector<16x1xf32> -> vector<16x1xf32>
    %73 = vector.broadcast %72 : vector<16x1xf32> to vector<16x16xf32>
    %74 = arith.mulf %69, %73 : vector<16x16xf32>
    %75 = arith.truncf %74 : vector<16x16xf32> to vector<16x16xbf16>
    %76 = vector.extract_strided_slice %58 {offsets = [0, 0], sizes = [16, 8], strides = [1, 1]} : vector<16x32xbf16> to vector<16x8xbf16>
    %cst_19 = arith.constant dense<0.000000e+00> : vector<16x8xf32>
    %77 = tpu.matmul %75, %76, %cst_19 {dimension_numbers = #tpu.dot_dimension_numbers<[1], [0], [0], [1], [0, 0, 1, 1], [], []>} : vector<16x16xbf16>, vector<16x8xbf16>, vector<16x8xf32> -> vector<16x8xf32>
    %78 = vector.extract_strided_slice %36 {offsets = [0, 8], sizes = [16, 8], strides = [1, 1]} : vector<16x32xbf16> to vector<16x8xbf16>
    %79 = vector.extract_strided_slice %40 {offsets = [0, 8], sizes = [16, 8], strides = [1, 1]} : vector<16x32xbf16> to vector<16x8xbf16>
    %cst_20 = arith.constant dense<0.000000e+00> : vector<16x16xf32>
    %80 = tpu.matmul %78, %79, %cst_20 {dimension_numbers = #tpu.dot_dimension_numbers<[1], [1], [0], [0], [0, 0, 1, 0], [], []>} : vector<16x8xbf16>, vector<16x8xbf16>, vector<16x16xf32> -> vector<16x16xf32>
    %cst_21 = arith.constant 0.353553385 : f32
    %81 = vector.broadcast %cst_21 : f32 to vector<16x16xf32>
    %82 = arith.mulf %80, %81 : vector<16x16xf32>
    %83 = arith.addf %82, %9 : vector<16x16xf32>
    %cst_22 = arith.constant dense<0xFF800000> : vector<16xf32>
    %84 = vector.multi_reduction <maximumf>, %83, %cst_22 [1] : vector<16x16xf32> to vector<16xf32>
    %85 = vector.shape_cast %84 : vector<16xf32> to vector<16x1xf32>
    %86 = vector.broadcast %85 : vector<16x1xf32> to vector<16x16xf32>
    %87 = arith.subf %83, %86 : vector<16x16xf32>
    %88 = math.exp %87 : vector<16x16xf32>
    %cst_23 = arith.constant dense<0.000000e+00> : vector<16xf32>
    %89 = vector.multi_reduction <add>, %88, %cst_23 [1] : vector<16x16xf32> to vector<16xf32>
    %90 = vector.shape_cast %89 : vector<16xf32> to vector<16x1xf32>
    %91 = tpu.reciprocal %90 {approx = true} : vector<16x1xf32> -> vector<16x1xf32>
    %92 = vector.broadcast %91 : vector<16x1xf32> to vector<16x16xf32>
    %93 = arith.mulf %88, %92 : vector<16x16xf32>
    %94 = arith.truncf %93 : vector<16x16xf32> to vector<16x16xbf16>
    %95 = vector.extract_strided_slice %58 {offsets = [0, 8], sizes = [16, 8], strides = [1, 1]} : vector<16x32xbf16> to vector<16x8xbf16>
    %cst_24 = arith.constant dense<0.000000e+00> : vector<16x8xf32>
    %96 = tpu.matmul %94, %95, %cst_24 {dimension_numbers = #tpu.dot_dimension_numbers<[1], [0], [0], [1], [0, 0, 1, 1], [], []>} : vector<16x16xbf16>, vector<16x8xbf16>, vector<16x8xf32> -> vector<16x8xf32>
    %97 = vector.extract_strided_slice %36 {offsets = [0, 16], sizes = [16, 8], strides = [1, 1]} : vector<16x32xbf16> to vector<16x8xbf16>
    %98 = vector.extract_strided_slice %40 {offsets = [0, 16], sizes = [16, 8], strides = [1, 1]} : vector<16x32xbf16> to vector<16x8xbf16>
    %cst_25 = arith.constant dense<0.000000e+00> : vector<16x16xf32>
    %99 = tpu.matmul %97, %98, %cst_25 {dimension_numbers = #tpu.dot_dimension_numbers<[1], [1], [0], [0], [0, 0, 1, 0], [], []>} : vector<16x8xbf16>, vector<16x8xbf16>, vector<16x16xf32> -> vector<16x16xf32>
    %cst_26 = arith.constant 0.353553385 : f32
    %100 = vector.broadcast %cst_26 : f32 to vector<16x16xf32>
    %101 = arith.mulf %99, %100 : vector<16x16xf32>
    %102 = arith.addf %101, %9 : vector<16x16xf32>
    %cst_27 = arith.constant dense<0xFF800000> : vector<16xf32>
    %103 = vector.multi_reduction <maximumf>, %102, %cst_27 [1] : vector<16x16xf32> to vector<16xf32>
    %104 = vector.shape_cast %103 : vector<16xf32> to vector<16x1xf32>
    %105 = vector.broadcast %104 : vector<16x1xf32> to vector<16x16xf32>
    %106 = arith.subf %102, %105 : vector<16x16xf32>
    %107 = math.exp %106 : vector<16x16xf32>
    %cst_28 = arith.constant dense<0.000000e+00> : vector<16xf32>
    %108 = vector.multi_reduction <add>, %107, %cst_28 [1] : vector<16x16xf32> to vector<16xf32>
    %109 = vector.shape_cast %108 : vector<16xf32> to vector<16x1xf32>
    %110 = tpu.reciprocal %109 {approx = true} : vector<16x1xf32> -> vector<16x1xf32>
    %111 = vector.broadcast %110 : vector<16x1xf32> to vector<16x16xf32>
    %112 = arith.mulf %107, %111 : vector<16x16xf32>
    %113 = arith.truncf %112 : vector<16x16xf32> to vector<16x16xbf16>
    %114 = vector.extract_strided_slice %58 {offsets = [0, 16], sizes = [16, 8], strides = [1, 1]} : vector<16x32xbf16> to vector<16x8xbf16>
    %cst_29 = arith.constant dense<0.000000e+00> : vector<16x8xf32>
    %115 = tpu.matmul %113, %114, %cst_29 {dimension_numbers = #tpu.dot_dimension_numbers<[1], [0], [0], [1], [0, 0, 1, 1], [], []>} : vector<16x16xbf16>, vector<16x8xbf16>, vector<16x8xf32> -> vector<16x8xf32>
    %116 = vector.extract_strided_slice %36 {offsets = [0, 24], sizes = [16, 8], strides = [1, 1]} : vector<16x32xbf16> to vector<16x8xbf16>
    %117 = vector.extract_strided_slice %40 {offsets = [0, 24], sizes = [16, 8], strides = [1, 1]} : vector<16x32xbf16> to vector<16x8xbf16>
    %cst_30 = arith.constant dense<0.000000e+00> : vector<16x16xf32>
    %118 = tpu.matmul %116, %117, %cst_30 {dimension_numbers = #tpu.dot_dimension_numbers<[1], [1], [0], [0], [0, 0, 1, 0], [], []>} : vector<16x8xbf16>, vector<16x8xbf16>, vector<16x16xf32> -> vector<16x16xf32>
    %cst_31 = arith.constant 0.353553385 : f32
    %119 = vector.broadcast %cst_31 : f32 to vector<16x16xf32>
    %120 = arith.mulf %118, %119 : vector<16x16xf32>
    %121 = arith.addf %120, %9 : vector<16x16xf32>
    %cst_32 = arith.constant dense<0xFF800000> : vector<16xf32>
    %122 = vector.multi_reduction <maximumf>, %121, %cst_32 [1] : vector<16x16xf32> to vector<16xf32>
    %123 = vector.shape_cast %122 : vector<16xf32> to vector<16x1xf32>
    %124 = vector.broadcast %123 : vector<16x1xf32> to vector<16x16xf32>
    %125 = arith.subf %121, %124 : vector<16x16xf32>
    %126 = math.exp %125 : vector<16x16xf32>
    %cst_33 = arith.constant dense<0.000000e+00> : vector<16xf32>
    %127 = vector.multi_reduction <add>, %126, %cst_33 [1] : vector<16x16xf32> to vector<16xf32>
    %128 = vector.shape_cast %127 : vector<16xf32> to vector<16x1xf32>
    %129 = tpu.reciprocal %128 {approx = true} : vector<16x1xf32> -> vector<16x1xf32>
    %130 = vector.broadcast %129 : vector<16x1xf32> to vector<16x16xf32>
    %131 = arith.mulf %126, %130 : vector<16x16xf32>
    %132 = arith.truncf %131 : vector<16x16xf32> to vector<16x16xbf16>
    %133 = vector.extract_strided_slice %58 {offsets = [0, 24], sizes = [16, 8], strides = [1, 1]} : vector<16x32xbf16> to vector<16x8xbf16>
    %cst_34 = arith.constant dense<0.000000e+00> : vector<16x8xf32>
    %134 = tpu.matmul %132, %133, %cst_34 {dimension_numbers = #tpu.dot_dimension_numbers<[1], [0], [0], [1], [0, 0, 1, 1], [], []>} : vector<16x16xbf16>, vector<16x8xbf16>, vector<16x8xf32> -> vector<16x8xf32>
    %135 = vector.extract_strided_slice %44 {offsets = [0, 0], sizes = [16, 8], strides = [1, 1]} : vector<16x32xbf16> to vector<16x8xbf16>
    %136 = vector.extract_strided_slice %48 {offsets = [0, 0], sizes = [16, 8], strides = [1, 1]} : vector<16x32xbf16> to vector<16x8xbf16>
    %cst_35 = arith.constant dense<0.000000e+00> : vector<16x16xf32>
    %137 = tpu.matmul %135, %136, %cst_35 {dimension_numbers = #tpu.dot_dimension_numbers<[1], [1], [0], [0], [0, 0, 1, 0], [], []>} : vector<16x8xbf16>, vector<16x8xbf16>, vector<16x16xf32> -> vector<16x16xf32>
    %cst_36 = arith.constant 0.353553385 : f32
    %138 = vector.broadcast %cst_36 : f32 to vector<16x16xf32>
    %139 = arith.mulf %137, %138 : vector<16x16xf32>
    %140 = arith.addf %139, %9 : vector<16x16xf32>
    %cst_37 = arith.constant dense<0xFF800000> : vector<16xf32>
    %141 = vector.multi_reduction <maximumf>, %140, %cst_37 [1] : vector<16x16xf32> to vector<16xf32>
    %142 = vector.shape_cast %141 : vector<16xf32> to vector<16x1xf32>
    %143 = vector.broadcast %142 : vector<16x1xf32> to vector<16x16xf32>
    %144 = arith.subf %140, %143 : vector<16x16xf32>
    %145 = math.exp %144 : vector<16x16xf32>
    %cst_38 = arith.constant dense<0.000000e+00> : vector<16xf32>
    %146 = vector.multi_reduction <add>, %145, %cst_38 [1] : vector<16x16xf32> to vector<16xf32>
    %147 = vector.shape_cast %146 : vector<16xf32> to vector<16x1xf32>
    %148 = tpu.reciprocal %147 {approx = true} : vector<16x1xf32> -> vector<16x1xf32>
    %149 = vector.broadcast %148 : vector<16x1xf32> to vector<16x16xf32>
    %150 = arith.mulf %145, %149 : vector<16x16xf32>
    %151 = arith.truncf %150 : vector<16x16xf32> to vector<16x16xbf16>
    %152 = vector.extract_strided_slice %52 {offsets = [0, 0], sizes = [16, 8], strides = [1, 1]} : vector<16x32xbf16> to vector<16x8xbf16>
    %cst_39 = arith.constant dense<0.000000e+00> : vector<16x8xf32>
    %153 = tpu.matmul %151, %152, %cst_39 {dimension_numbers = #tpu.dot_dimension_numbers<[1], [0], [0], [1], [0, 0, 1, 1], [], []>} : vector<16x16xbf16>, vector<16x8xbf16>, vector<16x8xf32> -> vector<16x8xf32>
    %154 = vector.extract_strided_slice %44 {offsets = [0, 8], sizes = [16, 8], strides = [1, 1]} : vector<16x32xbf16> to vector<16x8xbf16>
    %155 = vector.extract_strided_slice %48 {offsets = [0, 8], sizes = [16, 8], strides = [1, 1]} : vector<16x32xbf16> to vector<16x8xbf16>
    %cst_40 = arith.constant dense<0.000000e+00> : vector<16x16xf32>
    %156 = tpu.matmul %154, %155, %cst_40 {dimension_numbers = #tpu.dot_dimension_numbers<[1], [1], [0], [0], [0, 0, 1, 0], [], []>} : vector<16x8xbf16>, vector<16x8xbf16>, vector<16x16xf32> -> vector<16x16xf32>
    %cst_41 = arith.constant 0.353553385 : f32
    %157 = vector.broadcast %cst_41 : f32 to vector<16x16xf32>
    %158 = arith.mulf %156, %157 : vector<16x16xf32>
    %159 = arith.addf %158, %9 : vector<16x16xf32>
    %cst_42 = arith.constant dense<0xFF800000> : vector<16xf32>
    %160 = vector.multi_reduction <maximumf>, %159, %cst_42 [1] : vector<16x16xf32> to vector<16xf32>
    %161 = vector.shape_cast %160 : vector<16xf32> to vector<16x1xf32>
    %162 = vector.broadcast %161 : vector<16x1xf32> to vector<16x16xf32>
    %163 = arith.subf %159, %162 : vector<16x16xf32>
    %164 = math.exp %163 : vector<16x16xf32>
    %cst_43 = arith.constant dense<0.000000e+00> : vector<16xf32>
    %165 = vector.multi_reduction <add>, %164, %cst_43 [1] : vector<16x16xf32> to vector<16xf32>
    %166 = vector.shape_cast %165 : vector<16xf32> to vector<16x1xf32>
    %167 = tpu.reciprocal %166 {approx = true} : vector<16x1xf32> -> vector<16x1xf32>
    %168 = vector.broadcast %167 : vector<16x1xf32> to vector<16x16xf32>
    %169 = arith.mulf %164, %168 : vector<16x16xf32>
    %170 = arith.truncf %169 : vector<16x16xf32> to vector<16x16xbf16>
    %171 = vector.extract_strided_slice %52 {offsets = [0, 8], sizes = [16, 8], strides = [1, 1]} : vector<16x32xbf16> to vector<16x8xbf16>
    %cst_44 = arith.constant dense<0.000000e+00> : vector<16x8xf32>
    %172 = tpu.matmul %170, %171, %cst_44 {dimension_numbers = #tpu.dot_dimension_numbers<[1], [0], [0], [1], [0, 0, 1, 1], [], []>} : vector<16x16xbf16>, vector<16x8xbf16>, vector<16x8xf32> -> vector<16x8xf32>
    %173 = vector.extract_strided_slice %44 {offsets = [0, 16], sizes = [16, 8], strides = [1, 1]} : vector<16x32xbf16> to vector<16x8xbf16>
    %174 = vector.extract_strided_slice %48 {offsets = [0, 16], sizes = [16, 8], strides = [1, 1]} : vector<16x32xbf16> to vector<16x8xbf16>
    %cst_45 = arith.constant dense<0.000000e+00> : vector<16x16xf32>
    %175 = tpu.matmul %173, %174, %cst_45 {dimension_numbers = #tpu.dot_dimension_numbers<[1], [1], [0], [0], [0, 0, 1, 0], [], []>} : vector<16x8xbf16>, vector<16x8xbf16>, vector<16x16xf32> -> vector<16x16xf32>
    %cst_46 = arith.constant 0.353553385 : f32
    %176 = vector.broadcast %cst_46 : f32 to vector<16x16xf32>
    %177 = arith.mulf %175, %176 : vector<16x16xf32>
    %178 = arith.addf %177, %9 : vector<16x16xf32>
    %cst_47 = arith.constant dense<0xFF800000> : vector<16xf32>
    %179 = vector.multi_reduction <maximumf>, %178, %cst_47 [1] : vector<16x16xf32> to vector<16xf32>
    %180 = vector.shape_cast %179 : vector<16xf32> to vector<16x1xf32>
    %181 = vector.broadcast %180 : vector<16x1xf32> to vector<16x16xf32>
    %182 = arith.subf %178, %181 : vector<16x16xf32>
    %183 = math.exp %182 : vector<16x16xf32>
    %cst_48 = arith.constant dense<0.000000e+00> : vector<16xf32>
    %184 = vector.multi_reduction <add>, %183, %cst_48 [1] : vector<16x16xf32> to vector<16xf32>
    %185 = vector.shape_cast %184 : vector<16xf32> to vector<16x1xf32>
    %186 = tpu.reciprocal %185 {approx = true} : vector<16x1xf32> -> vector<16x1xf32>
    %187 = vector.broadcast %186 : vector<16x1xf32> to vector<16x16xf32>
    %188 = arith.mulf %183, %187 : vector<16x16xf32>
    %189 = arith.truncf %188 : vector<16x16xf32> to vector<16x16xbf16>
    %190 = vector.extract_strided_slice %52 {offsets = [0, 16], sizes = [16, 8], strides = [1, 1]} : vector<16x32xbf16> to vector<16x8xbf16>
    %cst_49 = arith.constant dense<0.000000e+00> : vector<16x8xf32>
    %191 = tpu.matmul %189, %190, %cst_49 {dimension_numbers = #tpu.dot_dimension_numbers<[1], [0], [0], [1], [0, 0, 1, 1], [], []>} : vector<16x16xbf16>, vector<16x8xbf16>, vector<16x8xf32> -> vector<16x8xf32>
    %192 = vector.extract_strided_slice %44 {offsets = [0, 24], sizes = [16, 8], strides = [1, 1]} : vector<16x32xbf16> to vector<16x8xbf16>
    %193 = vector.extract_strided_slice %48 {offsets = [0, 24], sizes = [16, 8], strides = [1, 1]} : vector<16x32xbf16> to vector<16x8xbf16>
    %cst_50 = arith.constant dense<0.000000e+00> : vector<16x16xf32>
    %194 = tpu.matmul %192, %193, %cst_50 {dimension_numbers = #tpu.dot_dimension_numbers<[1], [1], [0], [0], [0, 0, 1, 0], [], []>} : vector<16x8xbf16>, vector<16x8xbf16>, vector<16x16xf32> -> vector<16x16xf32>
    %cst_51 = arith.constant 0.353553385 : f32
    %195 = vector.broadcast %cst_51 : f32 to vector<16x16xf32>
    %196 = arith.mulf %194, %195 : vector<16x16xf32>
    %197 = arith.addf %196, %9 : vector<16x16xf32>
    %cst_52 = arith.constant dense<0xFF800000> : vector<16xf32>
    %198 = vector.multi_reduction <maximumf>, %197, %cst_52 [1] : vector<16x16xf32> to vector<16xf32>
    %199 = vector.shape_cast %198 : vector<16xf32> to vector<16x1xf32>
    %200 = vector.broadcast %199 : vector<16x1xf32> to vector<16x16xf32>
    %201 = arith.subf %197, %200 : vector<16x16xf32>
    %202 = math.exp %201 : vector<16x16xf32>
    %cst_53 = arith.constant dense<0.000000e+00> : vector<16xf32>
    %203 = vector.multi_reduction <add>, %202, %cst_53 [1] : vector<16x16xf32> to vector<16xf32>
    %204 = vector.shape_cast %203 : vector<16xf32> to vector<16x1xf32>
    %205 = tpu.reciprocal %204 {approx = true} : vector<16x1xf32> -> vector<16x1xf32>
    %206 = vector.broadcast %205 : vector<16x1xf32> to vector<16x16xf32>
    %207 = arith.mulf %202, %206 : vector<16x16xf32>
    %208 = arith.truncf %207 : vector<16x16xf32> to vector<16x16xbf16>
    %209 = vector.extract_strided_slice %52 {offsets = [0, 24], sizes = [16, 8], strides = [1, 1]} : vector<16x32xbf16> to vector<16x8xbf16>
    %cst_54 = arith.constant dense<0.000000e+00> : vector<16x8xf32>
    %210 = tpu.matmul %208, %209, %cst_54 {dimension_numbers = #tpu.dot_dimension_numbers<[1], [0], [0], [1], [0, 0, 1, 1], [], []>} : vector<16x16xbf16>, vector<16x8xbf16>, vector<16x8xf32> -> vector<16x8xf32>
    %211 = tpu.concatenate %77, %96, %115, %134, %153, %172, %191, %210 in 1 : vector<16x8xf32>, vector<16x8xf32>, vector<16x8xf32>, vector<16x8xf32>, vector<16x8xf32>, vector<16x8xf32>, vector<16x8xf32>, vector<16x8xf32> -> vector<16x64xf32>
    %212 = arith.truncf %211 : vector<16x64xf32> to vector<16x64xbf16>
    %c0_55 = arith.constant 0 : index
    %c0_56 = arith.constant 0 : index
    %c0_57 = arith.constant 0 : index
    %213 = vector.load %arg5[%c0_55, %c0_56, %c0_57] : memref<2x64x32xbf16, #tpu.memory_space<vmem>>, vector<1x64x32xbf16>
    %214 = vector.shape_cast %213 : vector<1x64x32xbf16> to vector<64x32xbf16>
    %cst_58 = arith.constant dense<0.000000e+00> : vector<16x32xf32>
    %215 = tpu.matmul %212, %214, %cst_58 {dimension_numbers = #tpu.dot_dimension_numbers<[1], [0], [0], [1], [0, 0, 1, 1], [], []>} : vector<16x64xbf16>, vector<64x32xbf16>, vector<16x32xf32> -> vector<16x32xf32>
    %c0_59 = arith.constant 0 : index
    %c0_60 = arith.constant 0 : index
    %c0_61 = arith.constant 0 : index
    %216 = vector.load %arg6[%c0_59, %c0_60, %c0_61] : memref<2x1x32xf32, #tpu.memory_space<vmem>>, vector<1x1x32xf32>
    %217 = vector.shape_cast %216 : vector<1x1x32xf32> to vector<1x32xf32>
    %218 = vector.broadcast %217 : vector<1x32xf32> to vector<16x32xf32>
    %219 = arith.addf %215, %218 : vector<16x32xf32>
    %220 = arith.addf %219, %10 : vector<16x32xf32>
    %c0_62 = arith.constant 0 : index
    %c0_63 = arith.constant 0 : index
    %c0_64 = arith.constant 0 : index
    %221 = vector.load %arg7[%c0_62, %c0_63, %c0_64] : memref<2x1x32xf32, #tpu.memory_space<vmem>>, vector<1x1x32xf32>
    %222 = vector.shape_cast %221 : vector<1x1x32xf32> to vector<1x32xf32>
    %c0_65 = arith.constant 0 : index
    %c0_66 = arith.constant 0 : index
    %c0_67 = arith.constant 0 : index
    %223 = vector.load %arg8[%c0_65, %c0_66, %c0_67] : memref<2x1x32xf32, #tpu.memory_space<vmem>>, vector<1x1x32xf32>
    %224 = vector.shape_cast %223 : vector<1x1x32xf32> to vector<1x32xf32>
    %cst_68 = arith.constant dense<0.000000e+00> : vector<16xf32>
    %225 = vector.multi_reduction <add>, %220, %cst_68 [1] : vector<16x32xf32> to vector<16xf32>
    %226 = vector.shape_cast %225 : vector<16xf32> to vector<16x1xf32>
    %cst_69 = arith.constant 3.200000e+01 : f32
    %227 = vector.broadcast %cst_69 : f32 to vector<16x1xf32>
    %228 = arith.divf %226, %227 : vector<16x1xf32>
    %229 = vector.broadcast %228 : vector<16x1xf32> to vector<16x32xf32>
    %230 = arith.subf %220, %229 : vector<16x32xf32>
    %231 = arith.mulf %230, %230 : vector<16x32xf32>
    %cst_70 = arith.constant dense<0.000000e+00> : vector<16xf32>
    %232 = vector.multi_reduction <add>, %231, %cst_70 [1] : vector<16x32xf32> to vector<16xf32>
    %233 = vector.shape_cast %232 : vector<16xf32> to vector<16x1xf32>
    %cst_71 = arith.constant 3.200000e+01 : f32
    %234 = vector.broadcast %cst_71 : f32 to vector<16x1xf32>
    %235 = arith.divf %233, %234 : vector<16x1xf32>
    %cst_72 = arith.constant 9.99999996E-13 : f32
    %236 = vector.broadcast %cst_72 : f32 to vector<16x1xf32>
    %237 = arith.addf %235, %236 : vector<16x1xf32>
    %238 = math.rsqrt %237 : vector<16x1xf32>
    %239 = vector.broadcast %238 : vector<16x1xf32> to vector<16x32xf32>
    %240 = arith.mulf %230, %239 : vector<16x32xf32>
    %241 = vector.broadcast %222 : vector<1x32xf32> to vector<16x32xf32>
    %242 = arith.mulf %240, %241 : vector<16x32xf32>
    %243 = vector.broadcast %224 : vector<1x32xf32> to vector<16x32xf32>
    %244 = arith.addf %242, %243 : vector<16x32xf32>
    %245 = arith.truncf %244 : vector<16x32xf32> to vector<16x32xbf16>
    %c0_73 = arith.constant 0 : index
    %c0_74 = arith.constant 0 : index
    %c0_75 = arith.constant 0 : index
    %246 = vector.load %arg9[%c0_73, %c0_74, %c0_75] : memref<2x32x64xbf16, #tpu.memory_space<vmem>>, vector<1x32x64xbf16>
    %247 = vector.shape_cast %246 : vector<1x32x64xbf16> to vector<32x64xbf16>
    %cst_76 = arith.constant dense<0.000000e+00> : vector<16x64xf32>
    %248 = tpu.matmul %245, %247, %cst_76 {dimension_numbers = #tpu.dot_dimension_numbers<[1], [0], [0], [1], [0, 0, 1, 1], [], []>} : vector<16x32xbf16>, vector<32x64xbf16>, vector<16x64xf32> -> vector<16x64xf32>
    %c0_77 = arith.constant 0 : index
    %c0_78 = arith.constant 0 : index
    %c0_79 = arith.constant 0 : index
    %249 = vector.load %arg10[%c0_77, %c0_78, %c0_79] : memref<2x1x64xf32, #tpu.memory_space<vmem>>, vector<1x1x64xf32>
    %250 = vector.shape_cast %249 : vector<1x1x64xf32> to vector<1x64xf32>
    %251 = vector.broadcast %250 : vector<1x64xf32> to vector<16x64xf32>
    %252 = arith.addf %248, %251 : vector<16x64xf32>
    %cst_80 = arith.constant 5.000000e-01 : f32
    %253 = vector.broadcast %cst_80 : f32 to vector<16x64xf32>
    %254 = arith.mulf %253, %252 : vector<16x64xf32>
    %cst_81 = arith.constant 4.471500e-02 : f32
    %255 = vector.broadcast %cst_81 : f32 to vector<16x64xf32>
    %256 = arith.mulf %255, %252 : vector<16x64xf32>
    %257 = arith.mulf %256, %252 : vector<16x64xf32>
    %258 = arith.mulf %257, %252 : vector<16x64xf32>
    %259 = arith.addf %252, %258 : vector<16x64xf32>
    %cst_82 = arith.constant 0.797884583 : f32
    %260 = vector.broadcast %cst_82 : f32 to vector<16x64xf32>
    %261 = arith.mulf %260, %259 : vector<16x64xf32>
    %262 = math.tanh %261 : vector<16x64xf32>
    %cst_83 = arith.constant 1.000000e+00 : f32
    %263 = vector.broadcast %cst_83 : f32 to vector<16x64xf32>
    %264 = arith.addf %263, %262 : vector<16x64xf32>
    %265 = arith.mulf %254, %264 : vector<16x64xf32>
    %266 = arith.truncf %265 : vector<16x64xf32> to vector<16x64xbf16>
    %c0_84 = arith.constant 0 : index
    %c0_85 = arith.constant 0 : index
    %c0_86 = arith.constant 0 : index
    %267 = vector.load %arg11[%c0_84, %c0_85, %c0_86] : memref<2x64x32xbf16, #tpu.memory_space<vmem>>, vector<1x64x32xbf16>
    %268 = vector.shape_cast %267 : vector<1x64x32xbf16> to vector<64x32xbf16>
    %cst_87 = arith.constant dense<0.000000e+00> : vector<16x32xf32>
    %269 = tpu.matmul %266, %268, %cst_87 {dimension_numbers = #tpu.dot_dimension_numbers<[1], [0], [0], [1], [0, 0, 1, 1], [], []>} : vector<16x64xbf16>, vector<64x32xbf16>, vector<16x32xf32> -> vector<16x32xf32>
    %c0_88 = arith.constant 0 : index
    %c0_89 = arith.constant 0 : index
    %c0_90 = arith.constant 0 : index
    %270 = vector.load %arg12[%c0_88, %c0_89, %c0_90] : memref<2x1x32xf32, #tpu.memory_space<vmem>>, vector<1x1x32xf32>
    %271 = vector.shape_cast %270 : vector<1x1x32xf32> to vector<1x32xf32>
    %272 = vector.broadcast %271 : vector<1x32xf32> to vector<16x32xf32>
    %273 = arith.addf %269, %272 : vector<16x32xf32>
    %274 = arith.addf %273, %244 : vector<16x32xf32>
    %c0_91 = arith.constant 0 : index
    %c0_92 = arith.constant 0 : index
    %c0_93 = arith.constant 0 : index
    %275 = vector.load %arg13[%c0_91, %c0_92, %c0_93] : memref<2x1x32xf32, #tpu.memory_space<vmem>>, vector<1x1x32xf32>
    %276 = vector.shape_cast %275 : vector<1x1x32xf32> to vector<1x32xf32>
    %c0_94 = arith.constant 0 : index
    %c0_95 = arith.constant 0 : index
    %c0_96 = arith.constant 0 : index
    %277 = vector.load %arg14[%c0_94, %c0_95, %c0_96] : memref<2x1x32xf32, #tpu.memory_space<vmem>>, vector<1x1x32xf32>
    %278 = vector.shape_cast %277 : vector<1x1x32xf32> to vector<1x32xf32>
    %cst_97 = arith.constant dense<0.000000e+00> : vector<16xf32>
    %279 = vector.multi_reduction <add>, %274, %cst_97 [1] : vector<16x32xf32> to vector<16xf32>
    %280 = vector.shape_cast %279 : vector<16xf32> to vector<16x1xf32>
    %cst_98 = arith.constant 3.200000e+01 : f32
    %281 = vector.broadcast %cst_98 : f32 to vector<16x1xf32>
    %282 = arith.divf %280, %281 : vector<16x1xf32>
    %283 = vector.broadcast %282 : vector<16x1xf32> to vector<16x32xf32>
    %284 = arith.subf %274, %283 : vector<16x32xf32>
    %285 = arith.mulf %284, %284 : vector<16x32xf32>
    %cst_99 = arith.constant dense<0.000000e+00> : vector<16xf32>
    %286 = vector.multi_reduction <add>, %285, %cst_99 [1] : vector<16x32xf32> to vector<16xf32>
    %287 = vector.shape_cast %286 : vector<16xf32> to vector<16x1xf32>
    %cst_100 = arith.constant 3.200000e+01 : f32
    %288 = vector.broadcast %cst_100 : f32 to vector<16x1xf32>
    %289 = arith.divf %287, %288 : vector<16x1xf32>
    %cst_101 = arith.constant 9.99999996E-13 : f32
    %290 = vector.broadcast %cst_101 : f32 to vector<16x1xf32>
    %291 = arith.addf %289, %290 : vector<16x1xf32>
    %292 = math.rsqrt %291 : vector<16x1xf32>
    %293 = vector.broadcast %292 : vector<16x1xf32> to vector<16x32xf32>
    %294 = arith.mulf %284, %293 : vector<16x32xf32>
    %295 = vector.broadcast %276 : vector<1x32xf32> to vector<16x32xf32>
    %296 = arith.mulf %294, %295 : vector<16x32xf32>
    %297 = vector.broadcast %278 : vector<1x32xf32> to vector<16x32xf32>
    %298 = arith.addf %296, %297 : vector<16x32xf32>
    %299 = arith.truncf %298 : vector<16x32xf32> to vector<16x32xbf16>
    %c1 = arith.constant 1 : index
    %c0_102 = arith.constant 0 : index
    %c0_103 = arith.constant 0 : index
    %300 = vector.load %arg2[%c1, %c0_102, %c0_103] : memref<2x32x97xbf16, #tpu.memory_space<vmem>>, vector<1x32x97xbf16>
    %301 = vector.shape_cast %300 : vector<1x32x97xbf16> to vector<32x97xbf16>
    %cst_104 = arith.constant dense<0.000000e+00> : vector<16x97xf32>
    %302 = tpu.matmul %299, %301, %cst_104 {dimension_numbers = #tpu.dot_dimension_numbers<[1], [0], [0], [1], [0, 0, 1, 1], [], []>} : vector<16x32xbf16>, vector<32x97xbf16>, vector<16x97xf32> -> vector<16x97xf32>
    %303 = vector.extract_strided_slice %302 {offsets = [0, 96], sizes = [16, 1], strides = [1, 1]} : vector<16x97xf32> to vector<16x1xf32>
    %c1_105 = arith.constant 1 : index
    %c0_106 = arith.constant 0 : index
    %c0_107 = arith.constant 0 : index
    %304 = vector.load %arg4[%c1_105, %c0_106, %c0_107] : memref<2x1x1xf32, #tpu.memory_space<vmem>>, vector<1x1x1xf32>
    %305 = vector.shape_cast %304 : vector<1x1x1xf32> to vector<1x1xf32>
    %306 = vector.broadcast %305 : vector<1x1xf32> to vector<16x1xf32>
    %307 = arith.addf %303, %306 : vector<16x1xf32>
    %cst_108 = arith.constant 0.000000e+00 : f32
    %308 = vector.broadcast %cst_108 : f32 to vector<16x1xf32>
    %309 = arith.cmpf ole, %307, %308 : vector<16x1xf32>
    %310 = arith.extui %309 : vector<16x1xi1> to vector<16x1xi32>
    %311 = arith.sitofp %310 : vector<16x1xi32> to vector<16x1xf32>
    %312 = vector.extract_strided_slice %302 {offsets = [0, 0], sizes = [16, 96], strides = [1, 1]} : vector<16x97xf32> to vector<16x96xf32>
    %313 = vector.broadcast %311 : vector<16x1xf32> to vector<16x96xf32>
    %314 = arith.mulf %313, %312 : vector<16x96xf32>
    %315 = arith.subf %312, %314 : vector<16x96xf32>
    %c1_109 = arith.constant 1 : index
    %c0_110 = arith.constant 0 : index
    %c0_111 = arith.constant 0 : index
    %316 = vector.load %arg3[%c1_109, %c0_110, %c0_111] : memref<2x1x96xf32, #tpu.memory_space<vmem>>, vector<1x1x96xf32>
    %317 = vector.shape_cast %316 : vector<1x1x96xf32> to vector<1x96xf32>
    %318 = vector.extract_strided_slice %317 {offsets = [0, 0], sizes = [1, 32], strides = [1, 1]} : vector<1x96xf32> to vector<1x32xf32>
    %319 = vector.extract_strided_slice %317 {offsets = [0, 32], sizes = [1, 32], strides = [1, 1]} : vector<1x96xf32> to vector<1x32xf32>
    %320 = vector.extract_strided_slice %317 {offsets = [0, 64], sizes = [1, 32], strides = [1, 1]} : vector<1x96xf32> to vector<1x32xf32>
    %321 = vector.extract_strided_slice %314 {offsets = [0, 0], sizes = [16, 32], strides = [1, 1]} : vector<16x96xf32> to vector<16x32xf32>
    %322 = vector.broadcast %318 : vector<1x32xf32> to vector<16x32xf32>
    %323 = arith.addf %321, %322 : vector<16x32xf32>
    %324 = arith.truncf %323 : vector<16x32xf32> to vector<16x32xbf16>
    %325 = vector.extract_strided_slice %314 {offsets = [0, 32], sizes = [16, 32], strides = [1, 1]} : vector<16x96xf32> to vector<16x32xf32>
    %326 = vector.broadcast %319 : vector<1x32xf32> to vector<16x32xf32>
    %327 = arith.addf %325, %326 : vector<16x32xf32>
    %328 = arith.truncf %327 : vector<16x32xf32> to vector<16x32xbf16>
    %329 = vector.extract_strided_slice %315 {offsets = [0, 0], sizes = [16, 32], strides = [1, 1]} : vector<16x96xf32> to vector<16x32xf32>
    %330 = vector.broadcast %318 : vector<1x32xf32> to vector<16x32xf32>
    %331 = arith.addf %329, %330 : vector<16x32xf32>
    %332 = arith.truncf %331 : vector<16x32xf32> to vector<16x32xbf16>
    %333 = vector.extract_strided_slice %315 {offsets = [0, 32], sizes = [16, 32], strides = [1, 1]} : vector<16x96xf32> to vector<16x32xf32>
    %334 = vector.broadcast %319 : vector<1x32xf32> to vector<16x32xf32>
    %335 = arith.addf %333, %334 : vector<16x32xf32>
    %336 = arith.truncf %335 : vector<16x32xf32> to vector<16x32xbf16>
    %337 = vector.extract_strided_slice %315 {offsets = [0, 64], sizes = [16, 32], strides = [1, 1]} : vector<16x96xf32> to vector<16x32xf32>
    %338 = vector.broadcast %320 : vector<1x32xf32> to vector<16x32xf32>
    %339 = arith.addf %337, %338 : vector<16x32xf32>
    %340 = arith.truncf %339 : vector<16x32xf32> to vector<16x32xbf16>
    %341 = vector.extract_strided_slice %312 {offsets = [0, 64], sizes = [16, 32], strides = [1, 1]} : vector<16x96xf32> to vector<16x32xf32>
    %cst_112 = arith.constant 2.000000e+00 : f32
    %342 = vector.broadcast %cst_112 : f32 to vector<1x32xf32>
    %343 = arith.mulf %342, %320 : vector<1x32xf32>
    %344 = vector.broadcast %343 : vector<1x32xf32> to vector<16x32xf32>
    %345 = arith.addf %341, %344 : vector<16x32xf32>
    %346 = arith.truncf %345 : vector<16x32xf32> to vector<16x32xbf16>
    %347 = vector.extract_strided_slice %324 {offsets = [0, 0], sizes = [16, 8], strides = [1, 1]} : vector<16x32xbf16> to vector<16x8xbf16>
    %348 = vector.extract_strided_slice %328 {offsets = [0, 0], sizes = [16, 8], strides = [1, 1]} : vector<16x32xbf16> to vector<16x8xbf16>
    %cst_113 = arith.constant dense<0.000000e+00> : vector<16x16xf32>
    %349 = tpu.matmul %347, %348, %cst_113 {dimension_numbers = #tpu.dot_dimension_numbers<[1], [1], [0], [0], [0, 0, 1, 0], [], []>} : vector<16x8xbf16>, vector<16x8xbf16>, vector<16x16xf32> -> vector<16x16xf32>
    %cst_114 = arith.constant 0.353553385 : f32
    %350 = vector.broadcast %cst_114 : f32 to vector<16x16xf32>
    %351 = arith.mulf %349, %350 : vector<16x16xf32>
    %352 = arith.addf %351, %9 : vector<16x16xf32>
    %cst_115 = arith.constant dense<0xFF800000> : vector<16xf32>
    %353 = vector.multi_reduction <maximumf>, %352, %cst_115 [1] : vector<16x16xf32> to vector<16xf32>
    %354 = vector.shape_cast %353 : vector<16xf32> to vector<16x1xf32>
    %355 = vector.broadcast %354 : vector<16x1xf32> to vector<16x16xf32>
    %356 = arith.subf %352, %355 : vector<16x16xf32>
    %357 = math.exp %356 : vector<16x16xf32>
    %cst_116 = arith.constant dense<0.000000e+00> : vector<16xf32>
    %358 = vector.multi_reduction <add>, %357, %cst_116 [1] : vector<16x16xf32> to vector<16xf32>
    %359 = vector.shape_cast %358 : vector<16xf32> to vector<16x1xf32>
    %360 = tpu.reciprocal %359 {approx = true} : vector<16x1xf32> -> vector<16x1xf32>
    %361 = vector.broadcast %360 : vector<16x1xf32> to vector<16x16xf32>
    %362 = arith.mulf %357, %361 : vector<16x16xf32>
    %363 = arith.truncf %362 : vector<16x16xf32> to vector<16x16xbf16>
    %364 = vector.extract_strided_slice %346 {offsets = [0, 0], sizes = [16, 8], strides = [1, 1]} : vector<16x32xbf16> to vector<16x8xbf16>
    %cst_117 = arith.constant dense<0.000000e+00> : vector<16x8xf32>
    %365 = tpu.matmul %363, %364, %cst_117 {dimension_numbers = #tpu.dot_dimension_numbers<[1], [0], [0], [1], [0, 0, 1, 1], [], []>} : vector<16x16xbf16>, vector<16x8xbf16>, vector<16x8xf32> -> vector<16x8xf32>
    %366 = vector.extract_strided_slice %324 {offsets = [0, 8], sizes = [16, 8], strides = [1, 1]} : vector<16x32xbf16> to vector<16x8xbf16>
    %367 = vector.extract_strided_slice %328 {offsets = [0, 8], sizes = [16, 8], strides = [1, 1]} : vector<16x32xbf16> to vector<16x8xbf16>
    %cst_118 = arith.constant dense<0.000000e+00> : vector<16x16xf32>
    %368 = tpu.matmul %366, %367, %cst_118 {dimension_numbers = #tpu.dot_dimension_numbers<[1], [1], [0], [0], [0, 0, 1, 0], [], []>} : vector<16x8xbf16>, vector<16x8xbf16>, vector<16x16xf32> -> vector<16x16xf32>
    %cst_119 = arith.constant 0.353553385 : f32
    %369 = vector.broadcast %cst_119 : f32 to vector<16x16xf32>
    %370 = arith.mulf %368, %369 : vector<16x16xf32>
    %371 = arith.addf %370, %9 : vector<16x16xf32>
    %cst_120 = arith.constant dense<0xFF800000> : vector<16xf32>
    %372 = vector.multi_reduction <maximumf>, %371, %cst_120 [1] : vector<16x16xf32> to vector<16xf32>
    %373 = vector.shape_cast %372 : vector<16xf32> to vector<16x1xf32>
    %374 = vector.broadcast %373 : vector<16x1xf32> to vector<16x16xf32>
    %375 = arith.subf %371, %374 : vector<16x16xf32>
    %376 = math.exp %375 : vector<16x16xf32>
    %cst_121 = arith.constant dense<0.000000e+00> : vector<16xf32>
    %377 = vector.multi_reduction <add>, %376, %cst_121 [1] : vector<16x16xf32> to vector<16xf32>
    %378 = vector.shape_cast %377 : vector<16xf32> to vector<16x1xf32>
    %379 = tpu.reciprocal %378 {approx = true} : vector<16x1xf32> -> vector<16x1xf32>
    %380 = vector.broadcast %379 : vector<16x1xf32> to vector<16x16xf32>
    %381 = arith.mulf %376, %380 : vector<16x16xf32>
    %382 = arith.truncf %381 : vector<16x16xf32> to vector<16x16xbf16>
    %383 = vector.extract_strided_slice %346 {offsets = [0, 8], sizes = [16, 8], strides = [1, 1]} : vector<16x32xbf16> to vector<16x8xbf16>
    %cst_122 = arith.constant dense<0.000000e+00> : vector<16x8xf32>
    %384 = tpu.matmul %382, %383, %cst_122 {dimension_numbers = #tpu.dot_dimension_numbers<[1], [0], [0], [1], [0, 0, 1, 1], [], []>} : vector<16x16xbf16>, vector<16x8xbf16>, vector<16x8xf32> -> vector<16x8xf32>
    %385 = vector.extract_strided_slice %324 {offsets = [0, 16], sizes = [16, 8], strides = [1, 1]} : vector<16x32xbf16> to vector<16x8xbf16>
    %386 = vector.extract_strided_slice %328 {offsets = [0, 16], sizes = [16, 8], strides = [1, 1]} : vector<16x32xbf16> to vector<16x8xbf16>
    %cst_123 = arith.constant dense<0.000000e+00> : vector<16x16xf32>
    %387 = tpu.matmul %385, %386, %cst_123 {dimension_numbers = #tpu.dot_dimension_numbers<[1], [1], [0], [0], [0, 0, 1, 0], [], []>} : vector<16x8xbf16>, vector<16x8xbf16>, vector<16x16xf32> -> vector<16x16xf32>
    %cst_124 = arith.constant 0.353553385 : f32
    %388 = vector.broadcast %cst_124 : f32 to vector<16x16xf32>
    %389 = arith.mulf %387, %388 : vector<16x16xf32>
    %390 = arith.addf %389, %9 : vector<16x16xf32>
    %cst_125 = arith.constant dense<0xFF800000> : vector<16xf32>
    %391 = vector.multi_reduction <maximumf>, %390, %cst_125 [1] : vector<16x16xf32> to vector<16xf32>
    %392 = vector.shape_cast %391 : vector<16xf32> to vector<16x1xf32>
    %393 = vector.broadcast %392 : vector<16x1xf32> to vector<16x16xf32>
    %394 = arith.subf %390, %393 : vector<16x16xf32>
    %395 = math.exp %394 : vector<16x16xf32>
    %cst_126 = arith.constant dense<0.000000e+00> : vector<16xf32>
    %396 = vector.multi_reduction <add>, %395, %cst_126 [1] : vector<16x16xf32> to vector<16xf32>
    %397 = vector.shape_cast %396 : vector<16xf32> to vector<16x1xf32>
    %398 = tpu.reciprocal %397 {approx = true} : vector<16x1xf32> -> vector<16x1xf32>
    %399 = vector.broadcast %398 : vector<16x1xf32> to vector<16x16xf32>
    %400 = arith.mulf %395, %399 : vector<16x16xf32>
    %401 = arith.truncf %400 : vector<16x16xf32> to vector<16x16xbf16>
    %402 = vector.extract_strided_slice %346 {offsets = [0, 16], sizes = [16, 8], strides = [1, 1]} : vector<16x32xbf16> to vector<16x8xbf16>
    %cst_127 = arith.constant dense<0.000000e+00> : vector<16x8xf32>
    %403 = tpu.matmul %401, %402, %cst_127 {dimension_numbers = #tpu.dot_dimension_numbers<[1], [0], [0], [1], [0, 0, 1, 1], [], []>} : vector<16x16xbf16>, vector<16x8xbf16>, vector<16x8xf32> -> vector<16x8xf32>
    %404 = vector.extract_strided_slice %324 {offsets = [0, 24], sizes = [16, 8], strides = [1, 1]} : vector<16x32xbf16> to vector<16x8xbf16>
    %405 = vector.extract_strided_slice %328 {offsets = [0, 24], sizes = [16, 8], strides = [1, 1]} : vector<16x32xbf16> to vector<16x8xbf16>
    %cst_128 = arith.constant dense<0.000000e+00> : vector<16x16xf32>
    %406 = tpu.matmul %404, %405, %cst_128 {dimension_numbers = #tpu.dot_dimension_numbers<[1], [1], [0], [0], [0, 0, 1, 0], [], []>} : vector<16x8xbf16>, vector<16x8xbf16>, vector<16x16xf32> -> vector<16x16xf32>
    %cst_129 = arith.constant 0.353553385 : f32
    %407 = vector.broadcast %cst_129 : f32 to vector<16x16xf32>
    %408 = arith.mulf %406, %407 : vector<16x16xf32>
    %409 = arith.addf %408, %9 : vector<16x16xf32>
    %cst_130 = arith.constant dense<0xFF800000> : vector<16xf32>
    %410 = vector.multi_reduction <maximumf>, %409, %cst_130 [1] : vector<16x16xf32> to vector<16xf32>
    %411 = vector.shape_cast %410 : vector<16xf32> to vector<16x1xf32>
    %412 = vector.broadcast %411 : vector<16x1xf32> to vector<16x16xf32>
    %413 = arith.subf %409, %412 : vector<16x16xf32>
    %414 = math.exp %413 : vector<16x16xf32>
    %cst_131 = arith.constant dense<0.000000e+00> : vector<16xf32>
    %415 = vector.multi_reduction <add>, %414, %cst_131 [1] : vector<16x16xf32> to vector<16xf32>
    %416 = vector.shape_cast %415 : vector<16xf32> to vector<16x1xf32>
    %417 = tpu.reciprocal %416 {approx = true} : vector<16x1xf32> -> vector<16x1xf32>
    %418 = vector.broadcast %417 : vector<16x1xf32> to vector<16x16xf32>
    %419 = arith.mulf %414, %418 : vector<16x16xf32>
    %420 = arith.truncf %419 : vector<16x16xf32> to vector<16x16xbf16>
    %421 = vector.extract_strided_slice %346 {offsets = [0, 24], sizes = [16, 8], strides = [1, 1]} : vector<16x32xbf16> to vector<16x8xbf16>
    %cst_132 = arith.constant dense<0.000000e+00> : vector<16x8xf32>
    %422 = tpu.matmul %420, %421, %cst_132 {dimension_numbers = #tpu.dot_dimension_numbers<[1], [0], [0], [1], [0, 0, 1, 1], [], []>} : vector<16x16xbf16>, vector<16x8xbf16>, vector<16x8xf32> -> vector<16x8xf32>
    %423 = vector.extract_strided_slice %332 {offsets = [0, 0], sizes = [16, 8], strides = [1, 1]} : vector<16x32xbf16> to vector<16x8xbf16>
    %424 = vector.extract_strided_slice %336 {offsets = [0, 0], sizes = [16, 8], strides = [1, 1]} : vector<16x32xbf16> to vector<16x8xbf16>
    %cst_133 = arith.constant dense<0.000000e+00> : vector<16x16xf32>
    %425 = tpu.matmul %423, %424, %cst_133 {dimension_numbers = #tpu.dot_dimension_numbers<[1], [1], [0], [0], [0, 0, 1, 0], [], []>} : vector<16x8xbf16>, vector<16x8xbf16>, vector<16x16xf32> -> vector<16x16xf32>
    %cst_134 = arith.constant 0.353553385 : f32
    %426 = vector.broadcast %cst_134 : f32 to vector<16x16xf32>
    %427 = arith.mulf %425, %426 : vector<16x16xf32>
    %428 = arith.addf %427, %9 : vector<16x16xf32>
    %cst_135 = arith.constant dense<0xFF800000> : vector<16xf32>
    %429 = vector.multi_reduction <maximumf>, %428, %cst_135 [1] : vector<16x16xf32> to vector<16xf32>
    %430 = vector.shape_cast %429 : vector<16xf32> to vector<16x1xf32>
    %431 = vector.broadcast %430 : vector<16x1xf32> to vector<16x16xf32>
    %432 = arith.subf %428, %431 : vector<16x16xf32>
    %433 = math.exp %432 : vector<16x16xf32>
    %cst_136 = arith.constant dense<0.000000e+00> : vector<16xf32>
    %434 = vector.multi_reduction <add>, %433, %cst_136 [1] : vector<16x16xf32> to vector<16xf32>
    %435 = vector.shape_cast %434 : vector<16xf32> to vector<16x1xf32>
    %436 = tpu.reciprocal %435 {approx = true} : vector<16x1xf32> -> vector<16x1xf32>
    %437 = vector.broadcast %436 : vector<16x1xf32> to vector<16x16xf32>
    %438 = arith.mulf %433, %437 : vector<16x16xf32>
    %439 = arith.truncf %438 : vector<16x16xf32> to vector<16x16xbf16>
    %440 = vector.extract_strided_slice %340 {offsets = [0, 0], sizes = [16, 8], strides = [1, 1]} : vector<16x32xbf16> to vector<16x8xbf16>
    %cst_137 = arith.constant dense<0.000000e+00> : vector<16x8xf32>
    %441 = tpu.matmul %439, %440, %cst_137 {dimension_numbers = #tpu.dot_dimension_numbers<[1], [0], [0], [1], [0, 0, 1, 1], [], []>} : vector<16x16xbf16>, vector<16x8xbf16>, vector<16x8xf32> -> vector<16x8xf32>
    %442 = vector.extract_strided_slice %332 {offsets = [0, 8], sizes = [16, 8], strides = [1, 1]} : vector<16x32xbf16> to vector<16x8xbf16>
    %443 = vector.extract_strided_slice %336 {offsets = [0, 8], sizes = [16, 8], strides = [1, 1]} : vector<16x32xbf16> to vector<16x8xbf16>
    %cst_138 = arith.constant dense<0.000000e+00> : vector<16x16xf32>
    %444 = tpu.matmul %442, %443, %cst_138 {dimension_numbers = #tpu.dot_dimension_numbers<[1], [1], [0], [0], [0, 0, 1, 0], [], []>} : vector<16x8xbf16>, vector<16x8xbf16>, vector<16x16xf32> -> vector<16x16xf32>
    %cst_139 = arith.constant 0.353553385 : f32
    %445 = vector.broadcast %cst_139 : f32 to vector<16x16xf32>
    %446 = arith.mulf %444, %445 : vector<16x16xf32>
    %447 = arith.addf %446, %9 : vector<16x16xf32>
    %cst_140 = arith.constant dense<0xFF800000> : vector<16xf32>
    %448 = vector.multi_reduction <maximumf>, %447, %cst_140 [1] : vector<16x16xf32> to vector<16xf32>
    %449 = vector.shape_cast %448 : vector<16xf32> to vector<16x1xf32>
    %450 = vector.broadcast %449 : vector<16x1xf32> to vector<16x16xf32>
    %451 = arith.subf %447, %450 : vector<16x16xf32>
    %452 = math.exp %451 : vector<16x16xf32>
    %cst_141 = arith.constant dense<0.000000e+00> : vector<16xf32>
    %453 = vector.multi_reduction <add>, %452, %cst_141 [1] : vector<16x16xf32> to vector<16xf32>
    %454 = vector.shape_cast %453 : vector<16xf32> to vector<16x1xf32>
    %455 = tpu.reciprocal %454 {approx = true} : vector<16x1xf32> -> vector<16x1xf32>
    %456 = vector.broadcast %455 : vector<16x1xf32> to vector<16x16xf32>
    %457 = arith.mulf %452, %456 : vector<16x16xf32>
    %458 = arith.truncf %457 : vector<16x16xf32> to vector<16x16xbf16>
    %459 = vector.extract_strided_slice %340 {offsets = [0, 8], sizes = [16, 8], strides = [1, 1]} : vector<16x32xbf16> to vector<16x8xbf16>
    %cst_142 = arith.constant dense<0.000000e+00> : vector<16x8xf32>
    %460 = tpu.matmul %458, %459, %cst_142 {dimension_numbers = #tpu.dot_dimension_numbers<[1], [0], [0], [1], [0, 0, 1, 1], [], []>} : vector<16x16xbf16>, vector<16x8xbf16>, vector<16x8xf32> -> vector<16x8xf32>
    %461 = vector.extract_strided_slice %332 {offsets = [0, 16], sizes = [16, 8], strides = [1, 1]} : vector<16x32xbf16> to vector<16x8xbf16>
    %462 = vector.extract_strided_slice %336 {offsets = [0, 16], sizes = [16, 8], strides = [1, 1]} : vector<16x32xbf16> to vector<16x8xbf16>
    %cst_143 = arith.constant dense<0.000000e+00> : vector<16x16xf32>
    %463 = tpu.matmul %461, %462, %cst_143 {dimension_numbers = #tpu.dot_dimension_numbers<[1], [1], [0], [0], [0, 0, 1, 0], [], []>} : vector<16x8xbf16>, vector<16x8xbf16>, vector<16x16xf32> -> vector<16x16xf32>
    %cst_144 = arith.constant 0.353553385 : f32
    %464 = vector.broadcast %cst_144 : f32 to vector<16x16xf32>
    %465 = arith.mulf %463, %464 : vector<16x16xf32>
    %466 = arith.addf %465, %9 : vector<16x16xf32>
    %cst_145 = arith.constant dense<0xFF800000> : vector<16xf32>
    %467 = vector.multi_reduction <maximumf>, %466, %cst_145 [1] : vector<16x16xf32> to vector<16xf32>
    %468 = vector.shape_cast %467 : vector<16xf32> to vector<16x1xf32>
    %469 = vector.broadcast %468 : vector<16x1xf32> to vector<16x16xf32>
    %470 = arith.subf %466, %469 : vector<16x16xf32>
    %471 = math.exp %470 : vector<16x16xf32>
    %cst_146 = arith.constant dense<0.000000e+00> : vector<16xf32>
    %472 = vector.multi_reduction <add>, %471, %cst_146 [1] : vector<16x16xf32> to vector<16xf32>
    %473 = vector.shape_cast %472 : vector<16xf32> to vector<16x1xf32>
    %474 = tpu.reciprocal %473 {approx = true} : vector<16x1xf32> -> vector<16x1xf32>
    %475 = vector.broadcast %474 : vector<16x1xf32> to vector<16x16xf32>
    %476 = arith.mulf %471, %475 : vector<16x16xf32>
    %477 = arith.truncf %476 : vector<16x16xf32> to vector<16x16xbf16>
    %478 = vector.extract_strided_slice %340 {offsets = [0, 16], sizes = [16, 8], strides = [1, 1]} : vector<16x32xbf16> to vector<16x8xbf16>
    %cst_147 = arith.constant dense<0.000000e+00> : vector<16x8xf32>
    %479 = tpu.matmul %477, %478, %cst_147 {dimension_numbers = #tpu.dot_dimension_numbers<[1], [0], [0], [1], [0, 0, 1, 1], [], []>} : vector<16x16xbf16>, vector<16x8xbf16>, vector<16x8xf32> -> vector<16x8xf32>
    %480 = vector.extract_strided_slice %332 {offsets = [0, 24], sizes = [16, 8], strides = [1, 1]} : vector<16x32xbf16> to vector<16x8xbf16>
    %481 = vector.extract_strided_slice %336 {offsets = [0, 24], sizes = [16, 8], strides = [1, 1]} : vector<16x32xbf16> to vector<16x8xbf16>
    %cst_148 = arith.constant dense<0.000000e+00> : vector<16x16xf32>
    %482 = tpu.matmul %480, %481, %cst_148 {dimension_numbers = #tpu.dot_dimension_numbers<[1], [1], [0], [0], [0, 0, 1, 0], [], []>} : vector<16x8xbf16>, vector<16x8xbf16>, vector<16x16xf32> -> vector<16x16xf32>
    %cst_149 = arith.constant 0.353553385 : f32
    %483 = vector.broadcast %cst_149 : f32 to vector<16x16xf32>
    %484 = arith.mulf %482, %483 : vector<16x16xf32>
    %485 = arith.addf %484, %9 : vector<16x16xf32>
    %cst_150 = arith.constant dense<0xFF800000> : vector<16xf32>
    %486 = vector.multi_reduction <maximumf>, %485, %cst_150 [1] : vector<16x16xf32> to vector<16xf32>
    %487 = vector.shape_cast %486 : vector<16xf32> to vector<16x1xf32>
    %488 = vector.broadcast %487 : vector<16x1xf32> to vector<16x16xf32>
    %489 = arith.subf %485, %488 : vector<16x16xf32>
    %490 = math.exp %489 : vector<16x16xf32>
    %cst_151 = arith.constant dense<0.000000e+00> : vector<16xf32>
    %491 = vector.multi_reduction <add>, %490, %cst_151 [1] : vector<16x16xf32> to vector<16xf32>
    %492 = vector.shape_cast %491 : vector<16xf32> to vector<16x1xf32>
    %493 = tpu.reciprocal %492 {approx = true} : vector<16x1xf32> -> vector<16x1xf32>
    %494 = vector.broadcast %493 : vector<16x1xf32> to vector<16x16xf32>
    %495 = arith.mulf %490, %494 : vector<16x16xf32>
    %496 = arith.truncf %495 : vector<16x16xf32> to vector<16x16xbf16>
    %497 = vector.extract_strided_slice %340 {offsets = [0, 24], sizes = [16, 8], strides = [1, 1]} : vector<16x32xbf16> to vector<16x8xbf16>
    %cst_152 = arith.constant dense<0.000000e+00> : vector<16x8xf32>
    %498 = tpu.matmul %496, %497, %cst_152 {dimension_numbers = #tpu.dot_dimension_numbers<[1], [0], [0], [1], [0, 0, 1, 1], [], []>} : vector<16x16xbf16>, vector<16x8xbf16>, vector<16x8xf32> -> vector<16x8xf32>
    %499 = tpu.concatenate %365, %384, %403, %422, %441, %460, %479, %498 in 1 : vector<16x8xf32>, vector<16x8xf32>, vector<16x8xf32>, vector<16x8xf32>, vector<16x8xf32>, vector<16x8xf32>, vector<16x8xf32>, vector<16x8xf32> -> vector<16x64xf32>
    %500 = arith.truncf %499 : vector<16x64xf32> to vector<16x64xbf16>
    %c1_153 = arith.constant 1 : index
    %c0_154 = arith.constant 0 : index
    %c0_155 = arith.constant 0 : index
    %501 = vector.load %arg5[%c1_153, %c0_154, %c0_155] : memref<2x64x32xbf16, #tpu.memory_space<vmem>>, vector<1x64x32xbf16>
    %502 = vector.shape_cast %501 : vector<1x64x32xbf16> to vector<64x32xbf16>
    %cst_156 = arith.constant dense<0.000000e+00> : vector<16x32xf32>
    %503 = tpu.matmul %500, %502, %cst_156 {dimension_numbers = #tpu.dot_dimension_numbers<[1], [0], [0], [1], [0, 0, 1, 1], [], []>} : vector<16x64xbf16>, vector<64x32xbf16>, vector<16x32xf32> -> vector<16x32xf32>
    %c1_157 = arith.constant 1 : index
    %c0_158 = arith.constant 0 : index
    %c0_159 = arith.constant 0 : index
    %504 = vector.load %arg6[%c1_157, %c0_158, %c0_159] : memref<2x1x32xf32, #tpu.memory_space<vmem>>, vector<1x1x32xf32>
    %505 = vector.shape_cast %504 : vector<1x1x32xf32> to vector<1x32xf32>
    %506 = vector.broadcast %505 : vector<1x32xf32> to vector<16x32xf32>
    %507 = arith.addf %503, %506 : vector<16x32xf32>
    %508 = arith.addf %507, %298 : vector<16x32xf32>
    %c1_160 = arith.constant 1 : index
    %c0_161 = arith.constant 0 : index
    %c0_162 = arith.constant 0 : index
    %509 = vector.load %arg7[%c1_160, %c0_161, %c0_162] : memref<2x1x32xf32, #tpu.memory_space<vmem>>, vector<1x1x32xf32>
    %510 = vector.shape_cast %509 : vector<1x1x32xf32> to vector<1x32xf32>
    %c1_163 = arith.constant 1 : index
    %c0_164 = arith.constant 0 : index
    %c0_165 = arith.constant 0 : index
    %511 = vector.load %arg8[%c1_163, %c0_164, %c0_165] : memref<2x1x32xf32, #tpu.memory_space<vmem>>, vector<1x1x32xf32>
    %512 = vector.shape_cast %511 : vector<1x1x32xf32> to vector<1x32xf32>
    %cst_166 = arith.constant dense<0.000000e+00> : vector<16xf32>
    %513 = vector.multi_reduction <add>, %508, %cst_166 [1] : vector<16x32xf32> to vector<16xf32>
    %514 = vector.shape_cast %513 : vector<16xf32> to vector<16x1xf32>
    %cst_167 = arith.constant 3.200000e+01 : f32
    %515 = vector.broadcast %cst_167 : f32 to vector<16x1xf32>
    %516 = arith.divf %514, %515 : vector<16x1xf32>
    %517 = vector.broadcast %516 : vector<16x1xf32> to vector<16x32xf32>
    %518 = arith.subf %508, %517 : vector<16x32xf32>
    %519 = arith.mulf %518, %518 : vector<16x32xf32>
    %cst_168 = arith.constant dense<0.000000e+00> : vector<16xf32>
    %520 = vector.multi_reduction <add>, %519, %cst_168 [1] : vector<16x32xf32> to vector<16xf32>
    %521 = vector.shape_cast %520 : vector<16xf32> to vector<16x1xf32>
    %cst_169 = arith.constant 3.200000e+01 : f32
    %522 = vector.broadcast %cst_169 : f32 to vector<16x1xf32>
    %523 = arith.divf %521, %522 : vector<16x1xf32>
    %cst_170 = arith.constant 9.99999996E-13 : f32
    %524 = vector.broadcast %cst_170 : f32 to vector<16x1xf32>
    %525 = arith.addf %523, %524 : vector<16x1xf32>
    %526 = math.rsqrt %525 : vector<16x1xf32>
    %527 = vector.broadcast %526 : vector<16x1xf32> to vector<16x32xf32>
    %528 = arith.mulf %518, %527 : vector<16x32xf32>
    %529 = vector.broadcast %510 : vector<1x32xf32> to vector<16x32xf32>
    %530 = arith.mulf %528, %529 : vector<16x32xf32>
    %531 = vector.broadcast %512 : vector<1x32xf32> to vector<16x32xf32>
    %532 = arith.addf %530, %531 : vector<16x32xf32>
    %533 = arith.truncf %532 : vector<16x32xf32> to vector<16x32xbf16>
    %c1_171 = arith.constant 1 : index
    %c0_172 = arith.constant 0 : index
    %c0_173 = arith.constant 0 : index
    %534 = vector.load %arg9[%c1_171, %c0_172, %c0_173] : memref<2x32x64xbf16, #tpu.memory_space<vmem>>, vector<1x32x64xbf16>
    %535 = vector.shape_cast %534 : vector<1x32x64xbf16> to vector<32x64xbf16>
    %cst_174 = arith.constant dense<0.000000e+00> : vector<16x64xf32>
    %536 = tpu.matmul %533, %535, %cst_174 {dimension_numbers = #tpu.dot_dimension_numbers<[1], [0], [0], [1], [0, 0, 1, 1], [], []>} : vector<16x32xbf16>, vector<32x64xbf16>, vector<16x64xf32> -> vector<16x64xf32>
    %c1_175 = arith.constant 1 : index
    %c0_176 = arith.constant 0 : index
    %c0_177 = arith.constant 0 : index
    %537 = vector.load %arg10[%c1_175, %c0_176, %c0_177] : memref<2x1x64xf32, #tpu.memory_space<vmem>>, vector<1x1x64xf32>
    %538 = vector.shape_cast %537 : vector<1x1x64xf32> to vector<1x64xf32>
    %539 = vector.broadcast %538 : vector<1x64xf32> to vector<16x64xf32>
    %540 = arith.addf %536, %539 : vector<16x64xf32>
    %cst_178 = arith.constant 5.000000e-01 : f32
    %541 = vector.broadcast %cst_178 : f32 to vector<16x64xf32>
    %542 = arith.mulf %541, %540 : vector<16x64xf32>
    %cst_179 = arith.constant 4.471500e-02 : f32
    %543 = vector.broadcast %cst_179 : f32 to vector<16x64xf32>
    %544 = arith.mulf %543, %540 : vector<16x64xf32>
    %545 = arith.mulf %544, %540 : vector<16x64xf32>
    %546 = arith.mulf %545, %540 : vector<16x64xf32>
    %547 = arith.addf %540, %546 : vector<16x64xf32>
    %cst_180 = arith.constant 0.797884583 : f32
    %548 = vector.broadcast %cst_180 : f32 to vector<16x64xf32>
    %549 = arith.mulf %548, %547 : vector<16x64xf32>
    %550 = math.tanh %549 : vector<16x64xf32>
    %cst_181 = arith.constant 1.000000e+00 : f32
    %551 = vector.broadcast %cst_181 : f32 to vector<16x64xf32>
    %552 = arith.addf %551, %550 : vector<16x64xf32>
    %553 = arith.mulf %542, %552 : vector<16x64xf32>
    %554 = arith.truncf %553 : vector<16x64xf32> to vector<16x64xbf16>
    %c1_182 = arith.constant 1 : index
    %c0_183 = arith.constant 0 : index
    %c0_184 = arith.constant 0 : index
    %555 = vector.load %arg11[%c1_182, %c0_183, %c0_184] : memref<2x64x32xbf16, #tpu.memory_space<vmem>>, vector<1x64x32xbf16>
    %556 = vector.shape_cast %555 : vector<1x64x32xbf16> to vector<64x32xbf16>
    %cst_185 = arith.constant dense<0.000000e+00> : vector<16x32xf32>
    %557 = tpu.matmul %554, %556, %cst_185 {dimension_numbers = #tpu.dot_dimension_numbers<[1], [0], [0], [1], [0, 0, 1, 1], [], []>} : vector<16x64xbf16>, vector<64x32xbf16>, vector<16x32xf32> -> vector<16x32xf32>
    %c1_186 = arith.constant 1 : index
    %c0_187 = arith.constant 0 : index
    %c0_188 = arith.constant 0 : index
    %558 = vector.load %arg12[%c1_186, %c0_187, %c0_188] : memref<2x1x32xf32, #tpu.memory_space<vmem>>, vector<1x1x32xf32>
    %559 = vector.shape_cast %558 : vector<1x1x32xf32> to vector<1x32xf32>
    %560 = vector.broadcast %559 : vector<1x32xf32> to vector<16x32xf32>
    %561 = arith.addf %557, %560 : vector<16x32xf32>
    %562 = arith.addf %561, %532 : vector<16x32xf32>
    %c1_189 = arith.constant 1 : index
    %c0_190 = arith.constant 0 : index
    %c0_191 = arith.constant 0 : index
    %563 = vector.load %arg13[%c1_189, %c0_190, %c0_191] : memref<2x1x32xf32, #tpu.memory_space<vmem>>, vector<1x1x32xf32>
    %564 = vector.shape_cast %563 : vector<1x1x32xf32> to vector<1x32xf32>
    %c1_192 = arith.constant 1 : index
    %c0_193 = arith.constant 0 : index
    %c0_194 = arith.constant 0 : index
    %565 = vector.load %arg14[%c1_192, %c0_193, %c0_194] : memref<2x1x32xf32, #tpu.memory_space<vmem>>, vector<1x1x32xf32>
    %566 = vector.shape_cast %565 : vector<1x1x32xf32> to vector<1x32xf32>
    %cst_195 = arith.constant dense<0.000000e+00> : vector<16xf32>
    %567 = vector.multi_reduction <add>, %562, %cst_195 [1] : vector<16x32xf32> to vector<16xf32>
    %568 = vector.shape_cast %567 : vector<16xf32> to vector<16x1xf32>
    %cst_196 = arith.constant 3.200000e+01 : f32
    %569 = vector.broadcast %cst_196 : f32 to vector<16x1xf32>
    %570 = arith.divf %568, %569 : vector<16x1xf32>
    %571 = vector.broadcast %570 : vector<16x1xf32> to vector<16x32xf32>
    %572 = arith.subf %562, %571 : vector<16x32xf32>
    %573 = arith.mulf %572, %572 : vector<16x32xf32>
    %cst_197 = arith.constant dense<0.000000e+00> : vector<16xf32>
    %574 = vector.multi_reduction <add>, %573, %cst_197 [1] : vector<16x32xf32> to vector<16xf32>
    %575 = vector.shape_cast %574 : vector<16xf32> to vector<16x1xf32>
    %cst_198 = arith.constant 3.200000e+01 : f32
    %576 = vector.broadcast %cst_198 : f32 to vector<16x1xf32>
    %577 = arith.divf %575, %576 : vector<16x1xf32>
    %cst_199 = arith.constant 9.99999996E-13 : f32
    %578 = vector.broadcast %cst_199 : f32 to vector<16x1xf32>
    %579 = arith.addf %577, %578 : vector<16x1xf32>
    %580 = math.rsqrt %579 : vector<16x1xf32>
    %581 = vector.broadcast %580 : vector<16x1xf32> to vector<16x32xf32>
    %582 = arith.mulf %572, %581 : vector<16x32xf32>
    %583 = vector.broadcast %564 : vector<1x32xf32> to vector<16x32xf32>
    %584 = arith.mulf %582, %583 : vector<16x32xf32>
    %585 = vector.broadcast %566 : vector<1x32xf32> to vector<16x32xf32>
    %586 = arith.addf %584, %585 : vector<16x32xf32>
    %c0_200 = arith.constant 0 : index
    %c0_201 = arith.constant 0 : index
    %587 = vector.load %arg15[%c0_200, %c0_201] : memref<16x32xf32, #tpu.memory_space<vmem>>, vector<16x32xf32>
    tpu.vector_store %arg15[%c0_200, %c0_201], %586 {strides = array<i32>} : memref<16x32xf32, #tpu.memory_space<vmem>>, vector<16x32xf32>,
    return
  }
  func.func @transform_0(%arg0: i32) -> (i32, i32) {
    %c0_i32 = arith.constant 0 : i32
    %c0_i32_0 = arith.constant 0 : i32
    %c0_i32_1 = arith.constant 0 : i32
    return %c0_i32, %c0_i32_0 : i32, i32
  }
  func.func @transform_1(%arg0: i32) -> (i32, i32, i32) {
    %c0_i32 = arith.constant 0 : i32
    %c0_i32_0 = arith.constant 0 : i32
    %c0_i32_1 = arith.constant 0 : i32
    %c0_i32_2 = arith.constant 0 : i32
    return %c0_i32, %c0_i32_0, %c0_i32_1 : i32, i32, i32
  }
  func.func @transform_2(%arg0: i32) -> (i32, i32, i32) {
    %c0_i32 = arith.constant 0 : i32
    %c0_i32_0 = arith.constant 0 : i32
    %c0_i32_1 = arith.constant 0 : i32
    %c0_i32_2 = arith.constant 0 : i32
    return %c0_i32, %c0_i32_0, %c0_i32_1 : i32, i32, i32
  }
  func.func @transform_3(%arg0: i32) -> (i32, i32, i32) {
    %c0_i32 = arith.constant 0 : i32
    %c0_i32_0 = arith.constant 0 : i32
    %c0_i32_1 = arith.constant 0 : i32
    %c0_i32_2 = arith.constant 0 : i32
    return %c0_i32, %c0_i32_0, %c0_i32_1 : i32, i32, i32
  }
  func.func @transform_4(%arg0: i32) -> (i32, i32, i32) {
    %c0_i32 = arith.constant 0 : i32
    %c0_i32_0 = arith.constant 0 : i32
    %c0_i32_1 = arith.constant 0 : i32
    %c0_i32_2 = arith.constant 0 : i32
    return %c0_i32, %c0_i32_0, %c0_i32_1 : i32, i32, i32
  }
  func.func @transform_5(%arg0: i32) -> (i32, i32, i32) {
    %c0_i32 = arith.constant 0 : i32
    %c0_i32_0 = arith.constant 0 : i32
    %c0_i32_1 = arith.constant 0 : i32
    %c0_i32_2 = arith.constant 0 : i32
    return %c0_i32, %c0_i32_0, %c0_i32_1 : i32, i32, i32
  }
  func.func @transform_6(%arg0: i32) -> (i32, i32, i32) {
    %c0_i32 = arith.constant 0 : i32
    %c0_i32_0 = arith.constant 0 : i32
    %c0_i32_1 = arith.constant 0 : i32
    %c0_i32_2 = arith.constant 0 : i32
    return %c0_i32, %c0_i32_0, %c0_i32_1 : i32, i32, i32
  }
  func.func @transform_7(%arg0: i32) -> (i32, i32, i32) {
    %c0_i32 = arith.constant 0 : i32
    %c0_i32_0 = arith.constant 0 : i32
    %c0_i32_1 = arith.constant 0 : i32
    %c0_i32_2 = arith.constant 0 : i32
    return %c0_i32, %c0_i32_0, %c0_i32_1 : i32, i32, i32
  }
  func.func @transform_8(%arg0: i32) -> (i32, i32, i32) {
    %c0_i32 = arith.constant 0 : i32
    %c0_i32_0 = arith.constant 0 : i32
    %c0_i32_1 = arith.constant 0 : i32
    %c0_i32_2 = arith.constant 0 : i32
    return %c0_i32, %c0_i32_0, %c0_i32_1 : i32, i32, i32
  }
  func.func @transform_9(%arg0: i32) -> (i32, i32, i32) {
    %c0_i32 = arith.constant 0 : i32
    %c0_i32_0 = arith.constant 0 : i32
    %c0_i32_1 = arith.constant 0 : i32
    %c0_i32_2 = arith.constant 0 : i32
    return %c0_i32, %c0_i32_0, %c0_i32_1 : i32, i32, i32
  }
  func.func @transform_10(%arg0: i32) -> (i32, i32, i32) {
    %c0_i32 = arith.constant 0 : i32
    %c0_i32_0 = arith.constant 0 : i32
    %c0_i32_1 = arith.constant 0 : i32
    %c0_i32_2 = arith.constant 0 : i32
    return %c0_i32, %c0_i32_0, %c0_i32_1 : i32, i32, i32
  }
  func.func @transform_11(%arg0: i32) -> (i32, i32, i32) {
    %c0_i32 = arith.constant 0 : i32
    %c0_i32_0 = arith.constant 0 : i32
    %c0_i32_1 = arith.constant 0 : i32
    %c0_i32_2 = arith.constant 0 : i32
    return %c0_i32, %c0_i32_0, %c0_i32_1 : i32, i32, i32
  }
  func.func @transform_12(%arg0: i32) -> (i32, i32, i32) {
    %c0_i32 = arith.constant 0 : i32
    %c0_i32_0 = arith.constant 0 : i32
    %c0_i32_1 = arith.constant 0 : i32
    %c0_i32_2 = arith.constant 0 : i32
    return %c0_i32, %c0_i32_0, %c0_i32_1 : i32, i32, i32
  }
  func.func @transform_13(%arg0: i32) -> (i32, i32, i32) {
    %c0_i32 = arith.constant 0 : i32
    %c0_i32_0 = arith.constant 0 : i32
    %c0_i32_1 = arith.constant 0 : i32
    %c0_i32_2 = arith.constant 0 : i32
    return %c0_i32, %c0_i32_0, %c0_i32_1 : i32, i32, i32
  }
  func.func @transform_14(%arg0: i32) -> (i32, i32) {
    %c0_i32 = arith.constant 0 : i32
    %c0_i32_0 = arith.constant 0 : i32
    %c0_i32_1 = arith.constant 0 : i32
    return %c0_i32, %c0_i32_0 : i32, i32
  }
}

</mosaic_0001>

<llo_original>
// kernel: neg.7
$region0: #{neg.7}
  #allocation0 [shape = 's32[1]{0}', space=sflag, size = 0x4, scoped, tag = 'scoped memory for neg.7']
  %s0 = inlined_call_operand.vmem [shape: f32[4], index: 0, kind: input, shape index: {}]
  %s1 = inlined_call_operand.vmem [shape: f32[4], index: 1, kind: output, shape index: {}]
  %v2 = vld [vmem:[%s0] sm:$0x1]
  %3 = xla_tuple %v2
  %4 = xla_tuple %3
  %v5 = vxor.u32 %v2, 2147483648
  %6 = xla_tuple %v5
  %7 = vst [vmem:[%s1] sm:$0x1] %v5

// kernel: bert_encoder_forward.1
$region0: #{bert_encoder_forward.1}
  #allocation0 [shape = 'u32[]', space=smem, size = 0x4, offset = 0x4, fixed_abs, tag = 'smem constant byte address 0x4 - core index']
  #allocation1 [shape = 'u32[144,128]{1,0:T(1,128)}', space=vmem, size = 0x12000, scoped, tag = 'internal scratch']
  %s0 = inlined_call_operand.vmem [shape: f32[16,32], index: 0, kind: input, shape index: {}]
  %s1 = inlined_call_operand.vmem [shape: bf16[2,32,97], index: 1, kind: input, shape index: {}]
  %s2 = inlined_call_operand.vmem [shape: f32[2,1,96], index: 2, kind: input, shape index: {}]
  %s3 = inlined_call_operand.vmem [shape: f32[2,1,1], index: 3, kind: input, shape index: {}]
  %s4 = inlined_call_operand.vmem [shape: bf16[2,64,32], index: 4, kind: input, shape index: {}]
  %s5 = inlined_call_operand.vmem [shape: f32[2,1,32], index: 5, kind: input, shape index: {}]
  %s6 = inlined_call_operand.vmem [shape: f32[2,1,32], index: 6, kind: input, shape index: {}]
  %s7 = inlined_call_operand.vmem [shape: f32[2,1,32], index: 7, kind: input, shape index: {}]
  %s8 = inlined_call_operand.vmem [shape: bf16[2,32,64], index: 8, kind: input, shape index: {}]
  %s9 = inlined_call_operand.vmem [shape: f32[2,1,64], index: 9, kind: input, shape index: {}]
  %s10 = inlined_call_operand.vmem [shape: bf16[2,64,32], index: 10, kind: input, shape index: {}]
  %s11 = inlined_call_operand.vmem [shape: f32[2,1,32], index: 11, kind: input, shape index: {}]
  %s12 = inlined_call_operand.vmem [shape: f32[2,1,32], index: 12, kind: input, shape index: {}]
  %s13 = inlined_call_operand.vmem [shape: f32[2,1,32], index: 13, kind: input, shape index: {}]
  %s14 = inlined_call_operand.hbm [shape: f32[16,32], index: 14, kind: output, shape index: {}]
  %s15 = sld [smem:[#allocation0]]
  $region66: #{bert_encoder_forward.1} parent=0
    _
  %s17 = ssub.s32 1, %s15
  %s18 = scalar_select 0, %s17, %s15
  $region1: #{bert_encoder_forward.1} parent=0
    #allocation2 [shape = 'u8[8192]{0}', space=vmem, size = 0x2000, scoped, tag = 'output window, operand 0, single buffered']
    #allocation3 [shape = 's32[1]{0}', space=sflag, size = 0x4, scoped, tag = 'scoped memory for bert_encoder_forward.1']
    %19 = vsyncpa [#allocation3], 0
    // Predicated region
    $region2: #{bert_encoder_forward.1} parent=1 // pred_check
      _
    $region3: #{bert_encoder_forward.1} parent=1 // pred_check_branch
      %21 = sbr.rel (0) target = $region5
    $region4: #{bert_encoder_forward.1} parent=1 // pred_region
      _
    $region5: #{bert_encoder_forward.1} parent=1 // pred_fallthru
      _
    // Predicated region
    $region6: #{bert_encoder_forward.1} parent=1 // pred_check
      _
    $region7: #{bert_encoder_forward.1} parent=1 // pred_check_branch
      %23 = sbr.rel (0) target = $region9
    $region8: #{bert_encoder_forward.1} parent=1 // pred_region
      _
    $region9: #{bert_encoder_forward.1} parent=1 // pred_fallthru
      _
    // Predicated region
    $region10: #{bert_encoder_forward.1} parent=1 // pred_check
      _
    $region11: #{bert_encoder_forward.1} parent=1 // pred_check_branch
      %25 = sbr.rel (0) target = $region13
    $region12: #{bert_encoder_forward.1} parent=1 // pred_region
      _
    $region13: #{bert_encoder_forward.1} parent=1 // pred_fallthru
      _
    // Predicated region
    $region14: #{bert_encoder_forward.1} parent=1 // pred_check
      _
    $region15: #{bert_encoder_forward.1} parent=1 // pred_check_branch
      %27 = sbr.rel (0) target = $region17
    $region16: #{bert_encoder_forward.1} parent=1 // pred_region
      _
    $region17: #{bert_encoder_forward.1} parent=1 // pred_fallthru
      _
    // Predicated region
    $region18: #{bert_encoder_forward.1} parent=1 // pred_check
      _
    $region19: #{bert_encoder_forward.1} parent=1 // pred_check_branch
      %29 = sbr.rel (0) target = $region21
    $region20: #{bert_encoder_forward.1} parent=1 // pred_region
      _
    $region21: #{bert_encoder_forward.1} parent=1 // pred_fallthru
      _
    // Predicated region
    $region22: #{bert_encoder_forward.1} parent=1 // pred_check
      _
    $region23: #{bert_encoder_forward.1} parent=1 // pred_check_branch
      %31 = sbr.rel (0) target = $region25
    $region24: #{bert_encoder_forward.1} parent=1 // pred_region
      _
    $region25: #{bert_encoder_forward.1} parent=1 // pred_fallthru
      _
    // Predicated region
    $region26: #{bert_encoder_forward.1} parent=1 // pred_check
      _
    $region27: #{bert_encoder_forward.1} parent=1 // pred_check_branch
      %33 = sbr.rel (0) target = $region29
    $region28: #{bert_encoder_forward.1} parent=1 // pred_region
      _
    $region29: #{bert_encoder_forward.1} parent=1 // pred_fallthru
      _
    // Predicated region
    $region30: #{bert_encoder_forward.1} parent=1 // pred_check
      _
    $region31: #{bert_encoder_forward.1} parent=1 // pred_check_branch
      %35 = sbr.rel (0) target = $region33
    $region32: #{bert_encoder_forward.1} parent=1 // pred_region
      _
    $region33: #{bert_encoder_forward.1} parent=1 // pred_fallthru
      _
    // Predicated region
    $region34: #{bert_encoder_forward.1} parent=1 // pred_check
      _
    $region35: #{bert_encoder_forward.1} parent=1 // pred_check_branch
      %37 = sbr.rel (0) target = $region37
    $region36: #{bert_encoder_forward.1} parent=1 // pred_region
      _
    $region37: #{bert_encoder_forward.1} parent=1 // pred_fallthru
      _
    // Predicated region
    $region38: #{bert_encoder_forward.1} parent=1 // pred_check
      _
    $region39: #{bert_encoder_forward.1} parent=1 // pred_check_branch
      %39 = sbr.rel (0) target = $region41
    $region40: #{bert_encoder_forward.1} parent=1 // pred_region
      _
    $region41: #{bert_encoder_forward.1} parent=1 // pred_fallthru
      _
    // Predicated region
    $region42: #{bert_encoder_forward.1} parent=1 // pred_check
      _
    $region43: #{bert_encoder_forward.1} parent=1 // pred_check_branch
      %41 = sbr.rel (0) target = $region45
    $region44: #{bert_encoder_forward.1} parent=1 // pred_region
      _
    $region45: #{bert_encoder_forward.1} parent=1 // pred_fallthru
      _
    // Predicated region
    $region46: #{bert_encoder_forward.1} parent=1 // pred_check
      _
    $region47: #{bert_encoder_forward.1} parent=1 // pred_check_branch
      %43 = sbr.rel (0) target = $region49
    $region48: #{bert_encoder_forward.1} parent=1 // pred_region
      _
    $region49: #{bert_encoder_forward.1} parent=1 // pred_fallthru
      _
    // Predicated region
    $region50: #{bert_encoder_forward.1} parent=1 // pred_check
      _
    $region51: #{bert_encoder_forward.1} parent=1 // pred_check_branch
      %45 = sbr.rel (0) target = $region53
    $region52: #{bert_encoder_forward.1} parent=1 // pred_region
      _
    $region53: #{bert_encoder_forward.1} parent=1 // pred_fallthru
      _
    // Predicated region
    $region54: #{bert_encoder_forward.1} parent=1 // pred_check
      _
    $region55: #{bert_encoder_forward.1} parent=1 // pred_check_branch
      %47 = sbr.rel (0) target = $region57
    $region56: #{bert_encoder_forward.1} parent=1 // pred_region
      _
    $region57: #{bert_encoder_forward.1} parent=1 // pred_fallthru
      _
    %v49 = vlaneseq
    %v50 = vshrl.u32 %v49, 7
    %v51 = vadd.s32 %v50, 8
    %v52 = vlaneseq
    %v53 = vand.u32 %v52, 127
    %v54 = vshra.s32 %v50, 3
    %v55 = vshra.s32 %v51, 3
    %v56 = vshra.s32 %v53, 3
    %vm57 = vcmp.eq.s32.totalorder %v54, %v56
    %vm58 = vcmp.eq.s32.totalorder %v55, %v56
    %v59 = vsel %vm57, 0.0, -1e+30
    %v60 = vsel %vm58, 0.0, -1e+30
    %v61 = vld [vmem:[%s0] sm:$0xff]
    %v62 = vld [vmem:[%s0 + $0x8] sm:$0xff]
    %v63 = vpack.c.bf16 %v62, %v61
    %v64 = vld [vmem:[%s1] sm:$0xf]
    %v65 = vld [vmem:[%s1 + $0x4] sm:$0xf]
    %v66 = vld [vmem:[%s1 + $0x8] sm:$0xf]
    %v67 = vld [vmem:[%s1 + $0xc] sm:$0xf]
    %v72 = vunpack.c.l.b16 %v64
    %v73 = vunpack.c.l.b16 %v65
    %v74 = vunpack.c.l.b16 %v66
    %v75 = vunpack.c.l.b16 %v67
    %v76 = vpack.c.b16 %v73, %v72
    %v77 = vpack.c.b16 %v75, %v74
    %vm80 = vcmask 261120
    %v82 = vsel %vm80, %v63, 0
    %84 = vmatprep.subr.bf16.mxu0 0
    %85 = vmatpush1.bf16.msra.mxu0 %v76
    %86 = vmatprep.subr.bf16.mxu0 0
    %87 = vmatpush1.bf16.msra.mxu0 %v77
    %88 = vmatprep.subr.bf16.mxu0 0
    %89 = vmatpush1.bf16.msra.mxu0 0
    %90 = vmatprep.subr.bf16.mxu0 0
    %91 = vmatpush1.bf16.msra.mxu0 0
    %92 = vmatprep.subr.bf16.mxu0 0
    %93 = vmatpush1.bf16.msra.mxu0 0
    %94 = vmatprep.subr.bf16.mxu0 0
    %95 = vmatpush1.bf16.msra.mxu0 0
    %96 = vmatprep.subr.bf16.mxu0 0
    %97 = vmatpush1.bf16.msra.mxu0 0
    %98 = vmatprep.subr.bf16.mxu0 0
    %99 = vmatpush1.bf16.msra.mxu0 0
    %100 = vmatprep.subr.bf16.mxu0 0
    %101 = vmatpush1.bf16.msra.mxu0 0
    %102 = vmatprep.subr.bf16.mxu0 0
    %103 = vmatpush1.bf16.msra.mxu0 0
    %104 = vmatprep.subr.bf16.mxu0 0
    %105 = vmatpush1.bf16.msra.mxu0 0
    %106 = vmatprep.subr.bf16.mxu0 0
    %107 = vmatpush1.bf16.msra.mxu0 0
    %108 = vmatprep.subr.bf16.mxu0 0
    %109 = vmatpush1.bf16.msra.mxu0 0
    %110 = vmatprep.subr.bf16.mxu0 0
    %111 = vmatpush1.bf16.msra.mxu0 0
    %112 = vmatprep.subr.bf16.mxu0 0
    %113 = vmatpush1.bf16.msra.mxu0 0
    %114 = vmatprep.subr.bf16.mxu0 0
    %115 = vmatpush1.bf16.msra.mxu0 0
    %116 = vmatprep.mubr.bf16.mxu0 0
    %117 = vmatmul.mubr.bf16.gmra.mrb[0].mxu0 %v82
    %v118 = vpop.f32.mrb[0].mxu0
    %v119 = vadd.f32 0.0, %v118
    %v120 = vpop.f32.mrb[0].mxu0
    %v121 = vpop.f32.mrb[0].mxu0
    %v122 = vadd.f32 0.0, %v121
    %v123 = vpop.f32.mrb[0].mxu0
    %124 = vdwg.mxu0
    %v125 = vld [vmem:[%s3] sm:$0x1]
    %v127 = vlaneseq
    %v128 = vshrl.u32 %v127, 7
    %v129 = vsub.s32 0, %v128
    %v130 = vrot.slane %v125, %v129
    %131 = vrot.lane.b32.xlu0 %v130, 96
    %v132 = vpop.permute.xlu0 %131
    %v134 = vadd.f32 %v119, %v132
    %v135 = vadd.f32 %v122, %v132
    %vm136 = vcmp.le.f32.partialorder %v134, 0.0
    %vm137 = vcmp.le.f32.partialorder %v135, 0.0
    %v138 = vsel %vm136, 1, 0
    %v139 = vsel %vm137, 1, 0
    %v140 = vcvt.s32.f32 %v138
    %v141 = vcvt.s32.f32 %v139
    %143 = vset.pattern.permute.xlu0 96
    %144 = vperm.xlu0 %143, %v140
    %v145 = vpop.permute.xlu0 %144
    %148 = vset.pattern.permute.xlu0 96
    %149 = vperm.xlu0 %148, %v141
    %v150 = vpop.permute.xlu0 %149
    %v152 = vmul.f32 %v145, %v119
    %v153 = vmul.f32 %v150, %v122
    %v154 = vsub.f32 %v119, %v152
    %v155 = vsub.f32 %v122, %v153
    %v156 = vld [vmem:[%s2] sm:$0x1]
    %v158 = vlaneseq
    %v159 = vshrl.u32 %v158, 7
    %v160 = vsub.s32 0, %v159
    %v161 = vrot.slane %v156, %v160
    %v163 = vadd.f32 %v152, %v161
    %v164 = vadd.f32 %v153, %v161
    %v165 = vpack.c.bf16 %v164, %v163
    %v166 = vadd.f32 %v154, %v161
    %v167 = vadd.f32 %v155, %v161
    %v168 = vpack.c.bf16 %v167, %v166
    %v169 = vmul.f32 %v156, 2.0
    %v171 = vlaneseq
    %v172 = vshrl.u32 %v171, 7
    %v173 = vsub.s32 0, %v172
    %v174 = vrot.slane %v169, %v173
    %v176 = vadd.f32 %v119, %v174
    %v177 = vadd.f32 %v122, %v174
    %v178 = vpack.c.bf16 %v177, %v176
    %180 = vrot.lane.b32.xlu0 %v165, 96
    %v181 = vpop.permute.xlu0 %180
    %vm182 = vcmask 64512
    %v184 = vsel %vm182, %v165, 0
    %v187 = vsel %vm182, %v181, 0
    %189 = vmatprep.subr.bf16.mxu0 0
    %190 = vmatpush1.bf16.xpose.msra.mxu0 %v187
    %191 = vmatprep.subr.bf16.mxu0 0
    %192 = vmatpush1.bf16.xpose.msra.mxu0 0
    %193 = vmatprep.subr.bf16.mxu0 0
    %194 = vmatpush1.bf16.xpose.msra.mxu0 0
    %195 = vmatprep.subr.bf16.mxu0 0
    %196 = vmatpush1.bf16.xpose.msra.mxu0 0
    %197 = vmatprep.subr.bf16.mxu0 0
    %198 = vmatpush1.bf16.xpose.msra.mxu0 0
    %199 = vmatprep.subr.bf16.mxu0 0
    %200 = vmatpush1.bf16.xpose.msra.mxu0 0
    %201 = vmatprep.subr.bf16.mxu0 0
    %202 = vmatpush1.bf16.xpose.msra.mxu0 0
    %203 = vmatprep.subr.bf16.mxu0 0
    %204 = vmatpush1.bf16.xpose.msra.mxu0 0
    %205 = vmatprep.subr.bf16.mxu0 0
    %206 = vmatpush1.bf16.xpose.msra.mxu0 0
    %207 = vmatprep.subr.bf16.mxu0 0
    %208 = vmatpush1.bf16.xpose.msra.mxu0 0
    %209 = vmatprep.subr.bf16.mxu0 0
    %210 = vmatpush1.bf16.xpose.msra.mxu0 0
    %211 = vmatprep.subr.bf16.mxu0 0
    %212 = vmatpush1.bf16.xpose.msra.mxu0 0
    %213 = vmatprep.subr.bf16.mxu0 0
    %214 = vmatpush1.bf16.xpose.msra.mxu0 0
    %215 = vmatprep.subr.bf16.mxu0 0
    %216 = vmatpush1.bf16.xpose.msra.mxu0 0
    %217 = vmatprep.subr.bf16.mxu0 0
    %218 = vmatpush1.bf16.xpose.msra.mxu0 0
    %219 = vmatprep.subr.bf16.mxu0 0
    %220 = vmatpush1.bf16.xpose.msra.mxu0 0
    %221 = vmatprep.mubr.bf16.mxu0 0
    %222 = vmatmul.mubr.bf16.gmra.mrb[0].mxu0 %v184
    %v223 = vpop.f32.mrb[0].mxu0
    %v224 = vadd.f32 0.0, %v223
    %v225 = vpop.f32.mrb[0].mxu0
    %v226 = vpop.f32.mrb[0].mxu0
    %v227 = vadd.f32 0.0, %v226
    %v228 = vpop.f32.mrb[0].mxu0
    %229 = vdwg.mxu0
    %v230 = vmul.f32 %v224, 0.35355338
    %v231 = vmul.f32 %v227, 0.35355338
    %v232 = vadd.f32 %v230, %v59
    %v233 = vadd.f32 %v231, %v60
    %vm234 = vcmask 130048
    %v235 = vsel %vm234, %v232, -inf
    %236 = vmax.xlane.f32.xlu0 %v235
    %v237 = vpop.xlane.xlu0 %236
    %v238 = vsel %vm234, %v233, -inf
    %239 = vmax.xlane.f32.xlu0 %v238
    %v240 = vpop.xlane.xlu0 %239
    %v241 = vsub.f32 %v232, %v237
    %v242 = vsub.f32 %v233, %v240
    %v243 = vmul.f32 %v241, 1.442695
    %v244 = vpow.pop %v243
    %v245 = vmul.f32 %v242, 1.442695
    %v246 = vpow.pop %v245
    %v247 = vsel %vm234, %v244, 0.0
    %248 = vadd.xlane.f32.xlu0 %v247
    %v249 = vpop.xlane.xlu0 %248
    %v250 = vsel %vm234, %v246, 0.0
    %251 = vadd.xlane.f32.xlu0 %v250
    %v252 = vpop.xlane.xlu0 %251
    %v253 = vrcp.pop %v249
    %v254 = vrcp.pop %v252
    %v255 = vmul.f32 %v244, %v253
    %v256 = vmul.f32 %v246, %v254
    %v257 = vpack.c.bf16 %v256, %v255
    %259 = vrot.lane.b32.xlu0 %v178, 64
    %v260 = vpop.permute.xlu0 %259
    %v263 = vsel %vm234, %v257, 0
    %265 = vmatprep.subr.bf16.mxu0 0
    %266 = vmatpush1.bf16.msra.mxu0 %v260
    %267 = vmatprep.subr.bf16.mxu0 0
    %268 = vmatpush1.bf16.msra.mxu0 0
    %269 = vmatprep.subr.bf16.mxu0 0
    %270 = vmatpush1.bf16.msra.mxu0 0
    %271 = vmatprep.subr.bf16.mxu0 0
    %272 = vmatpush1.bf16.msra.mxu0 0
    %273 = vmatprep.subr.bf16.mxu0 0
    %274 = vmatpush1.bf16.msra.mxu0 0
    %275 = vmatprep.subr.bf16.mxu0 0
    %276 = vmatpush1.bf16.msra.mxu0 0
    %277 = vmatprep.subr.bf16.mxu0 0
    %278 = vmatpush1.bf16.msra.mxu0 0
    %279 = vmatprep.subr.bf16.mxu0 0
    %280 = vmatpush1.bf16.msra.mxu0 0
    %281 = vmatprep.subr.bf16.mxu0 0
    %282 = vmatpush1.bf16.msra.mxu0 0
    %283 = vmatprep.subr.bf16.mxu0 0
    %284 = vmatpush1.bf16.msra.mxu0 0
    %285 = vmatprep.subr.bf16.mxu0 0
    %286 = vmatpush1.bf16.msra.mxu0 0
    %287 = vmatprep.subr.bf16.mxu0 0
    %288 = vmatpush1.bf16.msra.mxu0 0
    %289 = vmatprep.subr.bf16.mxu0 0
    %290 = vmatpush1.bf16.msra.mxu0 0
    %291 = vmatprep.subr.bf16.mxu0 0
    %292 = vmatpush1.bf16.msra.mxu0 0
    %293 = vmatprep.subr.bf16.mxu0 0
    %294 = vmatpush1.bf16.msra.mxu0 0
    %295 = vmatprep.subr.bf16.mxu0 0
    %296 = vmatpush1.bf16.msra.mxu0 0
    %297 = vmatprep.mubr.bf16.mxu0 0
    %298 = vmatmul.mubr.bf16.gmra.mrb[0].mxu0 %v263
    %v299 = vpop.f32.mrb[0].mxu0
    %v300 = vadd.f32 0.0, %v299
    %v301 = vpop.f32.mrb[0].mxu0
    %v302 = vpop.f32.mrb[0].mxu0
    %v303 = vadd.f32 0.0, %v302
    %v304 = vpop.f32.mrb[0].mxu0
    %305 = vdwg.mxu0
    %306 = vrot.lane.b32.xlu0 %v165, 120
    %v307 = vpop.permute.xlu0 %306
    %308 = vrot.lane.b32.xlu0 %v165, 88
    %v309 = vpop.permute.xlu0 %308
    %v311 = vsel %vm182, %v307, 0
    %v314 = vsel %vm182, %v309, 0
    %316 = vmatprep.subr.bf16.mxu0 0
    %317 = vmatpush1.bf16.xpose.msra.mxu0 %v314
    %318 = vmatprep.subr.bf16.mxu0 0
    %319 = vmatpush1.bf16.xpose.msra.mxu0 0
    %320 = vmatprep.subr.bf16.mxu0 0
    %321 = vmatpush1.bf16.xpose.msra.mxu0 0
    %322 = vmatprep.subr.bf16.mxu0 0
    %323 = vmatpush1.bf16.xpose.msra.mxu0 0
    %324 = vmatprep.subr.bf16.mxu0 0
    %325 = vmatpush1.bf16.xpose.msra.mxu0 0
    %326 = vmatprep.subr.bf16.mxu0 0
    %327 = vmatpush1.bf16.xpose.msra.mxu0 0
    %328 = vmatprep.subr.bf16.mxu0 0
    %329 = vmatpush1.bf16.xpose.msra.mxu0 0
    %330 = vmatprep.subr.bf16.mxu0 0
    %331 = vmatpush1.bf16.xpose.msra.mxu0 0
    %332 = vmatprep.subr.bf16.mxu0 0
    %333 = vmatpush1.bf16.xpose.msra.mxu0 0
    %334 = vmatprep.subr.bf16.mxu0 0
    %335 = vmatpush1.bf16.xpose.msra.mxu0 0
    %336 = vmatprep.subr.bf16.mxu0 0
    %337 = vmatpush1.bf16.xpose.msra.mxu0 0
    %338 = vmatprep.subr.bf16.mxu0 0
    %339 = vmatpush1.bf16.xpose.msra.mxu0 0
    %340 = vmatprep.subr.bf16.mxu0 0
    %341 = vmatpush1.bf16.xpose.msra.mxu0 0
    %342 = vmatprep.subr.bf16.mxu0 0
    %343 = vmatpush1.bf16.xpose.msra.mxu0 0
    %344 = vmatprep.subr.bf16.mxu0 0
    %345 = vmatpush1.bf16.xpose.msra.mxu0 0
    %346 = vmatprep.subr.bf16.mxu0 0
    %347 = vmatpush1.bf16.xpose.msra.mxu0 0
    %348 = vmatprep.mubr.bf16.mxu0 0
    %349 = vmatmul.mubr.bf16.gmra.mrb[0].mxu0 %v311
    %v350 = vpop.f32.mrb[0].mxu0
    %v351 = vadd.f32 0.0, %v350
    %v352 = vpop.f32.mrb[0].mxu0
    %v353 = vpop.f32.mrb[0].mxu0
    %v354 = vadd.f32 0.0, %v353
    %v355 = vpop.f32.mrb[0].mxu0
    %356 = vdwg.mxu0
    %v357 = vmul.f32 %v351, 0.35355338
    %v358 = vmul.f32 %v354, 0.35355338
    %v359 = vadd.f32 %v357, %v59
    %v360 = vadd.f32 %v358, %v60
    %v361 = vsel %vm234, %v359, -inf
    %362 = vmax.xlane.f32.xlu0 %v361
    %v363 = vpop.xlane.xlu0 %362
    %v364 = vsel %vm234, %v360, -inf
    %365 = vmax.xlane.f32.xlu0 %v364
    %v366 = vpop.xlane.xlu0 %365
    %v367 = vsub.f32 %v359, %v363
    %v368 = vsub.f32 %v360, %v366
    %v369 = vmul.f32 %v367, 1.442695
    %v370 = vpow.pop %v369
    %v371 = vmul.f32 %v368, 1.442695
    %v372 = vpow.pop %v371
    %v373 = vsel %vm234, %v370, 0.0
    %374 = vadd.xlane.f32.xlu0 %v373
    %v375 = vpop.xlane.xlu0 %374
    %v376 = vsel %vm234, %v372, 0.0
    %377 = vadd.xlane.f32.xlu0 %v376
    %v378 = vpop.xlane.xlu0 %377
    %v379 = vrcp.pop %v375
    %v380 = vrcp.pop %v378
    %v381 = vmul.f32 %v370, %v379
    %v382 = vmul.f32 %v372, %v380
    %v383 = vpack.c.bf16 %v382, %v381
    %384 = vrot.lane.b32.xlu0 %v178, 56
    %v385 = vpop.permute.xlu0 %384
    %v388 = vsel %vm234, %v383, 0
    %390 = vmatprep.subr.bf16.mxu0 0
    %391 = vmatpush1.bf16.msra.mxu0 %v385
    %392 = vmatprep.subr.bf16.mxu0 0
    %393 = vmatpush1.bf16.msra.mxu0 0
    %394 = vmatprep.subr.bf16.mxu0 0
    %395 = vmatpush1.bf16.msra.mxu0 0
    %396 = vmatprep.subr.bf16.mxu0 0
    %397 = vmatpush1.bf16.msra.mxu0 0
    %398 = vmatprep.subr.bf16.mxu0 0
    %399 = vmatpush1.bf16.msra.mxu0 0
    %400 = vmatprep.subr.bf16.mxu0 0
    %401 = vmatpush1.bf16.msra.mxu0 0
    %402 = vmatprep.subr.bf16.mxu0 0
    %403 = vmatpush1.bf16.msra.mxu0 0
    %404 = vmatprep.subr.bf16.mxu0 0
    %405 = vmatpush1.bf16.msra.mxu0 0
    %406 = vmatprep.subr.bf16.mxu0 0
    %407 = vmatpush1.bf16.msra.mxu0 0
    %408 = vmatprep.subr.bf16.mxu0 0
    %409 = vmatpush1.bf16.msra.mxu0 0
    %410 = vmatprep.subr.bf16.mxu0 0
    %411 = vmatpush1.bf16.msra.mxu0 0
    %412 = vmatprep.subr.bf16.mxu0 0
    %413 = vmatpush1.bf16.msra.mxu0 0
    %414 = vmatprep.subr.bf16.mxu0 0
    %415 = vmatpush1.bf16.msra.mxu0 0
    %416 = vmatprep.subr.bf16.mxu0 0
    %417 = vmatpush1.bf16.msra.mxu0 0
    %418 = vmatprep.subr.bf16.mxu0 0
    %419 = vmatpush1.bf16.msra.mxu0 0
    %420 = vmatprep.subr.bf16.mxu0 0
    %421 = vmatpush1.bf16.msra.mxu0 0
    %422 = vmatprep.mubr.bf16.mxu0 0
    %423 = vmatmul.mubr.bf16.gmra.mrb[0].mxu0 %v388
    %v424 = vpop.f32.mrb[0].mxu0
    %v425 = vadd.f32 0.0, %v424
    %v426 = vpop.f32.mrb[0].mxu0
    %v427 = vpop.f32.mrb[0].mxu0
    %v428 = vadd.f32 0.0, %v427
    %v429 = vpop.f32.mrb[0].mxu0
    %430 = vdwg.mxu0
    %431 = vrot.lane.b32.xlu0 %v165, 112
    %v432 = vpop.permute.xlu0 %431
    %433 = vrot.lane.b32.xlu0 %v165, 80
    %v434 = vpop.permute.xlu0 %433
    %v436 = vsel %vm182, %v432, 0
    %v439 = vsel %vm182, %v434, 0
    %441 = vmatprep.subr.bf16.mxu0 0
    %442 = vmatpush1.bf16.xpose.msra.mxu0 %v439
    %443 = vmatprep.subr.bf16.mxu0 0
    %444 = vmatpush1.bf16.xpose.msra.mxu0 0
    %445 = vmatprep.subr.bf16.mxu0 0
    %446 = vmatpush1.bf16.xpose.msra.mxu0 0
    %447 = vmatprep.subr.bf16.mxu0 0
    %448 = vmatpush1.bf16.xpose.msra.mxu0 0
    %449 = vmatprep.subr.bf16.mxu0 0
    %450 = vmatpush1.bf16.xpose.msra.mxu0 0
    %451 = vmatprep.subr.bf16.mxu0 0
    %452 = vmatpush1.bf16.xpose.msra.mxu0 0
    %453 = vmatprep.subr.bf16.mxu0 0
    %454 = vmatpush1.bf16.xpose.msra.mxu0 0
    %455 = vmatprep.subr.bf16.mxu0 0
    %456 = vmatpush1.bf16.xpose.msra.mxu0 0
    %457 = vmatprep.subr.bf16.mxu0 0
    %458 = vmatpush1.bf16.xpose.msra.mxu0 0
    %459 = vmatprep.subr.bf16.mxu0 0
    %460 = vmatpush1.bf16.xpose.msra.mxu0 0
    %461 = vmatprep.subr.bf16.mxu0 0
    %462 = vmatpush1.bf16.xpose.msra.mxu0 0
    %463 = vmatprep.subr.bf16.mxu0 0
    %464 = vmatpush1.bf16.xpose.msra.mxu0 0
    %465 = vmatprep.subr.bf16.mxu0 0
    %466 = vmatpush1.bf16.xpose.msra.mxu0 0
    %467 = vmatprep.subr.bf16.mxu0 0
    %468 = vmatpush1.bf16.xpose.msra.mxu0 0
    %469 = vmatprep.subr.bf16.mxu0 0
    %470 = vmatpush1.bf16.xpose.msra.mxu0 0
    %471 = vmatprep.subr.bf16.mxu0 0
    %472 = vmatpush1.bf16.xpose.msra.mxu0 0
    %473 = vmatprep.mubr.bf16.mxu0 0
    %474 = vmatmul.mubr.bf16.gmra.mrb[0].mxu0 %v436
    %v475 = vpop.f32.mrb[0].mxu0
    %v476 = vadd.f32 0.0, %v475
    %v477 = vpop.f32.mrb[0].mxu0
    %v478 = vpop.f32.mrb[0].mxu0
    %v479 = vadd.f32 0.0, %v478
    %v480 = vpop.f32.mrb[0].mxu0
    %481 = vdwg.mxu0
    %v482 = vmul.f32 %v476, 0.35355338
    %v483 = vmul.f32 %v479, 0.35355338
    %v484 = vadd.f32 %v482, %v59
    %v485 = vadd.f32 %v483, %v60
    %v486 = vsel %vm234, %v484, -inf
    %487 = vmax.xlane.f32.xlu0 %v486
    %v488 = vpop.xlane.xlu0 %487
    %v489 = vsel %vm234, %v485, -inf
    %490 = vmax.xlane.f32.xlu0 %v489
    %v491 = vpop.xlane.xlu0 %490
    %v492 = vsub.f32 %v484, %v488
    %v493 = vsub.f32 %v485, %v491
    %v494 = vmul.f32 %v492, 1.442695
    %v495 = vpow.pop %v494
    %v496 = vmul.f32 %v493, 1.442695
    %v497 = vpow.pop %v496
    %v498 = vsel %vm234, %v495, 0.0
    %499 = vadd.xlane.f32.xlu0 %v498
    %v500 = vpop.xlane.xlu0 %499
    %v501 = vsel %vm234, %v497, 0.0
    %502 = vadd.xlane.f32.xlu0 %v501
    %v503 = vpop.xlane.xlu0 %502
    %v504 = vrcp.pop %v500
    %v505 = vrcp.pop %v503
    %v506 = vmul.f32 %v495, %v504
    %v507 = vmul.f32 %v497, %v505
    %v508 = vpack.c.bf16 %v507, %v506
    %509 = vrot.lane.b32.xlu0 %v178, 48
    %v510 = vpop.permute.xlu0 %509
    %v513 = vsel %vm234, %v508, 0
    %515 = vmatprep.subr.bf16.mxu0 0
    %516 = vmatpush1.bf16.msra.mxu0 %v510
    %517 = vmatprep.subr.bf16.mxu0 0
    %518 = vmatpush1.bf16.msra.mxu0 0
    %519 = vmatprep.subr.bf16.mxu0 0
    %520 = vmatpush1.bf16.msra.mxu0 0
    %521 = vmatprep.subr.bf16.mxu0 0
    %522 = vmatpush1.bf16.msra.mxu0 0
    %523 = vmatprep.subr.bf16.mxu0 0
    %524 = vmatpush1.bf16.msra.mxu0 0
    %525 = vmatprep.subr.bf16.mxu0 0
    %526 = vmatpush1.bf16.msra.mxu0 0
    %527 = vmatprep.subr.bf16.mxu0 0
    %528 = vmatpush1.bf16.msra.mxu0 0
    %529 = vmatprep.subr.bf16.mxu0 0
    %530 = vmatpush1.bf16.msra.mxu0 0
    %531 = vmatprep.subr.bf16.mxu0 0
    %532 = vmatpush1.bf16.msra.mxu0 0
    %533 = vmatprep.subr.bf16.mxu0 0
    %534 = vmatpush1.bf16.msra.mxu0 0
    %535 = vmatprep.subr.bf16.mxu0 0
    %536 = vmatpush1.bf16.msra.mxu0 0
    %537 = vmatprep.subr.bf16.mxu0 0
    %538 = vmatpush1.bf16.msra.mxu0 0
    %539 = vmatprep.subr.bf16.mxu0 0
    %540 = vmatpush1.bf16.msra.mxu0 0
    %541 = vmatprep.subr.bf16.mxu0 0
    %542 = vmatpush1.bf16.msra.mxu0 0
    %543 = vmatprep.subr.bf16.mxu0 0
    %544 = vmatpush1.bf16.msra.mxu0 0
    %545 = vmatprep.subr.bf16.mxu0 0
    %546 = vmatpush1.bf16.msra.mxu0 0
    %547 = vmatprep.mubr.bf16.mxu0 0
    %548 = vmatmul.mubr.bf16.gmra.mrb[0].mxu0 %v513
    %v549 = vpop.f32.mrb[0].mxu0
    %v550 = vadd.f32 0.0, %v549
    %v551 = vpop.f32.mrb[0].mxu0
    %v552 = vpop.f32.mrb[0].mxu0
    %v553 = vadd.f32 0.0, %v552
    %v554 = vpop.f32.mrb[0].mxu0
    %555 = vdwg.mxu0
    %556 = vrot.lane.b32.xlu0 %v165, 104
    %v557 = vpop.permute.xlu0 %556
    %558 = vrot.lane.b32.xlu0 %v165, 72
    %v559 = vpop.permute.xlu0 %558
    %v561 = vsel %vm182, %v557, 0
    %v564 = vsel %vm182, %v559, 0
    %566 = vmatprep.subr.bf16.mxu0 0
    %567 = vmatpush1.bf16.xpose.msra.mxu0 %v564
    %568 = vmatprep.subr.bf16.mxu0 0
    %569 = vmatpush1.bf16.xpose.msra.mxu0 0
    %570 = vmatprep.subr.bf16.mxu0 0
    %571 = vmatpush1.bf16.xpose.msra.mxu0 0
    %572 = vmatprep.subr.bf16.mxu0 0
    %573 = vmatpush1.bf16.xpose.msra.mxu0 0
    %574 = vmatprep.subr.bf16.mxu0 0
    %575 = vmatpush1.bf16.xpose.msra.mxu0 0
    %576 = vmatprep.subr.bf16.mxu0 0
    %577 = vmatpush1.bf16.xpose.msra.mxu0 0
    %578 = vmatprep.subr.bf16.mxu0 0
    %579 = vmatpush1.bf16.xpose.msra.mxu0 0
    %580 = vmatprep.subr.bf16.mxu0 0
    %581 = vmatpush1.bf16.xpose.msra.mxu0 0
    %582 = vmatprep.subr.bf16.mxu0 0
    %583 = vmatpush1.bf16.xpose.msra.mxu0 0
    %584 = vmatprep.subr.bf16.mxu0 0
    %585 = vmatpush1.bf16.xpose.msra.mxu0 0
    %586 = vmatprep.subr.bf16.mxu0 0
    %587 = vmatpush1.bf16.xpose.msra.mxu0 0
    %588 = vmatprep.subr.bf16.mxu0 0
    %589 = vmatpush1.bf16.xpose.msra.mxu0 0
    %590 = vmatprep.subr.bf16.mxu0 0
    %591 = vmatpush1.bf16.xpose.msra.mxu0 0
    %592 = vmatprep.subr.bf16.mxu0 0
    %593 = vmatpush1.bf16.xpose.msra.mxu0 0
    %594 = vmatprep.subr.bf16.mxu0 0
    %595 = vmatpush1.bf16.xpose.msra.mxu0 0
    %596 = vmatprep.subr.bf16.mxu0 0
    %597 = vmatpush1.bf16.xpose.msra.mxu0 0
    %598 = vmatprep.mubr.bf16.mxu0 0
    %599 = vmatmul.mubr.bf16.gmra.mrb[0].mxu0 %v561
    %v600 = vpop.f32.mrb[0].mxu0
    %v601 = vadd.f32 0.0, %v600
    %v602 = vpop.f32.mrb[0].mxu0
    %v603 = vpop.f32.mrb[0].mxu0
    %v604 = vadd.f32 0.0, %v603
    %v605 = vpop.f32.mrb[0].mxu0
    %606 = vdwg.mxu0
    %v607 = vmul.f32 %v601, 0.35355338
    %v608 = vmul.f32 %v604, 0.35355338
    %v609 = vadd.f32 %v607, %v59
    %v610 = vadd.f32 %v608, %v60
    %v611 = vsel %vm234, %v609, -inf
    %612 = vmax.xlane.f32.xlu0 %v611
    %v613 = vpop.xlane.xlu0 %612
    %v614 = vsel %vm234, %v610, -inf
    %615 = vmax.xlane.f32.xlu0 %v614
    %v616 = vpop.xlane.xlu0 %615
    %v617 = vsub.f32 %v609, %v613
    %v618 = vsub.f32 %v610, %v616
    %v619 = vmul.f32 %v617, 1.442695
    %v620 = vpow.pop %v619
    %v621 = vmul.f32 %v618, 1.442695
    %v622 = vpow.pop %v621
    %v623 = vsel %vm234, %v620, 0.0
    %624 = vadd.xlane.f32.xlu0 %v623
    %v625 = vpop.xlane.xlu0 %624
    %v626 = vsel %vm234, %v622, 0.0
    %627 = vadd.xlane.f32.xlu0 %v626
    %v628 = vpop.xlane.xlu0 %627
    %v629 = vrcp.pop %v625
    %v630 = vrcp.pop %v628
    %v631 = vmul.f32 %v620, %v629
    %v632 = vmul.f32 %v622, %v630
    %v633 = vpack.c.bf16 %v632, %v631
    %634 = vrot.lane.b32.xlu0 %v178, 40
    %v635 = vpop.permute.xlu0 %634
    %v638 = vsel %vm234, %v633, 0
    %640 = vmatprep.subr.bf16.mxu0 0
    %641 = vmatpush1.bf16.msra.mxu0 %v635
    %642 = vmatprep.subr.bf16.mxu0 0
    %643 = vmatpush1.bf16.msra.mxu0 0
    %644 = vmatprep.subr.bf16.mxu0 0
    %645 = vmatpush1.bf16.msra.mxu0 0
    %646 = vmatprep.subr.bf16.mxu0 0
    %647 = vmatpush1.bf16.msra.mxu0 0
    %648 = vmatprep.subr.bf16.mxu0 0
    %649 = vmatpush1.bf16.msra.mxu0 0
    %650 = vmatprep.subr.bf16.mxu0 0
    %651 = vmatpush1.bf16.msra.mxu0 0
    %652 = vmatprep.subr.bf16.mxu0 0
    %653 = vmatpush1.bf16.msra.mxu0 0
    %654 = vmatprep.subr.bf16.mxu0 0
    %655 = vmatpush1.bf16.msra.mxu0 0
    %656 = vmatprep.subr.bf16.mxu0 0
    %657 = vmatpush1.bf16.msra.mxu0 0
    %658 = vmatprep.subr.bf16.mxu0 0
    %659 = vmatpush1.bf16.msra.mxu0 0
    %660 = vmatprep.subr.bf16.mxu0 0
    %661 = vmatpush1.bf16.msra.mxu0 0
    %662 = vmatprep.subr.bf16.mxu0 0
    %663 = vmatpush1.bf16.msra.mxu0 0
    %664 = vmatprep.subr.bf16.mxu0 0
    %665 = vmatpush1.bf16.msra.mxu0 0
    %666 = vmatprep.subr.bf16.mxu0 0
    %667 = vmatpush1.bf16.msra.mxu0 0
    %668 = vmatprep.subr.bf16.mxu0 0
    %669 = vmatpush1.bf16.msra.mxu0 0
    %670 = vmatprep.subr.bf16.mxu0 0
    %671 = vmatpush1.bf16.msra.mxu0 0
    %672 = vmatprep.mubr.bf16.mxu0 0
    %673 = vmatmul.mubr.bf16.gmra.mrb[0].mxu0 %v638
    %v674 = vpop.f32.mrb[0].mxu0
    %v675 = vadd.f32 0.0, %v674
    %v676 = vpop.f32.mrb[0].mxu0
    %v677 = vpop.f32.mrb[0].mxu0
    %v678 = vadd.f32 0.0, %v677
    %v679 = vpop.f32.mrb[0].mxu0
    %680 = vdwg.mxu0
    %682 = vrot.lane.b32.xlu0 %v168, 96
    %v683 = vpop.permute.xlu0 %682
    %v685 = vsel %vm182, %v168, 0
    %v688 = vsel %vm182, %v683, 0
    %690 = vmatprep.subr.bf16.mxu0 0
    %691 = vmatpush1.bf16.xpose.msra.mxu0 %v688
    %692 = vmatprep.subr.bf16.mxu0 0
    %693 = vmatpush1.bf16.xpose.msra.mxu0 0
    %694 = vmatprep.subr.bf16.mxu0 0
    %695 = vmatpush1.bf16.xpose.msra.mxu0 0
    %696 = vmatprep.subr.bf16.mxu0 0
    %697 = vmatpush1.bf16.xpose.msra.mxu0 0
    %698 = vmatprep.subr.bf16.mxu0 0
    %699 = vmatpush1.bf16.xpose.msra.mxu0 0
    %700 = vmatprep.subr.bf16.mxu0 0
    %701 = vmatpush1.bf16.xpose.msra.mxu0 0
    %702 = vmatprep.subr.bf16.mxu0 0
    %703 = vmatpush1.bf16.xpose.msra.mxu0 0
    %704 = vmatprep.subr.bf16.mxu0 0
    %705 = vmatpush1.bf16.xpose.msra.mxu0 0
    %706 = vmatprep.subr.bf16.mxu0 0
    %707 = vmatpush1.bf16.xpose.msra.mxu0 0
    %708 = vmatprep.subr.bf16.mxu0 0
    %709 = vmatpush1.bf16.xpose.msra.mxu0 0
    %710 = vmatprep.subr.bf16.mxu0 0
    %711 = vmatpush1.bf16.xpose.msra.mxu0 0
    %712 = vmatprep.subr.bf16.mxu0 0
    %713 = vmatpush1.bf16.xpose.msra.mxu0 0
    %714 = vmatprep.subr.bf16.mxu0 0
    %715 = vmatpush1.bf16.xpose.msra.mxu0 0
    %716 = vmatprep.subr.bf16.mxu0 0
    %717 = vmatpush1.bf16.xpose.msra.mxu0 0
    %718 = vmatprep.subr.bf16.mxu0 0
    %719 = vmatpush1.bf16.xpose.msra.mxu0 0
    %720 = vmatprep.subr.bf16.mxu0 0
    %721 = vmatpush1.bf16.xpose.msra.mxu0 0
    %722 = vmatprep.mubr.bf16.mxu0 0
    %723 = vmatmul.mubr.bf16.gmra.mrb[0].mxu0 %v685
    %v724 = vpop.f32.mrb[0].mxu0
    %v725 = vadd.f32 0.0, %v724
    %v726 = vpop.f32.mrb[0].mxu0
    %v727 = vpop.f32.mrb[0].mxu0
    %v728 = vadd.f32 0.0, %v727
    %v729 = vpop.f32.mrb[0].mxu0
    %730 = vdwg.mxu0
    %v731 = vmul.f32 %v725, 0.35355338
    %v732 = vmul.f32 %v728, 0.35355338
    %v733 = vadd.f32 %v731, %v59
    %v734 = vadd.f32 %v732, %v60
    %v735 = vsel %vm234, %v733, -inf
    %736 = vmax.xlane.f32.xlu0 %v735
    %v737 = vpop.xlane.xlu0 %736
    %v738 = vsel %vm234, %v734, -inf
    %739 = vmax.xlane.f32.xlu0 %v738
    %v740 = vpop.xlane.xlu0 %739
    %v741 = vsub.f32 %v733, %v737
    %v742 = vsub.f32 %v734, %v740
    %v743 = vmul.f32 %v741, 1.442695
    %v744 = vpow.pop %v743
    %v745 = vmul.f32 %v742, 1.442695
    %v746 = vpow.pop %v745
    %v747 = vsel %vm234, %v744, 0.0
    %748 = vadd.xlane.f32.xlu0 %v747
    %v749 = vpop.xlane.xlu0 %748
    %v750 = vsel %vm234, %v746, 0.0
    %751 = vadd.xlane.f32.xlu0 %v750
    %v752 = vpop.xlane.xlu0 %751
    %v753 = vrcp.pop %v749
    %v754 = vrcp.pop %v752
    %v755 = vmul.f32 %v744, %v753
    %v756 = vmul.f32 %v746, %v754
    %v757 = vpack.c.bf16 %v756, %v755
    %758 = vrot.lane.b32.xlu0 %v168, 64
    %v759 = vpop.permute.xlu0 %758
    %v762 = vsel %vm234, %v757, 0
    %764 = vmatprep.subr.bf16.mxu0 0
    %765 = vmatpush1.bf16.msra.mxu0 %v759
    %766 = vmatprep.subr.bf16.mxu0 0
    %767 = vmatpush1.bf16.msra.mxu0 0
    %768 = vmatprep.subr.bf16.mxu0 0
    %769 = vmatpush1.bf16.msra.mxu0 0
    %770 = vmatprep.subr.bf16.mxu0 0
    %771 = vmatpush1.bf16.msra.mxu0 0
    %772 = vmatprep.subr.bf16.mxu0 0
    %773 = vmatpush1.bf16.msra.mxu0 0
    %774 = vmatprep.subr.bf16.mxu0 0
    %775 = vmatpush1.bf16.msra.mxu0 0
    %776 = vmatprep.subr.bf16.mxu0 0
    %777 = vmatpush1.bf16.msra.mxu0 0
    %778 = vmatprep.subr.bf16.mxu0 0
    %779 = vmatpush1.bf16.msra.mxu0 0
    %780 = vmatprep.subr.bf16.mxu0 0
    %781 = vmatpush1.bf16.msra.mxu0 0
    %782 = vmatprep.subr.bf16.mxu0 0
    %783 = vmatpush1.bf16.msra.mxu0 0
    %784 = vmatprep.subr.bf16.mxu0 0
    %785 = vmatpush1.bf16.msra.mxu0 0
    %786 = vmatprep.subr.bf16.mxu0 0
    %787 = vmatpush1.bf16.msra.mxu0 0
    %788 = vmatprep.subr.bf16.mxu0 0
    %789 = vmatpush1.bf16.msra.mxu0 0
    %790 = vmatprep.subr.bf16.mxu0 0
    %791 = vmatpush1.bf16.msra.mxu0 0
    %792 = vmatprep.subr.bf16.mxu0 0
    %793 = vmatpush1.bf16.msra.mxu0 0
    %794 = vmatprep.subr.bf16.mxu0 0
    %795 = vmatpush1.bf16.msra.mxu0 0
    %796 = vmatprep.mubr.bf16.mxu0 0
    %797 = vmatmul.mubr.bf16.gmra.mrb[0].mxu0 %v762
    %v798 = vpop.f32.mrb[0].mxu0
    %v799 = vadd.f32 0.0, %v798
    %v800 = vpop.f32.mrb[0].mxu0
    %v801 = vpop.f32.mrb[0].mxu0
    %v802 = vadd.f32 0.0, %v801
    %v803 = vpop.f32.mrb[0].mxu0
    %804 = vdwg.mxu0
    %805 = vrot.lane.b32.xlu0 %v168, 120
    %v806 = vpop.permute.xlu0 %805
    %807 = vrot.lane.b32.xlu0 %v168, 88
    %v808 = vpop.permute.xlu0 %807
    %v810 = vsel %vm182, %v806, 0
    %v813 = vsel %vm182, %v808, 0
    %815 = vmatprep.subr.bf16.mxu0 0
    %816 = vmatpush1.bf16.xpose.msra.mxu0 %v813
    %817 = vmatprep.subr.bf16.mxu0 0
    %818 = vmatpush1.bf16.xpose.msra.mxu0 0
    %819 = vmatprep.subr.bf16.mxu0 0
    %820 = vmatpush1.bf16.xpose.msra.mxu0 0
    %821 = vmatprep.subr.bf16.mxu0 0
    %822 = vmatpush1.bf16.xpose.msra.mxu0 0
    %823 = vmatprep.subr.bf16.mxu0 0
    %824 = vmatpush1.bf16.xpose.msra.mxu0 0
    %825 = vmatprep.subr.bf16.mxu0 0
    %826 = vmatpush1.bf16.xpose.msra.mxu0 0
    %827 = vmatprep.subr.bf16.mxu0 0
    %828 = vmatpush1.bf16.xpose.msra.mxu0 0
    %829 = vmatprep.subr.bf16.mxu0 0
    %830 = vmatpush1.bf16.xpose.msra.mxu0 0
    %831 = vmatprep.subr.bf16.mxu0 0
    %832 = vmatpush1.bf16.xpose.msra.mxu0 0
    %833 = vmatprep.subr.bf16.mxu0 0
    %834 = vmatpush1.bf16.xpose.msra.mxu0 0
    %835 = vmatprep.subr.bf16.mxu0 0
    %836 = vmatpush1.bf16.xpose.msra.mxu0 0
    %837 = vmatprep.subr.bf16.mxu0 0
    %838 = vmatpush1.bf16.xpose.msra.mxu0 0
    %839 = vmatprep.subr.bf16.mxu0 0
    %840 = vmatpush1.bf16.xpose.msra.mxu0 0
    %841 = vmatprep.subr.bf16.mxu0 0
    %842 = vmatpush1.bf16.xpose.msra.mxu0 0
    %843 = vmatprep.subr.bf16.mxu0 0
    %844 = vmatpush1.bf16.xpose.msra.mxu0 0
    %845 = vmatprep.subr.bf16.mxu0 0
    %846 = vmatpush1.bf16.xpose.msra.mxu0 0
    %847 = vmatprep.mubr.bf16.mxu0 0
    %848 = vmatmul.mubr.bf16.gmra.mrb[0].mxu0 %v810
    %v849 = vpop.f32.mrb[0].mxu0
    %v850 = vadd.f32 0.0, %v849
    %v851 = vpop.f32.mrb[0].mxu0
    %v852 = vpop.f32.mrb[0].mxu0
    %v853 = vadd.f32 0.0, %v852
    %v854 = vpop.f32.mrb[0].mxu0
    %855 = vdwg.mxu0
    %v856 = vmul.f32 %v850, 0.35355338
    %v857 = vmul.f32 %v853, 0.35355338
    %v858 = vadd.f32 %v856, %v59
    %v859 = vadd.f32 %v857, %v60
    %v860 = vsel %vm234, %v858, -inf
    %861 = vmax.xlane.f32.xlu0 %v860
    %v862 = vpop.xlane.xlu0 %861
    %v863 = vsel %vm234, %v859, -inf
    %864 = vmax.xlane.f32.xlu0 %v863
    %v865 = vpop.xlane.xlu0 %864
    %v866 = vsub.f32 %v858, %v862
    %v867 = vsub.f32 %v859, %v865
    %v868 = vmul.f32 %v866, 1.442695
    %v869 = vpow.pop %v868
    %v870 = vmul.f32 %v867, 1.442695
    %v871 = vpow.pop %v870
    %v872 = vsel %vm234, %v869, 0.0
    %873 = vadd.xlane.f32.xlu0 %v872
    %v874 = vpop.xlane.xlu0 %873
    %v875 = vsel %vm234, %v871, 0.0
    %876 = vadd.xlane.f32.xlu0 %v875
    %v877 = vpop.xlane.xlu0 %876
    %v878 = vrcp.pop %v874
    %v879 = vrcp.pop %v877
    %v880 = vmul.f32 %v869, %v878
    %v881 = vmul.f32 %v871, %v879
    %v882 = vpack.c.bf16 %v881, %v880
    %883 = vrot.lane.b32.xlu0 %v168, 56
    %v884 = vpop.permute.xlu0 %883
    %v887 = vsel %vm234, %v882, 0
    %889 = vmatprep.subr.bf16.mxu0 0
    %890 = vmatpush1.bf16.msra.mxu0 %v884
    %891 = vmatprep.subr.bf16.mxu0 0
    %892 = vmatpush1.bf16.msra.mxu0 0
    %893 = vmatprep.subr.bf16.mxu0 0
    %894 = vmatpush1.bf16.msra.mxu0 0
    %895 = vmatprep.subr.bf16.mxu0 0
    %896 = vmatpush1.bf16.msra.mxu0 0
    %897 = vmatprep.subr.bf16.mxu0 0
    %898 = vmatpush1.bf16.msra.mxu0 0
    %899 = vmatprep.subr.bf16.mxu0 0
    %900 = vmatpush1.bf16.msra.mxu0 0
    %901 = vmatprep.subr.bf16.mxu0 0
    %902 = vmatpush1.bf16.msra.mxu0 0
    %903 = vmatprep.subr.bf16.mxu0 0
    %904 = vmatpush1.bf16.msra.mxu0 0
    %905 = vmatprep.subr.bf16.mxu0 0
    %906 = vmatpush1.bf16.msra.mxu0 0
    %907 = vmatprep.subr.bf16.mxu0 0
    %908 = vmatpush1.bf16.msra.mxu0 0
    %909 = vmatprep.subr.bf16.mxu0 0
    %910 = vmatpush1.bf16.msra.mxu0 0
    %911 = vmatprep.subr.bf16.mxu0 0
    %912 = vmatpush1.bf16.msra.mxu0 0
    %913 = vmatprep.subr.bf16.mxu0 0
    %914 = vmatpush1.bf16.msra.mxu0 0
    %915 = vmatprep.subr.bf16.mxu0 0
    %916 = vmatpush1.bf16.msra.mxu0 0
    %917 = vmatprep.subr.bf16.mxu0 0
    %918 = vmatpush1.bf16.msra.mxu0 0
    %919 = vmatprep.subr.bf16.mxu0 0
    %920 = vmatpush1.bf16.msra.mxu0 0
    %921 = vmatprep.mubr.bf16.mxu0 0
    %922 = vmatmul.mubr.bf16.gmra.mrb[0].mxu0 %v887
    %v923 = vpop.f32.mrb[0].mxu0
    %v924 = vadd.f32 0.0, %v923
    %v925 = vpop.f32.mrb[0].mxu0
    %v926 = vpop.f32.mrb[0].mxu0
    %v927 = vadd.f32 0.0, %v926
    %v928 = vpop.f32.mrb[0].mxu0
    %929 = vdwg.mxu0
    %930 = vrot.lane.b32.xlu0 %v168, 112
    %v931 = vpop.permute.xlu0 %930
    %932 = vrot.lane.b32.xlu0 %v168, 80
    %v933 = vpop.permute.xlu0 %932
    %v935 = vsel %vm182, %v931, 0
    %v938 = vsel %vm182, %v933, 0
    %940 = vmatprep.subr.bf16.mxu0 0
    %941 = vmatpush1.bf16.xpose.msra.mxu0 %v938
    %942 = vmatprep.subr.bf16.mxu0 0
    %943 = vmatpush1.bf16.xpose.msra.mxu0 0
    %944 = vmatprep.subr.bf16.mxu0 0
    %945 = vmatpush1.bf16.xpose.msra.mxu0 0
    %946 = vmatprep.subr.bf16.mxu0 0
    %947 = vmatpush1.bf16.xpose.msra.mxu0 0
    %948 = vmatprep.subr.bf16.mxu0 0
    %949 = vmatpush1.bf16.xpose.msra.mxu0 0
    %950 = vmatprep.subr.bf16.mxu0 0
    %951 = vmatpush1.bf16.xpose.msra.mxu0 0
    %952 = vmatprep.subr.bf16.mxu0 0
    %953 = vmatpush1.bf16.xpose.msra.mxu0 0
    %954 = vmatprep.subr.bf16.mxu0 0
    %955 = vmatpush1.bf16.xpose.msra.mxu0 0
    %956 = vmatprep.subr.bf16.mxu0 0
    %957 = vmatpush1.bf16.xpose.msra.mxu0 0
    %958 = vmatprep.subr.bf16.mxu0 0
    %959 = vmatpush1.bf16.xpose.msra.mxu0 0
    %960 = vmatprep.subr.bf16.mxu0 0
    %961 = vmatpush1.bf16.xpose.msra.mxu0 0
    %962 = vmatprep.subr.bf16.mxu0 0
    %963 = vmatpush1.bf16.xpose.msra.mxu0 0
    %964 = vmatprep.subr.bf16.mxu0 0
    %965 = vmatpush1.bf16.xpose.msra.mxu0 0
    %966 = vmatprep.subr.bf16.mxu0 0
    %967 = vmatpush1.bf16.xpose.msra.mxu0 0
    %968 = vmatprep.subr.bf16.mxu0 0
    %969 = vmatpush1.bf16.xpose.msra.mxu0 0
    %970 = vmatprep.subr.bf16.mxu0 0
    %971 = vmatpush1.bf16.xpose.msra.mxu0 0
    %972 = vmatprep.mubr.bf16.mxu0 0
    %973 = vmatmul.mubr.bf16.gmra.mrb[0].mxu0 %v935
    %v974 = vpop.f32.mrb[0].mxu0
    %v975 = vadd.f32 0.0, %v974
    %v976 = vpop.f32.mrb[0].mxu0
    %v977 = vpop.f32.mrb[0].mxu0
    %v978 = vadd.f32 0.0, %v977
    %v979 = vpop.f32.mrb[0].mxu0
    %980 = vdwg.mxu0
    %v981 = vmul.f32 %v975, 0.35355338
    %v982 = vmul.f32 %v978, 0.35355338
    %v983 = vadd.f32 %v981, %v59
    %v984 = vadd.f32 %v982, %v60
    %v985 = vsel %vm234, %v983, -inf
    %986 = vmax.xlane.f32.xlu0 %v985
    %v987 = vpop.xlane.xlu0 %986
    %v988 = vsel %vm234, %v984, -inf
    %989 = vmax.xlane.f32.xlu0 %v988
    %v990 = vpop.xlane.xlu0 %989
    %v991 = vsub.f32 %v983, %v987
    %v992 = vsub.f32 %v984, %v990
    %v993 = vmul.f32 %v991, 1.442695
    %v994 = vpow.pop %v993
    %v995 = vmul.f32 %v992, 1.442695
    %v996 = vpow.pop %v995
    %v997 = vsel %vm234, %v994, 0.0
    %998 = vadd.xlane.f32.xlu0 %v997
    %v999 = vpop.xlane.xlu0 %998
    %v1000 = vsel %vm234, %v996, 0.0
    %1001 = vadd.xlane.f32.xlu0 %v1000
    %v1002 = vpop.xlane.xlu0 %1001
    %v1003 = vrcp.pop %v999
    %v1004 = vrcp.pop %v1002
    %v1005 = vmul.f32 %v994, %v1003
    %v1006 = vmul.f32 %v996, %v1004
    %v1007 = vpack.c.bf16 %v1006, %v1005
    %1008 = vrot.lane.b32.xlu0 %v168, 48
    %v1009 = vpop.permute.xlu0 %1008
    %v1012 = vsel %vm234, %v1007, 0
    %1014 = vmatprep.subr.bf16.mxu0 0
    %1015 = vmatpush1.bf16.msra.mxu0 %v1009
    %1016 = vmatprep.subr.bf16.mxu0 0
    %1017 = vmatpush1.bf16.msra.mxu0 0
    %1018 = vmatprep.subr.bf16.mxu0 0
    %1019 = vmatpush1.bf16.msra.mxu0 0
    %1020 = vmatprep.subr.bf16.mxu0 0
    %1021 = vmatpush1.bf16.msra.mxu0 0
    %1022 = vmatprep.subr.bf16.mxu0 0
    %1023 = vmatpush1.bf16.msra.mxu0 0
    %1024 = vmatprep.subr.bf16.mxu0 0
    %1025 = vmatpush1.bf16.msra.mxu0 0
    %1026 = vmatprep.subr.bf16.mxu0 0
    %1027 = vmatpush1.bf16.msra.mxu0 0
    %1028 = vmatprep.subr.bf16.mxu0 0
    %1029 = vmatpush1.bf16.msra.mxu0 0
    %1030 = vmatprep.subr.bf16.mxu0 0
    %1031 = vmatpush1.bf16.msra.mxu0 0
    %1032 = vmatprep.subr.bf16.mxu0 0
    %1033 = vmatpush1.bf16.msra.mxu0 0
    %1034 = vmatprep.subr.bf16.mxu0 0
    %1035 = vmatpush1.bf16.msra.mxu0 0
    %1036 = vmatprep.subr.bf16.mxu0 0
    %1037 = vmatpush1.bf16.msra.mxu0 0
    %1038 = vmatprep.subr.bf16.mxu0 0
    %1039 = vmatpush1.bf16.msra.mxu0 0
    %1040 = vmatprep.subr.bf16.mxu0 0
    %1041 = vmatpush1.bf16.msra.mxu0 0
    %1042 = vmatprep.subr.bf16.mxu0 0
    %1043 = vmatpush1.bf16.msra.mxu0 0
    %1044 = vmatprep.subr.bf16.mxu0 0
    %1045 = vmatpush1.bf16.msra.mxu0 0
    %1046 = vmatprep.mubr.bf16.mxu0 0
    %1047 = vmatmul.mubr.bf16.gmra.mrb[0].mxu0 %v1012
    %v1048 = vpop.f32.mrb[0].mxu0
    %v1049 = vadd.f32 0.0, %v1048
    %v1050 = vpop.f32.mrb[0].mxu0
    %v1051 = vpop.f32.mrb[0].mxu0
    %v1052 = vadd.f32 0.0, %v1051
    %v1053 = vpop.f32.mrb[0].mxu0
    %1054 = vdwg.mxu0
    %1055 = vrot.lane.b32.xlu0 %v168, 104
    %v1056 = vpop.permute.xlu0 %1055
    %1057 = vrot.lane.b32.xlu0 %v168, 72
    %v1058 = vpop.permute.xlu0 %1057
    %v1060 = vsel %vm182, %v1056, 0
    %v1063 = vsel %vm182, %v1058, 0
    %1065 = vmatprep.subr.bf16.mxu0 0
    %1066 = vmatpush1.bf16.xpose.msra.mxu0 %v1063
    %1067 = vmatprep.subr.bf16.mxu0 0
    %1068 = vmatpush1.bf16.xpose.msra.mxu0 0
    %1069 = vmatprep.subr.bf16.mxu0 0
    %1070 = vmatpush1.bf16.xpose.msra.mxu0 0
    %1071 = vmatprep.subr.bf16.mxu0 0
    %1072 = vmatpush1.bf16.xpose.msra.mxu0 0
    %1073 = vmatprep.subr.bf16.mxu0 0
    %1074 = vmatpush1.bf16.xpose.msra.mxu0 0
    %1075 = vmatprep.subr.bf16.mxu0 0
    %1076 = vmatpush1.bf16.xpose.msra.mxu0 0
    %1077 = vmatprep.subr.bf16.mxu0 0
    %1078 = vmatpush1.bf16.xpose.msra.mxu0 0
    %1079 = vmatprep.subr.bf16.mxu0 0
    %1080 = vmatpush1.bf16.xpose.msra.mxu0 0
    %1081 = vmatprep.subr.bf16.mxu0 0
    %1082 = vmatpush1.bf16.xpose.msra.mxu0 0
    %1083 = vmatprep.subr.bf16.mxu0 0
    %1084 = vmatpush1.bf16.xpose.msra.mxu0 0
    %1085 = vmatprep.subr.bf16.mxu0 0
    %1086 = vmatpush1.bf16.xpose.msra.mxu0 0
    %1087 = vmatprep.subr.bf16.mxu0 0
    %1088 = vmatpush1.bf16.xpose.msra.mxu0 0
    %1089 = vmatprep.subr.bf16.mxu0 0
    %1090 = vmatpush1.bf16.xpose.msra.mxu0 0
    %1091 = vmatprep.subr.bf16.mxu0 0
    %1092 = vmatpush1.bf16.xpose.msra.mxu0 0
    %1093 = vmatprep.subr.bf16.mxu0 0
    %1094 = vmatpush1.bf16.xpose.msra.mxu0 0
    %1095 = vmatprep.subr.bf16.mxu0 0
    %1096 = vmatpush1.bf16.xpose.msra.mxu0 0
    %1097 = vmatprep.mubr.bf16.mxu0 0
    %1098 = vmatmul.mubr.bf16.gmra.mrb[0].mxu0 %v1060
    %v1099 = vpop.f32.mrb[0].mxu0
    %v1100 = vadd.f32 0.0, %v1099
    %v1101 = vpop.f32.mrb[0].mxu0
    %v1102 = vpop.f32.mrb[0].mxu0
    %v1103 = vadd.f32 0.0, %v1102
    %v1104 = vpop.f32.mrb[0].mxu0
    %1105 = vdwg.mxu0
    %v1106 = vmul.f32 %v1100, 0.35355338
    %v1107 = vmul.f32 %v1103, 0.35355338
    %v1108 = vadd.f32 %v1106, %v59
    %v1109 = vadd.f32 %v1107, %v60
    %v1110 = vsel %vm234, %v1108, -inf
    %1111 = vmax.xlane.f32.xlu0 %v1110
    %v1112 = vpop.xlane.xlu0 %1111
    %v1113 = vsel %vm234, %v1109, -inf
    %1114 = vmax.xlane.f32.xlu0 %v1113
    %v1115 = vpop.xlane.xlu0 %1114
    %v1116 = vsub.f32 %v1108, %v1112
    %v1117 = vsub.f32 %v1109, %v1115
    %v1118 = vmul.f32 %v1116, 1.442695
    %v1119 = vpow.pop %v1118
    %v1120 = vmul.f32 %v1117, 1.442695
    %v1121 = vpow.pop %v1120
    %v1122 = vsel %vm234, %v1119, 0.0
    %1123 = vadd.xlane.f32.xlu0 %v1122
    %v1124 = vpop.xlane.xlu0 %1123
    %v1125 = vsel %vm234, %v1121, 0.0
    %1126 = vadd.xlane.f32.xlu0 %v1125
    %v1127 = vpop.xlane.xlu0 %1126
    %v1128 = vrcp.pop %v1124
    %v1129 = vrcp.pop %v1127
    %v1130 = vmul.f32 %v1119, %v1128
    %v1131 = vmul.f32 %v1121, %v1129
    %v1132 = vpack.c.bf16 %v1131, %v1130
    %1133 = vrot.lane.b32.xlu0 %v168, 40
    %v1134 = vpop.permute.xlu0 %1133
    %v1137 = vsel %vm234, %v1132, 0
    %1139 = vmatprep.subr.bf16.mxu0 0
    %1140 = vmatpush1.bf16.msra.mxu0 %v1134
    %1141 = vmatprep.subr.bf16.mxu0 0
    %1142 = vmatpush1.bf16.msra.mxu0 0
    %1143 = vmatprep.subr.bf16.mxu0 0
    %1144 = vmatpush1.bf16.msra.mxu0 0
    %1145 = vmatprep.subr.bf16.mxu0 0
    %1146 = vmatpush1.bf16.msra.mxu0 0
    %1147 = vmatprep.subr.bf16.mxu0 0
    %1148 = vmatpush1.bf16.msra.mxu0 0
    %1149 = vmatprep.subr.bf16.mxu0 0
    %1150 = vmatpush1.bf16.msra.mxu0 0
    %1151 = vmatprep.subr.bf16.mxu0 0
    %1152 = vmatpush1.bf16.msra.mxu0 0
    %1153 = vmatprep.subr.bf16.mxu0 0
    %1154 = vmatpush1.bf16.msra.mxu0 0
    %1155 = vmatprep.subr.bf16.mxu0 0
    %1156 = vmatpush1.bf16.msra.mxu0 0
    %1157 = vmatprep.subr.bf16.mxu0 0
    %1158 = vmatpush1.bf16.msra.mxu0 0
    %1159 = vmatprep.subr.bf16.mxu0 0
    %1160 = vmatpush1.bf16.msra.mxu0 0
    %1161 = vmatprep.subr.bf16.mxu0 0
    %1162 = vmatpush1.bf16.msra.mxu0 0
    %1163 = vmatprep.subr.bf16.mxu0 0
    %1164 = vmatpush1.bf16.msra.mxu0 0
    %1165 = vmatprep.subr.bf16.mxu0 0
    %1166 = vmatpush1.bf16.msra.mxu0 0
    %1167 = vmatprep.subr.bf16.mxu0 0
    %1168 = vmatpush1.bf16.msra.mxu0 0
    %1169 = vmatprep.subr.bf16.mxu0 0
    %1170 = vmatpush1.bf16.msra.mxu0 0
    %1171 = vmatprep.mubr.bf16.mxu0 0
    %1172 = vmatmul.mubr.bf16.gmra.mrb[0].mxu0 %v1137
    %v1173 = vpop.f32.mrb[0].mxu0
    %v1174 = vadd.f32 0.0, %v1173
    %v1175 = vpop.f32.mrb[0].mxu0
    %v1176 = vpop.f32.mrb[0].mxu0
    %v1177 = vadd.f32 0.0, %v1176
    %v1178 = vpop.f32.mrb[0].mxu0
    %1179 = vdwg.mxu0
    %1182 = vrot.lane.b32.xlu0 %v425, 8
    %v1183 = vpop.permute.xlu0 %1182
    %1184 = vrot.lane.b32.xlu0 %v428, 8
    %v1185 = vpop.permute.xlu0 %1184
    %1190 = vrot.lane.b32.xlu0 %v550, 16
    %v1191 = vpop.permute.xlu0 %1190
    %1192 = vrot.lane.b32.xlu0 %v553, 16
    %v1193 = vpop.permute.xlu0 %1192
    %1198 = vrot.lane.b32.xlu0 %v675, 24
    %v1199 = vpop.permute.xlu0 %1198
    %1200 = vrot.lane.b32.xlu0 %v678, 24
    %v1201 = vpop.permute.xlu0 %1200
    %1206 = vrot.lane.b32.xlu0 %v799, 32
    %v1207 = vpop.permute.xlu0 %1206
    %1208 = vrot.lane.b32.xlu0 %v802, 32
    %v1209 = vpop.permute.xlu0 %1208
    %1214 = vrot.lane.b32.xlu0 %v924, 40
    %v1215 = vpop.permute.xlu0 %1214
    %1216 = vrot.lane.b32.xlu0 %v927, 40
    %v1217 = vpop.permute.xlu0 %1216
    %1222 = vrot.lane.b32.xlu0 %v1049, 48
    %v1223 = vpop.permute.xlu0 %1222
    %1224 = vrot.lane.b32.xlu0 %v1052, 48
    %v1225 = vpop.permute.xlu0 %1224
    %1230 = vrot.lane.b32.xlu0 %v1174, 56
    %v1231 = vpop.permute.xlu0 %1230
    %1232 = vrot.lane.b32.xlu0 %v1177, 56
    %v1233 = vpop.permute.xlu0 %1232
    %v1236 = vsel %vm182, %v300, %v1183
    %v1237 = vsel %vm182, %v303, %v1185
    %v1238 = vsel %vm234, %v1236, %v1191
    %v1239 = vsel %vm234, %v1237, %v1193
    %vm1240 = vcmask 195584
    %v1241 = vsel %vm1240, %v1238, %v1199
    %v1242 = vsel %vm1240, %v1239, %v1201
    %v1243 = vsel %vm80, %v1241, %v1207
    %v1244 = vsel %vm80, %v1242, %v1209
    %vm1245 = vcmask 326656
    %v1246 = vsel %vm1245, %v1243, %v1215
    %v1247 = vsel %vm1245, %v1244, %v1217
    %vm1248 = vcmask 392192
    %v1249 = vsel %vm1248, %v1246, %v1223
    %v1250 = vsel %vm1248, %v1247, %v1225
    %vm1251 = vcmask 457728
    %v1252 = vsel %vm1251, %v1249, %v1231
    %v1253 = vsel %vm1251, %v1250, %v1233
    %v1254 = vpack.c.bf16 %v1253, %v1252
    %v1255 = vld [vmem:[%s4] sm:$0xf]
    %v1256 = vld [vmem:[%s4 + $0x4] sm:$0xf]
    %v1257 = vld [vmem:[%s4 + $0x8] sm:$0xf]
    %v1258 = vld [vmem:[%s4 + $0xc] sm:$0xf]
    %v1259 = vld [vmem:[%s4 + $0x10] sm:$0xf]
    %v1260 = vld [vmem:[%s4 + $0x14] sm:$0xf]
    %v1261 = vld [vmem:[%s4 + $0x18] sm:$0xf]
    %v1262 = vld [vmem:[%s4 + $0x1c] sm:$0xf]
    %v1263 = vld [vmem:[%s5] sm:$0x1]
    %v1265 = vlaneseq
    %v1266 = vshrl.u32 %v1265, 7
    %v1267 = vsub.s32 0, %v1266
    %v1268 = vrot.slane %v1263, %v1267
    %v1278 = vunpack.c.l.b16 %v1255
    %v1279 = vunpack.c.l.b16 %v1256
    %v1280 = vunpack.c.l.b16 %v1257
    %v1281 = vunpack.c.l.b16 %v1258
    %v1282 = vunpack.c.l.b16 %v1259
    %v1283 = vunpack.c.l.b16 %v1260
    %v1284 = vunpack.c.l.b16 %v1261
    %v1285 = vunpack.c.l.b16 %v1262
    %v1286 = vpack.c.b16 %v1279, %v1278
    %v1287 = vpack.c.b16 %v1281, %v1280
    %v1288 = vpack.c.b16 %v1283, %v1282
    %v1289 = vpack.c.b16 %v1285, %v1284
    %vm1294 = vcmask 523264
    %v1296 = vsel %vm1294, %v1254, 0
    %1298 = vmatprep.subr.bf16.mxu0 0
    %1299 = vmatpush1.bf16.msra.mxu0 %v1286
    %1300 = vmatprep.subr.bf16.mxu0 0
    %1301 = vmatpush1.bf16.msra.mxu0 %v1287
    %1302 = vmatprep.subr.bf16.mxu0 0
    %1303 = vmatpush1.bf16.msra.mxu0 %v1288
    %1304 = vmatprep.subr.bf16.mxu0 0
    %1305 = vmatpush1.bf16.msra.mxu0 %v1289
    %1306 = vmatprep.subr.bf16.mxu0 0
    %1307 = vmatpush1.bf16.msra.mxu0 0
    %1308 = vmatprep.subr.bf16.mxu0 0
    %1309 = vmatpush1.bf16.msra.mxu0 0
    %1310 = vmatprep.subr.bf16.mxu0 0
    %1311 = vmatpush1.bf16.msra.mxu0 0
    %1312 = vmatprep.subr.bf16.mxu0 0
    %1313 = vmatpush1.bf16.msra.mxu0 0
    %1314 = vmatprep.subr.bf16.mxu0 0
    %1315 = vmatpush1.bf16.msra.mxu0 0
    %1316 = vmatprep.subr.bf16.mxu0 0
    %1317 = vmatpush1.bf16.msra.mxu0 0
    %1318 = vmatprep.subr.bf16.mxu0 0
    %1319 = vmatpush1.bf16.msra.mxu0 0
    %1320 = vmatprep.subr.bf16.mxu0 0
    %1321 = vmatpush1.bf16.msra.mxu0 0
    %1322 = vmatprep.subr.bf16.mxu0 0
    %1323 = vmatpush1.bf16.msra.mxu0 0
    %1324 = vmatprep.subr.bf16.mxu0 0
    %1325 = vmatpush1.bf16.msra.mxu0 0
    %1326 = vmatprep.subr.bf16.mxu0 0
    %1327 = vmatpush1.bf16.msra.mxu0 0
    %1328 = vmatprep.subr.bf16.mxu0 0
    %1329 = vmatpush1.bf16.msra.mxu0 0
    %1330 = vmatprep.mubr.bf16.mxu0 0
    %1331 = vmatmul.mubr.bf16.gmra.mrb[0].mxu0 %v1296
    %v1332 = vpop.f32.mrb[0].mxu0
    %v1333 = vadd.f32 %v1268, %v1332
    %v1334 = vpop.f32.mrb[0].mxu0
    %v1335 = vpop.f32.mrb[0].mxu0
    %v1336 = vadd.f32 %v1268, %v1335
    %v1337 = vpop.f32.mrb[0].mxu0
    %1338 = vdwg.mxu0
    %v1339 = vadd.f32 %v1333, %v61
    %v1340 = vadd.f32 %v1336, %v62
    %v1341 = vld [vmem:[%s6] sm:$0x1]
    %v1342 = vld [vmem:[%s7] sm:$0x1]
    %v1343 = vsel %vm80, %v1339, 0.0
    %1344 = vadd.xlane.f32.xlu0 %v1343
    %v1345 = vpop.xlane.xlu0 %1344
    %v1346 = vsel %vm80, %v1340, 0.0
    %1347 = vadd.xlane.f32.xlu0 %v1346
    %v1348 = vpop.xlane.xlu0 %1347
    %v1349 = vrcp.pop 32.0
    %v1350 = vmul.f32 %v1345, %v1349
    %v1351 = vmul.f32 %v1348, %v1349
    %v1352 = vsub.f32 %v1339, %v1350
    %v1353 = vsub.f32 %v1340, %v1351
    %v1354 = vmul.f32 %v1352, %v1352
    %v1355 = vmul.f32 %v1353, %v1353
    %v1356 = vsel %vm80, %v1354, 0.0
    %1357 = vadd.xlane.f32.xlu0 %v1356
    %v1358 = vpop.xlane.xlu0 %1357
    %v1359 = vsel %vm80, %v1355, 0.0
    %1360 = vadd.xlane.f32.xlu0 %v1359
    %v1361 = vpop.xlane.xlu0 %1360
    %v1362 = vmul.f32 %v1358, %v1349
    %v1363 = vmul.f32 %v1361, %v1349
    %v1364 = vadd.f32 %v1362, 1e-12
    %v1365 = vadd.f32 %v1363, 1e-12
    %v1366 = vrsqrt.pop %v1364
    %v1367 = vrsqrt.pop %v1365
    %v1368 = vmul.f32 %v1352, %v1366
    %v1369 = vmul.f32 %v1353, %v1367
    %v1371 = vlaneseq
    %v1372 = vshrl.u32 %v1371, 7
    %v1373 = vsub.s32 0, %v1372
    %v1374 = vrot.slane %v1341, %v1373
    %v1376 = vmul.f32 %v1368, %v1374
    %v1377 = vmul.f32 %v1369, %v1374
    %v1379 = vlaneseq
    %v1380 = vshrl.u32 %v1379, 7
    %v1381 = vsub.s32 0, %v1380
    %v1382 = vrot.slane %v1342, %v1381
    %v1384 = vadd.f32 %v1376, %v1382
    %v1385 = vadd.f32 %v1377, %v1382
    %v1386 = vpack.c.bf16 %v1385, %v1384
    %v1387 = vld [vmem:[%s8] sm:$0xf]
    %v1388 = vld [vmem:[%s8 + $0x4] sm:$0xf]
    %v1389 = vld [vmem:[%s8 + $0x8] sm:$0xf]
    %v1390 = vld [vmem:[%s8 + $0xc] sm:$0xf]
    %v1391 = vld [vmem:[%s9] sm:$0x1]
    %v1393 = vlaneseq
    %v1394 = vshrl.u32 %v1393, 7
    %v1395 = vsub.s32 0, %v1394
    %v1396 = vrot.slane %v1391, %v1395
    %v1402 = vunpack.c.l.b16 %v1387
    %v1403 = vunpack.c.l.b16 %v1388
    %v1404 = vunpack.c.l.b16 %v1389
    %v1405 = vunpack.c.l.b16 %v1390
    %v1406 = vpack.c.b16 %v1403, %v1402
    %v1407 = vpack.c.b16 %v1405, %v1404
    %v1411 = vsel %vm80, %v1386, 0
    %1413 = vmatprep.subr.bf16.mxu0 0
    %1414 = vmatpush1.bf16.msra.mxu0 %v1406
    %1415 = vmatprep.subr.bf16.mxu0 0
    %1416 = vmatpush1.bf16.msra.mxu0 %v1407
    %1417 = vmatprep.subr.bf16.mxu0 0
    %1418 = vmatpush1.bf16.msra.mxu0 0
    %1419 = vmatprep.subr.bf16.mxu0 0
    %1420 = vmatpush1.bf16.msra.mxu0 0
    %1421 = vmatprep.subr.bf16.mxu0 0
    %1422 = vmatpush1.bf16.msra.mxu0 0
    %1423 = vmatprep.subr.bf16.mxu0 0
    %1424 = vmatpush1.bf16.msra.mxu0 0
    %1425 = vmatprep.subr.bf16.mxu0 0
    %1426 = vmatpush1.bf16.msra.mxu0 0
    %1427 = vmatprep.subr.bf16.mxu0 0
    %1428 = vmatpush1.bf16.msra.mxu0 0
    %1429 = vmatprep.subr.bf16.mxu0 0
    %1430 = vmatpush1.bf16.msra.mxu0 0
    %1431 = vmatprep.subr.bf16.mxu0 0
    %1432 = vmatpush1.bf16.msra.mxu0 0
    %1433 = vmatprep.subr.bf16.mxu0 0
    %1434 = vmatpush1.bf16.msra.mxu0 0
    %1435 = vmatprep.subr.bf16.mxu0 0
    %1436 = vmatpush1.bf16.msra.mxu0 0
    %1437 = vmatprep.subr.bf16.mxu0 0
    %1438 = vmatpush1.bf16.msra.mxu0 0
    %1439 = vmatprep.subr.bf16.mxu0 0
    %1440 = vmatpush1.bf16.msra.mxu0 0
    %1441 = vmatprep.subr.bf16.mxu0 0
    %1442 = vmatpush1.bf16.msra.mxu0 0
    %1443 = vmatprep.subr.bf16.mxu0 0
    %1444 = vmatpush1.bf16.msra.mxu0 0
    %1445 = vmatprep.mubr.bf16.mxu0 0
    %1446 = vmatmul.mubr.bf16.gmra.mrb[0].mxu0 %v1411
    %v1447 = vpop.f32.mrb[0].mxu0
    %v1448 = vadd.f32 %v1396, %v1447
    %v1449 = vpop.f32.mrb[0].mxu0
    %v1450 = vpop.f32.mrb[0].mxu0
    %v1451 = vadd.f32 %v1396, %v1450
    %v1452 = vpop.f32.mrb[0].mxu0
    %1453 = vdwg.mxu0
    %v1454 = vmul.f32 %v1448, 0.5
    %v1455 = vmul.f32 %v1451, 0.5
    %v1456 = vmul.f32 %v1448, 0.044715
    %v1457 = vmul.f32 %v1451, 0.044715
    %v1458 = vmul.f32 %v1456, %v1448
    %v1459 = vmul.f32 %v1457, %v1451
    %v1460 = vmul.f32 %v1458, %v1448
    %v1461 = vmul.f32 %v1459, %v1451
    %v1462 = vadd.f32 %v1448, %v1460
    %v1463 = vadd.f32 %v1451, %v1461
    %v1464 = vmul.f32 %v1462, 0.7978846
    %v1465 = vmul.f32 %v1463, 0.7978846
    %v1466 = vtanh.pop %v1464
    %v1467 = vtanh.pop %v1465
    %v1468 = vadd.f32 %v1466, 1.0
    %v1469 = vadd.f32 %v1467, 1.0
    %v1470 = vmul.f32 %v1454, %v1468
    %v1471 = vmul.f32 %v1455, %v1469
    %v1472 = vpack.c.bf16 %v1471, %v1470
    %v1473 = vld [vmem:[%s10] sm:$0xf]
    %v1474 = vld [vmem:[%s10 + $0x4] sm:$0xf]
    %v1475 = vld [vmem:[%s10 + $0x8] sm:$0xf]
    %v1476 = vld [vmem:[%s10 + $0xc] sm:$0xf]
    %v1477 = vld [vmem:[%s10 + $0x10] sm:$0xf]
    %v1478 = vld [vmem:[%s10 + $0x14] sm:$0xf]
    %v1479 = vld [vmem:[%s10 + $0x18] sm:$0xf]
    %v1480 = vld [vmem:[%s10 + $0x1c] sm:$0xf]
    %v1481 = vld [vmem:[%s11] sm:$0x1]
    %v1483 = vlaneseq
    %v1484 = vshrl.u32 %v1483, 7
    %v1485 = vsub.s32 0, %v1484
    %v1486 = vrot.slane %v1481, %v1485
    %v1496 = vunpack.c.l.b16 %v1473
    %v1497 = vunpack.c.l.b16 %v1474
    %v1498 = vunpack.c.l.b16 %v1475
    %v1499 = vunpack.c.l.b16 %v1476
    %v1500 = vunpack.c.l.b16 %v1477
    %v1501 = vunpack.c.l.b16 %v1478
    %v1502 = vunpack.c.l.b16 %v1479
    %v1503 = vunpack.c.l.b16 %v1480
    %v1504 = vpack.c.b16 %v1497, %v1496
    %v1505 = vpack.c.b16 %v1499, %v1498
    %v1506 = vpack.c.b16 %v1501, %v1500
    %v1507 = vpack.c.b16 %v1503, %v1502
    %v1513 = vsel %vm1294, %v1472, 0
    %1515 = vmatprep.subr.bf16.mxu0 0
    %1516 = vmatpush1.bf16.msra.mxu0 %v1504
    %1517 = vmatprep.subr.bf16.mxu0 0
    %1518 = vmatpush1.bf16.msra.mxu0 %v1505
    %1519 = vmatprep.subr.bf16.mxu0 0
    %1520 = vmatpush1.bf16.msra.mxu0 %v1506
    %1521 = vmatprep.subr.bf16.mxu0 0
    %1522 = vmatpush1.bf16.msra.mxu0 %v1507
    %1523 = vmatprep.subr.bf16.mxu0 0
    %1524 = vmatpush1.bf16.msra.mxu0 0
    %1525 = vmatprep.subr.bf16.mxu0 0
    %1526 = vmatpush1.bf16.msra.mxu0 0
    %1527 = vmatprep.subr.bf16.mxu0 0
    %1528 = vmatpush1.bf16.msra.mxu0 0
    %1529 = vmatprep.subr.bf16.mxu0 0
    %1530 = vmatpush1.bf16.msra.mxu0 0
    %1531 = vmatprep.subr.bf16.mxu0 0
    %1532 = vmatpush1.bf16.msra.mxu0 0
    %1533 = vmatprep.subr.bf16.mxu0 0
    %1534 = vmatpush1.bf16.msra.mxu0 0
    %1535 = vmatprep.subr.bf16.mxu0 0
    %1536 = vmatpush1.bf16.msra.mxu0 0
    %1537 = vmatprep.subr.bf16.mxu0 0
    %1538 = vmatpush1.bf16.msra.mxu0 0
    %1539 = vmatprep.subr.bf16.mxu0 0
    %1540 = vmatpush1.bf16.msra.mxu0 0
    %1541 = vmatprep.subr.bf16.mxu0 0
    %1542 = vmatpush1.bf16.msra.mxu0 0
    %1543 = vmatprep.subr.bf16.mxu0 0
    %1544 = vmatpush1.bf16.msra.mxu0 0
    %1545 = vmatprep.subr.bf16.mxu0 0
    %1546 = vmatpush1.bf16.msra.mxu0 0
    %1547 = vmatprep.mubr.bf16.mxu0 0
    %1548 = vmatmul.mubr.bf16.gmra.mrb[0].mxu0 %v1513
    %v1549 = vpop.f32.mrb[0].mxu0
    %v1550 = vadd.f32 %v1486, %v1549
    %v1551 = vpop.f32.mrb[0].mxu0
    %v1552 = vpop.f32.mrb[0].mxu0
    %v1553 = vadd.f32 %v1486, %v1552
    %v1554 = vpop.f32.mrb[0].mxu0
    %1555 = vdwg.mxu0
    %v1556 = vadd.f32 %v1550, %v1384
    %v1557 = vadd.f32 %v1553, %v1385
    %v1558 = vld [vmem:[%s12] sm:$0x1]
    %v1559 = vld [vmem:[%s13] sm:$0x1]
    %v1560 = vsel %vm80, %v1556, 0.0
    %1561 = vadd.xlane.f32.xlu0 %v1560
    %v1562 = vpop.xlane.xlu0 %1561
    %v1563 = vsel %vm80, %v1557, 0.0
    %1564 = vadd.xlane.f32.xlu0 %v1563
    %v1565 = vpop.xlane.xlu0 %1564
    %v1566 = vmul.f32 %v1562, %v1349
    %v1567 = vmul.f32 %v1565, %v1349
    %v1568 = vsub.f32 %v1556, %v1566
    %v1569 = vsub.f32 %v1557, %v1567
    %v1570 = vmul.f32 %v1568, %v1568
    %v1571 = vmul.f32 %v1569, %v1569
    %v1572 = vsel %vm80, %v1570, 0.0
    %1573 = vadd.xlane.f32.xlu0 %v1572
    %v1574 = vpop.xlane.xlu0 %1573
    %v1575 = vsel %vm80, %v1571, 0.0
    %1576 = vadd.xlane.f32.xlu0 %v1575
    %v1577 = vpop.xlane.xlu0 %1576
    %v1578 = vmul.f32 %v1574, %v1349
    %v1579 = vmul.f32 %v1577, %v1349
    %v1580 = vadd.f32 %v1578, 1e-12
    %v1581 = vadd.f32 %v1579, 1e-12
    %v1582 = vrsqrt.pop %v1580
    %v1583 = vrsqrt.pop %v1581
    %v1584 = vmul.f32 %v1568, %v1582
    %v1585 = vmul.f32 %v1569, %v1583
    %v1587 = vlaneseq
    %v1588 = vshrl.u32 %v1587, 7
    %v1589 = vsub.s32 0, %v1588
    %v1590 = vrot.slane %v1558, %v1589
    %v1592 = vmul.f32 %v1584, %v1590
    %v1593 = vmul.f32 %v1585, %v1590
    %v1595 = vlaneseq
    %v1596 = vshrl.u32 %v1595, 7
    %v1597 = vsub.s32 0, %v1596
    %v1598 = vrot.slane %v1559, %v1597
    %v1600 = vadd.f32 %v1592, %v1598
    %v1601 = vadd.f32 %v1593, %v1598
    %v1602 = vpack.c.bf16 %v1601, %v1600
    %s1603 = scalar_lea.vmem %s1, 16
    %v1604 = vld [vmem:[%s1603] sm:$0xf]
    %v1605 = vld [vmem:[%s1603 + $0x4] sm:$0xf]
    %v1606 = vld [vmem:[%s1603 + $0x8] sm:$0xf]
    %v1607 = vld [vmem:[%s1603 + $0xc] sm:$0xf]
    %v1612 = vunpack.c.l.b16 %v1604
    %v1613 = vunpack.c.l.b16 %v1605
    %v1614 = vunpack.c.l.b16 %v1606
    %v1615 = vunpack.c.l.b16 %v1607
    %v1616 = vpack.c.b16 %v1613, %v1612
    %v1617 = vpack.c.b16 %v1615, %v1614
    %v1621 = vsel %vm80, %v1602, 0
    %1623 = vmatprep.subr.bf16.mxu0 0
    %1624 = vmatpush1.bf16.msra.mxu0 %v1616
    %1625 = vmatprep.subr.bf16.mxu0 0
    %1626 = vmatpush1.bf16.msra.mxu0 %v1617
    %1627 = vmatprep.subr.bf16.mxu0 0
    %1628 = vmatpush1.bf16.msra.mxu0 0
    %1629 = vmatprep.subr.bf16.mxu0 0
    %1630 = vmatpush1.bf16.msra.mxu0 0
    %1631 = vmatprep.subr.bf16.mxu0 0
    %1632 = vmatpush1.bf16.msra.mxu0 0
    %1633 = vmatprep.subr.bf16.mxu0 0
    %1634 = vmatpush1.bf16.msra.mxu0 0
    %1635 = vmatprep.subr.bf16.mxu0 0
    %1636 = vmatpush1.bf16.msra.mxu0 0
    %1637 = vmatprep.subr.bf16.mxu0 0
    %1638 = vmatpush1.bf16.msra.mxu0 0
    %1639 = vmatprep.subr.bf16.mxu0 0
    %1640 = vmatpush1.bf16.msra.mxu0 0
    %1641 = vmatprep.subr.bf16.mxu0 0
    %1642 = vmatpush1.bf16.msra.mxu0 0
    %1643 = vmatprep.subr.bf16.mxu0 0
    %1644 = vmatpush1.bf16.msra.mxu0 0
    %1645 = vmatprep.subr.bf16.mxu0 0
    %1646 = vmatpush1.bf16.msra.mxu0 0
    %1647 = vmatprep.subr.bf16.mxu0 0
    %1648 = vmatpush1.bf16.msra.mxu0 0
    %1649 = vmatprep.subr.bf16.mxu0 0
    %1650 = vmatpush1.bf16.msra.mxu0 0
    %1651 = vmatprep.subr.bf16.mxu0 0
    %1652 = vmatpush1.bf16.msra.mxu0 0
    %1653 = vmatprep.subr.bf16.mxu0 0
    %1654 = vmatpush1.bf16.msra.mxu0 0
    %1655 = vmatprep.mubr.bf16.mxu0 0
    %1656 = vmatmul.mubr.bf16.gmra.mrb[0].mxu0 %v1621
    %v1657 = vpop.f32.mrb[0].mxu0
    %v1658 = vadd.f32 0.0, %v1657
    %v1659 = vpop.f32.mrb[0].mxu0
    %v1660 = vpop.f32.mrb[0].mxu0
    %v1661 = vadd.f32 0.0, %v1660
    %v1662 = vpop.f32.mrb[0].mxu0
    %1663 = vdwg.mxu0
    %s1664 = scalar_lea.vmem %s3, 1
    %v1665 = vld [vmem:[%s1664] sm:$0x1]
    %v1667 = vlaneseq
    %v1668 = vshrl.u32 %v1667, 7
    %v1669 = vsub.s32 0, %v1668
    %v1670 = vrot.slane %v1665, %v1669
    %1671 = vrot.lane.b32.xlu0 %v1670, 96
    %v1672 = vpop.permute.xlu0 %1671
    %v1674 = vadd.f32 %v1658, %v1672
    %v1675 = vadd.f32 %v1661, %v1672
    %vm1676 = vcmp.le.f32.partialorder %v1674, 0.0
    %vm1677 = vcmp.le.f32.partialorder %v1675, 0.0
    %v1678 = vsel %vm1676, 1, 0
    %v1679 = vsel %vm1677, 1, 0
    %v1680 = vcvt.s32.f32 %v1678
    %v1681 = vcvt.s32.f32 %v1679
    %1683 = vset.pattern.permute.xlu0 96
    %1684 = vperm.xlu0 %1683, %v1680
    %v1685 = vpop.permute.xlu0 %1684
    %1688 = vset.pattern.permute.xlu0 96
    %1689 = vperm.xlu0 %1688, %v1681
    %v1690 = vpop.permute.xlu0 %1689
    %v1692 = vmul.f32 %v1685, %v1658
    %v1693 = vmul.f32 %v1690, %v1661
    %v1694 = vsub.f32 %v1658, %v1692
    %v1695 = vsub.f32 %v1661, %v1693
    %s1696 = scalar_lea.vmem %s2, 1
    %v1697 = vld [vmem:[%s1696] sm:$0x1]
    %v1699 = vlaneseq
    %v1700 = vshrl.u32 %v1699, 7
    %v1701 = vsub.s32 0, %v1700
    %v1702 = vrot.slane %v1697, %v1701
    %v1704 = vadd.f32 %v1692, %v1702
    %v1705 = vadd.f32 %v1693, %v1702
    %v1706 = vpack.c.bf16 %v1705, %v1704
    %v1707 = vadd.f32 %v1694, %v1702
    %v1708 = vadd.f32 %v1695, %v1702
    %v1709 = vpack.c.bf16 %v1708, %v1707
    %v1710 = vmul.f32 %v1697, 2.0
    %v1712 = vlaneseq
    %v1713 = vshrl.u32 %v1712, 7
    %v1714 = vsub.s32 0, %v1713
    %v1715 = vrot.slane %v1710, %v1714
    %v1717 = vadd.f32 %v1658, %v1715
    %v1718 = vadd.f32 %v1661, %v1715
    %v1719 = vpack.c.bf16 %v1718, %v1717
    %1721 = vrot.lane.b32.xlu0 %v1706, 96
    %v1722 = vpop.permute.xlu0 %1721
    %v1724 = vsel %vm182, %v1706, 0
    %v1727 = vsel %vm182, %v1722, 0
    %1729 = vmatprep.subr.bf16.mxu0 0
    %1730 = vmatpush1.bf16.xpose.msra.mxu0 %v1727
    %1731 = vmatprep.subr.bf16.mxu0 0
    %1732 = vmatpush1.bf16.xpose.msra.mxu0 0
    %1733 = vmatprep.subr.bf16.mxu0 0
    %1734 = vmatpush1.bf16.xpose.msra.mxu0 0
    %1735 = vmatprep.subr.bf16.mxu0 0
    %1736 = vmatpush1.bf16.xpose.msra.mxu0 0
    %1737 = vmatprep.subr.bf16.mxu0 0
    %1738 = vmatpush1.bf16.xpose.msra.mxu0 0
    %1739 = vmatprep.subr.bf16.mxu0 0
    %1740 = vmatpush1.bf16.xpose.msra.mxu0 0
    %1741 = vmatprep.subr.bf16.mxu0 0
    %1742 = vmatpush1.bf16.xpose.msra.mxu0 0
    %1743 = vmatprep.subr.bf16.mxu0 0
    %1744 = vmatpush1.bf16.xpose.msra.mxu0 0
    %1745 = vmatprep.subr.bf16.mxu0 0
    %1746 = vmatpush1.bf16.xpose.msra.mxu0 0
    %1747 = vmatprep.subr.bf16.mxu0 0
    %1748 = vmatpush1.bf16.xpose.msra.mxu0 0
    %1749 = vmatprep.subr.bf16.mxu0 0
    %1750 = vmatpush1.bf16.xpose.msra.mxu0 0
    %1751 = vmatprep.subr.bf16.mxu0 0
    %1752 = vmatpush1.bf16.xpose.msra.mxu0 0
    %1753 = vmatprep.subr.bf16.mxu0 0
    %1754 = vmatpush1.bf16.xpose.msra.mxu0 0
    %1755 = vmatprep.subr.bf16.mxu0 0
    %1756 = vmatpush1.bf16.xpose.msra.mxu0 0
    %1757 = vmatprep.subr.bf16.mxu0 0
    %1758 = vmatpush1.bf16.xpose.msra.mxu0 0
    %1759 = vmatprep.subr.bf16.mxu0 0
    %1760 = vmatpush1.bf16.xpose.msra.mxu0 0
    %1761 = vmatprep.mubr.bf16.mxu0 0
    %1762 = vmatmul.mubr.bf16.gmra.mrb[0].mxu0 %v1724
    %v1763 = vpop.f32.mrb[0].mxu0
    %v1764 = vadd.f32 0.0, %v1763
    %v1765 = vpop.f32.mrb[0].mxu0
    %v1766 = vpop.f32.mrb[0].mxu0
    %v1767 = vadd.f32 0.0, %v1766
    %v1768 = vpop.f32.mrb[0].mxu0
    %1769 = vdwg.mxu0
    %v1770 = vmul.f32 %v1764, 0.35355338
    %v1771 = vmul.f32 %v1767, 0.35355338
    %v1772 = vadd.f32 %v1770, %v59
    %v1773 = vadd.f32 %v1771, %v60
    %v1774 = vsel %vm234, %v1772, -inf
    %1775 = vmax.xlane.f32.xlu0 %v1774
    %v1776 = vpop.xlane.xlu0 %1775
    %v1777 = vsel %vm234, %v1773, -inf
    %1778 = vmax.xlane.f32.xlu0 %v1777
    %v1779 = vpop.xlane.xlu0 %1778
    %v1780 = vsub.f32 %v1772, %v1776
    %v1781 = vsub.f32 %v1773, %v1779
    %v1782 = vmul.f32 %v1780, 1.442695
    %v1783 = vpow.pop %v1782
    %v1784 = vmul.f32 %v1781, 1.442695
    %v1785 = vpow.pop %v1784
    %v1786 = vsel %vm234, %v1783, 0.0
    %1787 = vadd.xlane.f32.xlu0 %v1786
    %v1788 = vpop.xlane.xlu0 %1787
    %v1789 = vsel %vm234, %v1785, 0.0
    %1790 = vadd.xlane.f32.xlu0 %v1789
    %v1791 = vpop.xlane.xlu0 %1790
    %v1792 = vrcp.pop %v1788
    %v1793 = vrcp.pop %v1791
    %v1794 = vmul.f32 %v1783, %v1792
    %v1795 = vmul.f32 %v1785, %v1793
    %v1796 = vpack.c.bf16 %v1795, %v1794
    %1798 = vrot.lane.b32.xlu0 %v1719, 64
    %v1799 = vpop.permute.xlu0 %1798
    %v1802 = vsel %vm234, %v1796, 0
    %1804 = vmatprep.subr.bf16.mxu0 0
    %1805 = vmatpush1.bf16.msra.mxu0 %v1799
    %1806 = vmatprep.subr.bf16.mxu0 0
    %1807 = vmatpush1.bf16.msra.mxu0 0
    %1808 = vmatprep.subr.bf16.mxu0 0
    %1809 = vmatpush1.bf16.msra.mxu0 0
    %1810 = vmatprep.subr.bf16.mxu0 0
    %1811 = vmatpush1.bf16.msra.mxu0 0
    %1812 = vmatprep.subr.bf16.mxu0 0
    %1813 = vmatpush1.bf16.msra.mxu0 0
    %1814 = vmatprep.subr.bf16.mxu0 0
    %1815 = vmatpush1.bf16.msra.mxu0 0
    %1816 = vmatprep.subr.bf16.mxu0 0
    %1817 = vmatpush1.bf16.msra.mxu0 0
    %1818 = vmatprep.subr.bf16.mxu0 0
    %1819 = vmatpush1.bf16.msra.mxu0 0
    %1820 = vmatprep.subr.bf16.mxu0 0
    %1821 = vmatpush1.bf16.msra.mxu0 0
    %1822 = vmatprep.subr.bf16.mxu0 0
    %1823 = vmatpush1.bf16.msra.mxu0 0
    %1824 = vmatprep.subr.bf16.mxu0 0
    %1825 = vmatpush1.bf16.msra.mxu0 0
    %1826 = vmatprep.subr.bf16.mxu0 0
    %1827 = vmatpush1.bf16.msra.mxu0 0
    %1828 = vmatprep.subr.bf16.mxu0 0
    %1829 = vmatpush1.bf16.msra.mxu0 0
    %1830 = vmatprep.subr.bf16.mxu0 0
    %1831 = vmatpush1.bf16.msra.mxu0 0
    %1832 = vmatprep.subr.bf16.mxu0 0
    %1833 = vmatpush1.bf16.msra.mxu0 0
    %1834 = vmatprep.subr.bf16.mxu0 0
    %1835 = vmatpush1.bf16.msra.mxu0 0
    %1836 = vmatprep.mubr.bf16.mxu0 0
    %1837 = vmatmul.mubr.bf16.gmra.mrb[0].mxu0 %v1802
    %v1838 = vpop.f32.mrb[0].mxu0
    %v1839 = vadd.f32 0.0, %v1838
    %v1840 = vpop.f32.mrb[0].mxu0
    %v1841 = vpop.f32.mrb[0].mxu0
    %v1842 = vadd.f32 0.0, %v1841
    %v1843 = vpop.f32.mrb[0].mxu0
    %1844 = vdwg.mxu0
    %1845 = vrot.lane.b32.xlu0 %v1706, 120
    %v1846 = vpop.permute.xlu0 %1845
    %1847 = vrot.lane.b32.xlu0 %v1706, 88
    %v1848 = vpop.permute.xlu0 %1847
    %v1850 = vsel %vm182, %v1846, 0
    %v1853 = vsel %vm182, %v1848, 0
    %1855 = vmatprep.subr.bf16.mxu0 0
    %1856 = vmatpush1.bf16.xpose.msra.mxu0 %v1853
    %1857 = vmatprep.subr.bf16.mxu0 0
    %1858 = vmatpush1.bf16.xpose.msra.mxu0 0
    %1859 = vmatprep.subr.bf16.mxu0 0
    %1860 = vmatpush1.bf16.xpose.msra.mxu0 0
    %1861 = vmatprep.subr.bf16.mxu0 0
    %1862 = vmatpush1.bf16.xpose.msra.mxu0 0
    %1863 = vmatprep.subr.bf16.mxu0 0
    %1864 = vmatpush1.bf16.xpose.msra.mxu0 0
    %1865 = vmatprep.subr.bf16.mxu0 0
    %1866 = vmatpush1.bf16.xpose.msra.mxu0 0
    %1867 = vmatprep.subr.bf16.mxu0 0
    %1868 = vmatpush1.bf16.xpose.msra.mxu0 0
    %1869 = vmatprep.subr.bf16.mxu0 0
    %1870 = vmatpush1.bf16.xpose.msra.mxu0 0
    %1871 = vmatprep.subr.bf16.mxu0 0
    %1872 = vmatpush1.bf16.xpose.msra.mxu0 0
    %1873 = vmatprep.subr.bf16.mxu0 0
    %1874 = vmatpush1.bf16.xpose.msra.mxu0 0
    %1875 = vmatprep.subr.bf16.mxu0 0
    %1876 = vmatpush1.bf16.xpose.msra.mxu0 0
    %1877 = vmatprep.subr.bf16.mxu0 0
    %1878 = vmatpush1.bf16.xpose.msra.mxu0 0
    %1879 = vmatprep.subr.bf16.mxu0 0
    %1880 = vmatpush1.bf16.xpose.msra.mxu0 0
    %1881 = vmatprep.subr.bf16.mxu0 0
    %1882 = vmatpush1.bf16.xpose.msra.mxu0 0
    %1883 = vmatprep.subr.bf16.mxu0 0
    %1884 = vmatpush1.bf16.xpose.msra.mxu0 0
    %1885 = vmatprep.subr.bf16.mxu0 0
    %1886 = vmatpush1.bf16.xpose.msra.mxu0 0
    %1887 = vmatprep.mubr.bf16.mxu0 0
    %1888 = vmatmul.mubr.bf16.gmra.mrb[0].mxu0 %v1850
    %v1889 = vpop.f32.mrb[0].mxu0
    %v1890 = vadd.f32 0.0, %v1889
    %v1891 = vpop.f32.mrb[0].mxu0
    %v1892 = vpop.f32.mrb[0].mxu0
    %v1893 = vadd.f32 0.0, %v1892
    %v1894 = vpop.f32.mrb[0].mxu0
    %1895 = vdwg.mxu0
    %v1896 = vmul.f32 %v1890, 0.35355338
    %v1897 = vmul.f32 %v1893, 0.35355338
    %v1898 = vadd.f32 %v1896, %v59
    %v1899 = vadd.f32 %v1897, %v60
    %v1900 = vsel %vm234, %v1898, -inf
    %1901 = vmax.xlane.f32.xlu0 %v1900
    %v1902 = vpop.xlane.xlu0 %1901
    %v1903 = vsel %vm234, %v1899, -inf
    %1904 = vmax.xlane.f32.xlu0 %v1903
    %v1905 = vpop.xlane.xlu0 %1904
    %v1906 = vsub.f32 %v1898, %v1902
    %v1907 = vsub.f32 %v1899, %v1905
    %v1908 = vmul.f32 %v1906, 1.442695
    %v1909 = vpow.pop %v1908
    %v1910 = vmul.f32 %v1907, 1.442695
    %v1911 = vpow.pop %v1910
    %v1912 = vsel %vm234, %v1909, 0.0
    %1913 = vadd.xlane.f32.xlu0 %v1912
    %v1914 = vpop.xlane.xlu0 %1913
    %v1915 = vsel %vm234, %v1911, 0.0
    %1916 = vadd.xlane.f32.xlu0 %v1915
    %v1917 = vpop.xlane.xlu0 %1916
    %v1918 = vrcp.pop %v1914
    %v1919 = vrcp.pop %v1917
    %v1920 = vmul.f32 %v1909, %v1918
    %v1921 = vmul.f32 %v1911, %v1919
    %v1922 = vpack.c.bf16 %v1921, %v1920
    %1923 = vrot.lane.b32.xlu0 %v1719, 56
    %v1924 = vpop.permute.xlu0 %1923
    %v1927 = vsel %vm234, %v1922, 0
    %1929 = vmatprep.subr.bf16.mxu0 0
    %1930 = vmatpush1.bf16.msra.mxu0 %v1924
    %1931 = vmatprep.subr.bf16.mxu0 0
    %1932 = vmatpush1.bf16.msra.mxu0 0
    %1933 = vmatprep.subr.bf16.mxu0 0
    %1934 = vmatpush1.bf16.msra.mxu0 0
    %1935 = vmatprep.subr.bf16.mxu0 0
    %1936 = vmatpush1.bf16.msra.mxu0 0
    %1937 = vmatprep.subr.bf16.mxu0 0
    %1938 = vmatpush1.bf16.msra.mxu0 0
    %1939 = vmatprep.subr.bf16.mxu0 0
    %1940 = vmatpush1.bf16.msra.mxu0 0
    %1941 = vmatprep.subr.bf16.mxu0 0
    %1942 = vmatpush1.bf16.msra.mxu0 0
    %1943 = vmatprep.subr.bf16.mxu0 0
    %1944 = vmatpush1.bf16.msra.mxu0 0
    %1945 = vmatprep.subr.bf16.mxu0 0
    %1946 = vmatpush1.bf16.msra.mxu0 0
    %1947 = vmatprep.subr.bf16.mxu0 0
    %1948 = vmatpush1.bf16.msra.mxu0 0
    %1949 = vmatprep.subr.bf16.mxu0 0
    %1950 = vmatpush1.bf16.msra.mxu0 0
    %1951 = vmatprep.subr.bf16.mxu0 0
    %1952 = vmatpush1.bf16.msra.mxu0 0
    %1953 = vmatprep.subr.bf16.mxu0 0
    %1954 = vmatpush1.bf16.msra.mxu0 0
    %1955 = vmatprep.subr.bf16.mxu0 0
    %1956 = vmatpush1.bf16.msra.mxu0 0
    %1957 = vmatprep.subr.bf16.mxu0 0
    %1958 = vmatpush1.bf16.msra.mxu0 0
    %1959 = vmatprep.subr.bf16.mxu0 0
    %1960 = vmatpush1.bf16.msra.mxu0 0
    %1961 = vmatprep.mubr.bf16.mxu0 0
    %1962 = vmatmul.mubr.bf16.gmra.mrb[0].mxu0 %v1927
    %v1963 = vpop.f32.mrb[0].mxu0
    %v1964 = vadd.f32 0.0, %v1963
    %v1965 = vpop.f32.mrb[0].mxu0
    %v1966 = vpop.f32.mrb[0].mxu0
    %v1967 = vadd.f32 0.0, %v1966
    %v1968 = vpop.f32.mrb[0].mxu0
    %1969 = vdwg.mxu0
    %1970 = vrot.lane.b32.xlu0 %v1706, 112
    %v1971 = vpop.permute.xlu0 %1970
    %1972 = vrot.lane.b32.xlu0 %v1706, 80
    %v1973 = vpop.permute.xlu0 %1972
    %v1975 = vsel %vm182, %v1971, 0
    %v1978 = vsel %vm182, %v1973, 0
    %1980 = vmatprep.subr.bf16.mxu0 0
    %1981 = vmatpush1.bf16.xpose.msra.mxu0 %v1978
    %1982 = vmatprep.subr.bf16.mxu0 0
    %1983 = vmatpush1.bf16.xpose.msra.mxu0 0
    %1984 = vmatprep.subr.bf16.mxu0 0
    %1985 = vmatpush1.bf16.xpose.msra.mxu0 0
    %1986 = vmatprep.subr.bf16.mxu0 0
    %1987 = vmatpush1.bf16.xpose.msra.mxu0 0
    %1988 = vmatprep.subr.bf16.mxu0 0
    %1989 = vmatpush1.bf16.xpose.msra.mxu0 0
    %1990 = vmatprep.subr.bf16.mxu0 0
    %1991 = vmatpush1.bf16.xpose.msra.mxu0 0
    %1992 = vmatprep.subr.bf16.mxu0 0
    %1993 = vmatpush1.bf16.xpose.msra.mxu0 0
    %1994 = vmatprep.subr.bf16.mxu0 0
    %1995 = vmatpush1.bf16.xpose.msra.mxu0 0
    %1996 = vmatprep.subr.bf16.mxu0 0
    %1997 = vmatpush1.bf16.xpose.msra.mxu0 0
    %1998 = vmatprep.subr.bf16.mxu0 0
    %1999 = vmatpush1.bf16.xpose.msra.mxu0 0
    %2000 = vmatprep.subr.bf16.mxu0 0
    %2001 = vmatpush1.bf16.xpose.msra.mxu0 0
    %2002 = vmatprep.subr.bf16.mxu0 0
    %2003 = vmatpush1.bf16.xpose.msra.mxu0 0
    %2004 = vmatprep.subr.bf16.mxu0 0
    %2005 = vmatpush1.bf16.xpose.msra.mxu0 0
    %2006 = vmatprep.subr.bf16.mxu0 0
    %2007 = vmatpush1.bf16.xpose.msra.mxu0 0
    %2008 = vmatprep.subr.bf16.mxu0 0
    %2009 = vmatpush1.bf16.xpose.msra.mxu0 0
    %2010 = vmatprep.subr.bf16.mxu0 0
    %2011 = vmatpush1.bf16.xpose.msra.mxu0 0
    %2012 = vmatprep.mubr.bf16.mxu0 0
    %2013 = vmatmul.mubr.bf16.gmra.mrb[0].mxu0 %v1975
    %v2014 = vpop.f32.mrb[0].mxu0
    %v2015 = vadd.f32 0.0, %v2014
    %v2016 = vpop.f32.mrb[0].mxu0
    %v2017 = vpop.f32.mrb[0].mxu0
    %v2018 = vadd.f32 0.0, %v2017
    %v2019 = vpop.f32.mrb[0].mxu0
    %2020 = vdwg.mxu0
    %v2021 = vmul.f32 %v2015, 0.35355338
    %v2022 = vmul.f32 %v2018, 0.35355338
    %v2023 = vadd.f32 %v2021, %v59
    %v2024 = vadd.f32 %v2022, %v60
    %v2025 = vsel %vm234, %v2023, -inf
    %2026 = vmax.xlane.f32.xlu0 %v2025
    %v2027 = vpop.xlane.xlu0 %2026
    %v2028 = vsel %vm234, %v2024, -inf
    %2029 = vmax.xlane.f32.xlu0 %v2028
    %v2030 = vpop.xlane.xlu0 %2029
    %v2031 = vsub.f32 %v2023, %v2027
    %v2032 = vsub.f32 %v2024, %v2030
    %v2033 = vmul.f32 %v2031, 1.442695
    %v2034 = vpow.pop %v2033
    %v2035 = vmul.f32 %v2032, 1.442695
    %v2036 = vpow.pop %v2035
    %v2037 = vsel %vm234, %v2034, 0.0
    %2038 = vadd.xlane.f32.xlu0 %v2037
    %v2039 = vpop.xlane.xlu0 %2038
    %v2040 = vsel %vm234, %v2036, 0.0
    %2041 = vadd.xlane.f32.xlu0 %v2040
    %v2042 = vpop.xlane.xlu0 %2041
    %v2043 = vrcp.pop %v2039
    %v2044 = vrcp.pop %v2042
    %v2045 = vmul.f32 %v2034, %v2043
    %v2046 = vmul.f32 %v2036, %v2044
    %v2047 = vpack.c.bf16 %v2046, %v2045
    %2048 = vrot.lane.b32.xlu0 %v1719, 48
    %v2049 = vpop.permute.xlu0 %2048
    %v2052 = vsel %vm234, %v2047, 0
    %2054 = vmatprep.subr.bf16.mxu0 0
    %2055 = vmatpush1.bf16.msra.mxu0 %v2049
    %2056 = vmatprep.subr.bf16.mxu0 0
    %2057 = vmatpush1.bf16.msra.mxu0 0
    %2058 = vmatprep.subr.bf16.mxu0 0
    %2059 = vmatpush1.bf16.msra.mxu0 0
    %2060 = vmatprep.subr.bf16.mxu0 0
    %2061 = vmatpush1.bf16.msra.mxu0 0
    %2062 = vmatprep.subr.bf16.mxu0 0
    %2063 = vmatpush1.bf16.msra.mxu0 0
    %2064 = vmatprep.subr.bf16.mxu0 0
    %2065 = vmatpush1.bf16.msra.mxu0 0
    %2066 = vmatprep.subr.bf16.mxu0 0
    %2067 = vmatpush1.bf16.msra.mxu0 0
    %2068 = vmatprep.subr.bf16.mxu0 0
    %2069 = vmatpush1.bf16.msra.mxu0 0
    %2070 = vmatprep.subr.bf16.mxu0 0
    %2071 = vmatpush1.bf16.msra.mxu0 0
    %2072 = vmatprep.subr.bf16.mxu0 0
    %2073 = vmatpush1.bf16.msra.mxu0 0
    %2074 = vmatprep.subr.bf16.mxu0 0
    %2075 = vmatpush1.bf16.msra.mxu0 0
    %2076 = vmatprep.subr.bf16.mxu0 0
    %2077 = vmatpush1.bf16.msra.mxu0 0
    %2078 = vmatprep.subr.bf16.mxu0 0
    %2079 = vmatpush1.bf16.msra.mxu0 0
    %2080 = vmatprep.subr.bf16.mxu0 0
    %2081 = vmatpush1.bf16.msra.mxu0 0
    %2082 = vmatprep.subr.bf16.mxu0 0
    %2083 = vmatpush1.bf16.msra.mxu0 0
    %2084 = vmatprep.subr.bf16.mxu0 0
    %2085 = vmatpush1.bf16.msra.mxu0 0
    %2086 = vmatprep.mubr.bf16.mxu0 0
    %2087 = vmatmul.mubr.bf16.gmra.mrb[0].mxu0 %v2052
    %v2088 = vpop.f32.mrb[0].mxu0
    %v2089 = vadd.f32 0.0, %v2088
    %v2090 = vpop.f32.mrb[0].mxu0
    %v2091 = vpop.f32.mrb[0].mxu0
    %v2092 = vadd.f32 0.0, %v2091
    %v2093 = vpop.f32.mrb[0].mxu0
    %2094 = vdwg.mxu0
    %2095 = vrot.lane.b32.xlu0 %v1706, 104
    %v2096 = vpop.permute.xlu0 %2095
    %2097 = vrot.lane.b32.xlu0 %v1706, 72
    %v2098 = vpop.permute.xlu0 %2097
    %v2100 = vsel %vm182, %v2096, 0
    %v2103 = vsel %vm182, %v2098, 0
    %2105 = vmatprep.subr.bf16.mxu0 0
    %2106 = vmatpush1.bf16.xpose.msra.mxu0 %v2103
    %2107 = vmatprep.subr.bf16.mxu0 0
    %2108 = vmatpush1.bf16.xpose.msra.mxu0 0
    %2109 = vmatprep.subr.bf16.mxu0 0
    %2110 = vmatpush1.bf16.xpose.msra.mxu0 0
    %2111 = vmatprep.subr.bf16.mxu0 0
    %2112 = vmatpush1.bf16.xpose.msra.mxu0 0
    %2113 = vmatprep.subr.bf16.mxu0 0
    %2114 = vmatpush1.bf16.xpose.msra.mxu0 0
    %2115 = vmatprep.subr.bf16.mxu0 0
    %2116 = vmatpush1.bf16.xpose.msra.mxu0 0
    %2117 = vmatprep.subr.bf16.mxu0 0
    %2118 = vmatpush1.bf16.xpose.msra.mxu0 0
    %2119 = vmatprep.subr.bf16.mxu0 0
    %2120 = vmatpush1.bf16.xpose.msra.mxu0 0
    %2121 = vmatprep.subr.bf16.mxu0 0
    %2122 = vmatpush1.bf16.xpose.msra.mxu0 0
    %2123 = vmatprep.subr.bf16.mxu0 0
    %2124 = vmatpush1.bf16.xpose.msra.mxu0 0
    %2125 = vmatprep.subr.bf16.mxu0 0
    %2126 = vmatpush1.bf16.xpose.msra.mxu0 0
    %2127 = vmatprep.subr.bf16.mxu0 0
    %2128 = vmatpush1.bf16.xpose.msra.mxu0 0
    %2129 = vmatprep.subr.bf16.mxu0 0
    %2130 = vmatpush1.bf16.xpose.msra.mxu0 0
    %2131 = vmatprep.subr.bf16.mxu0 0
    %2132 = vmatpush1.bf16.xpose.msra.mxu0 0
    %2133 = vmatprep.subr.bf16.mxu0 0
    %2134 = vmatpush1.bf16.xpose.msra.mxu0 0
    %2135 = vmatprep.subr.bf16.mxu0 0
    %2136 = vmatpush1.bf16.xpose.msra.mxu0 0
    %2137 = vmatprep.mubr.bf16.mxu0 0
    %2138 = vmatmul.mubr.bf16.gmra.mrb[0].mxu0 %v2100
    %v2139 = vpop.f32.mrb[0].mxu0
    %v2140 = vadd.f32 0.0, %v2139
    %v2141 = vpop.f32.mrb[0].mxu0
    %v2142 = vpop.f32.mrb[0].mxu0
    %v2143 = vadd.f32 0.0, %v2142
    %v2144 = vpop.f32.mrb[0].mxu0
    %2145 = vdwg.mxu0
    %v2146 = vmul.f32 %v2140, 0.35355338
    %v2147 = vmul.f32 %v2143, 0.35355338
    %v2148 = vadd.f32 %v2146, %v59
    %v2149 = vadd.f32 %v2147, %v60
    %v2150 = vsel %vm234, %v2148, -inf
    %2151 = vmax.xlane.f32.xlu0 %v2150
    %v2152 = vpop.xlane.xlu0 %2151
    %v2153 = vsel %vm234, %v2149, -inf
    %2154 = vmax.xlane.f32.xlu0 %v2153
    %v2155 = vpop.xlane.xlu0 %2154
    %v2156 = vsub.f32 %v2148, %v2152
    %v2157 = vsub.f32 %v2149, %v2155
    %v2158 = vmul.f32 %v2156, 1.442695
    %v2159 = vpow.pop %v2158
    %v2160 = vmul.f32 %v2157, 1.442695
    %v2161 = vpow.pop %v2160
    %v2162 = vsel %vm234, %v2159, 0.0
    %2163 = vadd.xlane.f32.xlu0 %v2162
    %v2164 = vpop.xlane.xlu0 %2163
    %v2165 = vsel %vm234, %v2161, 0.0
    %2166 = vadd.xlane.f32.xlu0 %v2165
    %v2167 = vpop.xlane.xlu0 %2166
    %v2168 = vrcp.pop %v2164
    %v2169 = vrcp.pop %v2167
    %v2170 = vmul.f32 %v2159, %v2168
    %v2171 = vmul.f32 %v2161, %v2169
    %v2172 = vpack.c.bf16 %v2171, %v2170
    %2173 = vrot.lane.b32.xlu0 %v1719, 40
    %v2174 = vpop.permute.xlu0 %2173
    %v2177 = vsel %vm234, %v2172, 0
    %2179 = vmatprep.subr.bf16.mxu0 0
    %2180 = vmatpush1.bf16.msra.mxu0 %v2174
    %2181 = vmatprep.subr.bf16.mxu0 0
    %2182 = vmatpush1.bf16.msra.mxu0 0
    %2183 = vmatprep.subr.bf16.mxu0 0
    %2184 = vmatpush1.bf16.msra.mxu0 0
    %2185 = vmatprep.subr.bf16.mxu0 0
    %2186 = vmatpush1.bf16.msra.mxu0 0
    %2187 = vmatprep.subr.bf16.mxu0 0
    %2188 = vmatpush1.bf16.msra.mxu0 0
    %2189 = vmatprep.subr.bf16.mxu0 0
    %2190 = vmatpush1.bf16.msra.mxu0 0
    %2191 = vmatprep.subr.bf16.mxu0 0
    %2192 = vmatpush1.bf16.msra.mxu0 0
    %2193 = vmatprep.subr.bf16.mxu0 0
    %2194 = vmatpush1.bf16.msra.mxu0 0
    %2195 = vmatprep.subr.bf16.mxu0 0
    %2196 = vmatpush1.bf16.msra.mxu0 0
    %2197 = vmatprep.subr.bf16.mxu0 0
    %2198 = vmatpush1.bf16.msra.mxu0 0
    %2199 = vmatprep.subr.bf16.mxu0 0
    %2200 = vmatpush1.bf16.msra.mxu0 0
    %2201 = vmatprep.subr.bf16.mxu0 0
    %2202 = vmatpush1.bf16.msra.mxu0 0
    %2203 = vmatprep.subr.bf16.mxu0 0
    %2204 = vmatpush1.bf16.msra.mxu0 0
    %2205 = vmatprep.subr.bf16.mxu0 0
    %2206 = vmatpush1.bf16.msra.mxu0 0
    %2207 = vmatprep.subr.bf16.mxu0 0
    %2208 = vmatpush1.bf16.msra.mxu0 0
    %2209 = vmatprep.subr.bf16.mxu0 0
    %2210 = vmatpush1.bf16.msra.mxu0 0
    %2211 = vmatprep.mubr.bf16.mxu0 0
    %2212 = vmatmul.mubr.bf16.gmra.mrb[0].mxu0 %v2177
    %v2213 = vpop.f32.mrb[0].mxu0
    %v2214 = vadd.f32 0.0, %v2213
    %v2215 = vpop.f32.mrb[0].mxu0
    %v2216 = vpop.f32.mrb[0].mxu0
    %v2217 = vadd.f32 0.0, %v2216
    %v2218 = vpop.f32.mrb[0].mxu0
    %2219 = vdwg.mxu0
    %2221 = vrot.lane.b32.xlu0 %v1709, 96
    %v2222 = vpop.permute.xlu0 %2221
    %v2224 = vsel %vm182, %v1709, 0
    %v2227 = vsel %vm182, %v2222, 0
    %2229 = vmatprep.subr.bf16.mxu0 0
    %2230 = vmatpush1.bf16.xpose.msra.mxu0 %v2227
    %2231 = vmatprep.subr.bf16.mxu0 0
    %2232 = vmatpush1.bf16.xpose.msra.mxu0 0
    %2233 = vmatprep.subr.bf16.mxu0 0
    %2234 = vmatpush1.bf16.xpose.msra.mxu0 0
    %2235 = vmatprep.subr.bf16.mxu0 0
    %2236 = vmatpush1.bf16.xpose.msra.mxu0 0
    %2237 = vmatprep.subr.bf16.mxu0 0
    %2238 = vmatpush1.bf16.xpose.msra.mxu0 0
    %2239 = vmatprep.subr.bf16.mxu0 0
    %2240 = vmatpush1.bf16.xpose.msra.mxu0 0
    %2241 = vmatprep.subr.bf16.mxu0 0
    %2242 = vmatpush1.bf16.xpose.msra.mxu0 0
    %2243 = vmatprep.subr.bf16.mxu0 0
    %2244 = vmatpush1.bf16.xpose.msra.mxu0 0
    %2245 = vmatprep.subr.bf16.mxu0 0
    %2246 = vmatpush1.bf16.xpose.msra.mxu0 0
    %2247 = vmatprep.subr.bf16.mxu0 0
    %2248 = vmatpush1.bf16.xpose.msra.mxu0 0
    %2249 = vmatprep.subr.bf16.mxu0 0
    %2250 = vmatpush1.bf16.xpose.msra.mxu0 0
    %2251 = vmatprep.subr.bf16.mxu0 0
    %2252 = vmatpush1.bf16.xpose.msra.mxu0 0
    %2253 = vmatprep.subr.bf16.mxu0 0
    %2254 = vmatpush1.bf16.xpose.msra.mxu0 0
    %2255 = vmatprep.subr.bf16.mxu0 0
    %2256 = vmatpush1.bf16.xpose.msra.mxu0 0
    %2257 = vmatprep.subr.bf16.mxu0 0
    %2258 = vmatpush1.bf16.xpose.msra.mxu0 0
    %2259 = vmatprep.subr.bf16.mxu0 0
    %2260 = vmatpush1.bf16.xpose.msra.mxu0 0
    %2261 = vmatprep.mubr.bf16.mxu0 0
    %2262 = vmatmul.mubr.bf16.gmra.mrb[0].mxu0 %v2224
    %v2263 = vpop.f32.mrb[0].mxu0
    %v2264 = vadd.f32 0.0, %v2263
    %v2265 = vpop.f32.mrb[0].mxu0
    %v2266 = vpop.f32.mrb[0].mxu0
    %v2267 = vadd.f32 0.0, %v2266
    %v2268 = vpop.f32.mrb[0].mxu0
    %2269 = vdwg.mxu0
    %v2270 = vmul.f32 %v2264, 0.35355338
    %v2271 = vmul.f32 %v2267, 0.35355338
    %v2272 = vadd.f32 %v2270, %v59
    %v2273 = vadd.f32 %v2271, %v60
    %v2274 = vsel %vm234, %v2272, -inf
    %2275 = vmax.xlane.f32.xlu0 %v2274
    %v2276 = vpop.xlane.xlu0 %2275
    %v2277 = vsel %vm234, %v2273, -inf
    %2278 = vmax.xlane.f32.xlu0 %v2277
    %v2279 = vpop.xlane.xlu0 %2278
    %v2280 = vsub.f32 %v2272, %v2276
    %v2281 = vsub.f32 %v2273, %v2279
    %v2282 = vmul.f32 %v2280, 1.442695
    %v2283 = vpow.pop %v2282
    %v2284 = vmul.f32 %v2281, 1.442695
    %v2285 = vpow.pop %v2284
    %v2286 = vsel %vm234, %v2283, 0.0
    %2287 = vadd.xlane.f32.xlu0 %v2286
    %v2288 = vpop.xlane.xlu0 %2287
    %v2289 = vsel %vm234, %v2285, 0.0
    %2290 = vadd.xlane.f32.xlu0 %v2289
    %v2291 = vpop.xlane.xlu0 %2290
    %v2292 = vrcp.pop %v2288
    %v2293 = vrcp.pop %v2291
    %v2294 = vmul.f32 %v2283, %v2292
    %v2295 = vmul.f32 %v2285, %v2293
    %v2296 = vpack.c.bf16 %v2295, %v2294
    %2297 = vrot.lane.b32.xlu0 %v1709, 64
    %v2298 = vpop.permute.xlu0 %2297
    %v2301 = vsel %vm234, %v2296, 0
    %2303 = vmatprep.subr.bf16.mxu0 0
    %2304 = vmatpush1.bf16.msra.mxu0 %v2298
    %2305 = vmatprep.subr.bf16.mxu0 0
    %2306 = vmatpush1.bf16.msra.mxu0 0
    %2307 = vmatprep.subr.bf16.mxu0 0
    %2308 = vmatpush1.bf16.msra.mxu0 0
    %2309 = vmatprep.subr.bf16.mxu0 0
    %2310 = vmatpush1.bf16.msra.mxu0 0
    %2311 = vmatprep.subr.bf16.mxu0 0
    %2312 = vmatpush1.bf16.msra.mxu0 0
    %2313 = vmatprep.subr.bf16.mxu0 0
    %2314 = vmatpush1.bf16.msra.mxu0 0
    %2315 = vmatprep.subr.bf16.mxu0 0
    %2316 = vmatpush1.bf16.msra.mxu0 0
    %2317 = vmatprep.subr.bf16.mxu0 0
    %2318 = vmatpush1.bf16.msra.mxu0 0
    %2319 = vmatprep.subr.bf16.mxu0 0
    %2320 = vmatpush1.bf16.msra.mxu0 0
    %2321 = vmatprep.subr.bf16.mxu0 0
    %2322 = vmatpush1.bf16.msra.mxu0 0
    %2323 = vmatprep.subr.bf16.mxu0 0
    %2324 = vmatpush1.bf16.msra.mxu0 0
    %2325 = vmatprep.subr.bf16.mxu0 0
    %2326 = vmatpush1.bf16.msra.mxu0 0
    %2327 = vmatprep.subr.bf16.mxu0 0
    %2328 = vmatpush1.bf16.msra.mxu0 0
    %2329 = vmatprep.subr.bf16.mxu0 0
    %2330 = vmatpush1.bf16.msra.mxu0 0
    %2331 = vmatprep.subr.bf16.mxu0 0
    %2332 = vmatpush1.bf16.msra.mxu0 0
    %2333 = vmatprep.subr.bf16.mxu0 0
    %2334 = vmatpush1.bf16.msra.mxu0 0
    %2335 = vmatprep.mubr.bf16.mxu0 0
    %2336 = vmatmul.mubr.bf16.gmra.mrb[0].mxu0 %v2301
    %v2337 = vpop.f32.mrb[0].mxu0
    %v2338 = vadd.f32 0.0, %v2337
    %v2339 = vpop.f32.mrb[0].mxu0
    %v2340 = vpop.f32.mrb[0].mxu0
    %v2341 = vadd.f32 0.0, %v2340
    %v2342 = vpop.f32.mrb[0].mxu0
    %2343 = vdwg.mxu0
    %2344 = vrot.lane.b32.xlu0 %v1709, 120
    %v2345 = vpop.permute.xlu0 %2344
    %2346 = vrot.lane.b32.xlu0 %v1709, 88
    %v2347 = vpop.permute.xlu0 %2346
    %v2349 = vsel %vm182, %v2345, 0
    %v2352 = vsel %vm182, %v2347, 0
    %2354 = vmatprep.subr.bf16.mxu0 0
    %2355 = vmatpush1.bf16.xpose.msra.mxu0 %v2352
    %2356 = vmatprep.subr.bf16.mxu0 0
    %2357 = vmatpush1.bf16.xpose.msra.mxu0 0
    %2358 = vmatprep.subr.bf16.mxu0 0
    %2359 = vmatpush1.bf16.xpose.msra.mxu0 0
    %2360 = vmatprep.subr.bf16.mxu0 0
    %2361 = vmatpush1.bf16.xpose.msra.mxu0 0
    %2362 = vmatprep.subr.bf16.mxu0 0
    %2363 = vmatpush1.bf16.xpose.msra.mxu0 0
    %2364 = vmatprep.subr.bf16.mxu0 0
    %2365 = vmatpush1.bf16.xpose.msra.mxu0 0
    %2366 = vmatprep.subr.bf16.mxu0 0
    %2367 = vmatpush1.bf16.xpose.msra.mxu0 0
    %2368 = vmatprep.subr.bf16.mxu0 0
    %2369 = vmatpush1.bf16.xpose.msra.mxu0 0
    %2370 = vmatprep.subr.bf16.mxu0 0
    %2371 = vmatpush1.bf16.xpose.msra.mxu0 0
    %2372 = vmatprep.subr.bf16.mxu0 0
    %2373 = vmatpush1.bf16.xpose.msra.mxu0 0
    %2374 = vmatprep.subr.bf16.mxu0 0
    %2375 = vmatpush1.bf16.xpose.msra.mxu0 0
    %2376 = vmatprep.subr.bf16.mxu0 0
    %2377 = vmatpush1.bf16.xpose.msra.mxu0 0
    %2378 = vmatprep.subr.bf16.mxu0 0
    %2379 = vmatpush1.bf16.xpose.msra.mxu0 0
    %2380 = vmatprep.subr.bf16.mxu0 0
    %2381 = vmatpush1.bf16.xpose.msra.mxu0 0
    %2382 = vmatprep.subr.bf16.mxu0 0
    %2383 = vmatpush1.bf16.xpose.msra.mxu0 0
    %2384 = vmatprep.subr.bf16.mxu0 0
    %2385 = vmatpush1.bf16.xpose.msra.mxu0 0
    %2386 = vmatprep.mubr.bf16.mxu0 0
    %2387 = vmatmul.mubr.bf16.gmra.mrb[0].mxu0 %v2349
    %v2388 = vpop.f32.mrb[0].mxu0
    %v2389 = vadd.f32 0.0, %v2388
    %v2390 = vpop.f32.mrb[0].mxu0
    %v2391 = vpop.f32.mrb[0].mxu0
    %v2392 = vadd.f32 0.0, %v2391
    %v2393 = vpop.f32.mrb[0].mxu0
    %2394 = vdwg.mxu0
    %v2395 = vmul.f32 %v2389, 0.35355338
    %v2396 = vmul.f32 %v2392, 0.35355338
    %v2397 = vadd.f32 %v2395, %v59
    %v2398 = vadd.f32 %v2396, %v60
    %v2399 = vsel %vm234, %v2397, -inf
    %2400 = vmax.xlane.f32.xlu0 %v2399
    %v2401 = vpop.xlane.xlu0 %2400
    %v2402 = vsel %vm234, %v2398, -inf
    %2403 = vmax.xlane.f32.xlu0 %v2402
    %v2404 = vpop.xlane.xlu0 %2403
    %v2405 = vsub.f32 %v2397, %v2401
    %v2406 = vsub.f32 %v2398, %v2404
    %v2407 = vmul.f32 %v2405, 1.442695
    %v2408 = vpow.pop %v2407
    %v2409 = vmul.f32 %v2406, 1.442695
    %v2410 = vpow.pop %v2409
    %v2411 = vsel %vm234, %v2408, 0.0
    %2412 = vadd.xlane.f32.xlu0 %v2411
    %v2413 = vpop.xlane.xlu0 %2412
    %v2414 = vsel %vm234, %v2410, 0.0
    %2415 = vadd.xlane.f32.xlu0 %v2414
    %v2416 = vpop.xlane.xlu0 %2415
    %v2417 = vrcp.pop %v2413
    %v2418 = vrcp.pop %v2416
    %v2419 = vmul.f32 %v2408, %v2417
    %v2420 = vmul.f32 %v2410, %v2418
    %v2421 = vpack.c.bf16 %v2420, %v2419
    %2422 = vrot.lane.b32.xlu0 %v1709, 56
    %v2423 = vpop.permute.xlu0 %2422
    %v2426 = vsel %vm234, %v2421, 0
    %2428 = vmatprep.subr.bf16.mxu0 0
    %2429 = vmatpush1.bf16.msra.mxu0 %v2423
    %2430 = vmatprep.subr.bf16.mxu0 0
    %2431 = vmatpush1.bf16.msra.mxu0 0
    %2432 = vmatprep.subr.bf16.mxu0 0
    %2433 = vmatpush1.bf16.msra.mxu0 0
    %2434 = vmatprep.subr.bf16.mxu0 0
    %2435 = vmatpush1.bf16.msra.mxu0 0
    %2436 = vmatprep.subr.bf16.mxu0 0
    %2437 = vmatpush1.bf16.msra.mxu0 0
    %2438 = vmatprep.subr.bf16.mxu0 0
    %2439 = vmatpush1.bf16.msra.mxu0 0
    %2440 = vmatprep.subr.bf16.mxu0 0
    %2441 = vmatpush1.bf16.msra.mxu0 0
    %2442 = vmatprep.subr.bf16.mxu0 0
    %2443 = vmatpush1.bf16.msra.mxu0 0
    %2444 = vmatprep.subr.bf16.mxu0 0
    %2445 = vmatpush1.bf16.msra.mxu0 0
    %2446 = vmatprep.subr.bf16.mxu0 0
    %2447 = vmatpush1.bf16.msra.mxu0 0
    %2448 = vmatprep.subr.bf16.mxu0 0
    %2449 = vmatpush1.bf16.msra.mxu0 0
    %2450 = vmatprep.subr.bf16.mxu0 0
    %2451 = vmatpush1.bf16.msra.mxu0 0
    %2452 = vmatprep.subr.bf16.mxu0 0
    %2453 = vmatpush1.bf16.msra.mxu0 0
    %2454 = vmatprep.subr.bf16.mxu0 0
    %2455 = vmatpush1.bf16.msra.mxu0 0
    %2456 = vmatprep.subr.bf16.mxu0 0
    %2457 = vmatpush1.bf16.msra.mxu0 0
    %2458 = vmatprep.subr.bf16.mxu0 0
    %2459 = vmatpush1.bf16.msra.mxu0 0
    %2460 = vmatprep.mubr.bf16.mxu0 0
    %2461 = vmatmul.mubr.bf16.gmra.mrb[0].mxu0 %v2426
    %v2462 = vpop.f32.mrb[0].mxu0
    %v2463 = vadd.f32 0.0, %v2462
    %v2464 = vpop.f32.mrb[0].mxu0
    %v2465 = vpop.f32.mrb[0].mxu0
    %v2466 = vadd.f32 0.0, %v2465
    %v2467 = vpop.f32.mrb[0].mxu0
    %2468 = vdwg.mxu0
    %2469 = vrot.lane.b32.xlu0 %v1709, 112
    %v2470 = vpop.permute.xlu0 %2469
    %2471 = vrot.lane.b32.xlu0 %v1709, 80
    %v2472 = vpop.permute.xlu0 %2471
    %v2474 = vsel %vm182, %v2470, 0
    %v2477 = vsel %vm182, %v2472, 0
    %2479 = vmatprep.subr.bf16.mxu0 0
    %2480 = vmatpush1.bf16.xpose.msra.mxu0 %v2477
    %2481 = vmatprep.subr.bf16.mxu0 0
    %2482 = vmatpush1.bf16.xpose.msra.mxu0 0
    %2483 = vmatprep.subr.bf16.mxu0 0
    %2484 = vmatpush1.bf16.xpose.msra.mxu0 0
    %2485 = vmatprep.subr.bf16.mxu0 0
    %2486 = vmatpush1.bf16.xpose.msra.mxu0 0
    %2487 = vmatprep.subr.bf16.mxu0 0
    %2488 = vmatpush1.bf16.xpose.msra.mxu0 0
    %2489 = vmatprep.subr.bf16.mxu0 0
    %2490 = vmatpush1.bf16.xpose.msra.mxu0 0
    %2491 = vmatprep.subr.bf16.mxu0 0
    %2492 = vmatpush1.bf16.xpose.msra.mxu0 0
    %2493 = vmatprep.subr.bf16.mxu0 0
    %2494 = vmatpush1.bf16.xpose.msra.mxu0 0
    %2495 = vmatprep.subr.bf16.mxu0 0
    %2496 = vmatpush1.bf16.xpose.msra.mxu0 0
    %2497 = vmatprep.subr.bf16.mxu0 0
    %2498 = vmatpush1.bf16.xpose.msra.mxu0 0
    %2499 = vmatprep.subr.bf16.mxu0 0
    %2500 = vmatpush1.bf16.xpose.msra.mxu0 0
    %2501 = vmatprep.subr.bf16.mxu0 0
    %2502 = vmatpush1.bf16.xpose.msra.mxu0 0
    %2503 = vmatprep.subr.bf16.mxu0 0
    %2504 = vmatpush1.bf16.xpose.msra.mxu0 0
    %2505 = vmatprep.subr.bf16.mxu0 0
    %2506 = vmatpush1.bf16.xpose.msra.mxu0 0
    %2507 = vmatprep.subr.bf16.mxu0 0
    %2508 = vmatpush1.bf16.xpose.msra.mxu0 0
    %2509 = vmatprep.subr.bf16.mxu0 0
    %2510 = vmatpush1.bf16.xpose.msra.mxu0 0
    %2511 = vmatprep.mubr.bf16.mxu0 0
    %2512 = vmatmul.mubr.bf16.gmra.mrb[0].mxu0 %v2474
    %v2513 = vpop.f32.mrb[0].mxu0
    %v2514 = vadd.f32 0.0, %v2513
    %v2515 = vpop.f32.mrb[0].mxu0
    %v2516 = vpop.f32.mrb[0].mxu0
    %v2517 = vadd.f32 0.0, %v2516
    %v2518 = vpop.f32.mrb[0].mxu0
    %2519 = vdwg.mxu0
    %v2520 = vmul.f32 %v2514, 0.35355338
    %v2521 = vmul.f32 %v2517, 0.35355338
    %v2522 = vadd.f32 %v2520, %v59
    %v2523 = vadd.f32 %v2521, %v60
    %v2524 = vsel %vm234, %v2522, -inf
    %2525 = vmax.xlane.f32.xlu0 %v2524
    %v2526 = vpop.xlane.xlu0 %2525
    %v2527 = vsel %vm234, %v2523, -inf
    %2528 = vmax.xlane.f32.xlu0 %v2527
    %v2529 = vpop.xlane.xlu0 %2528
    %v2530 = vsub.f32 %v2522, %v2526
    %v2531 = vsub.f32 %v2523, %v2529
    %v2532 = vmul.f32 %v2530, 1.442695
    %v2533 = vpow.pop %v2532
    %v2534 = vmul.f32 %v2531, 1.442695
    %v2535 = vpow.pop %v2534
    %v2536 = vsel %vm234, %v2533, 0.0
    %2537 = vadd.xlane.f32.xlu0 %v2536
    %v2538 = vpop.xlane.xlu0 %2537
    %v2539 = vsel %vm234, %v2535, 0.0
    %2540 = vadd.xlane.f32.xlu0 %v2539
    %v2541 = vpop.xlane.xlu0 %2540
    %v2542 = vrcp.pop %v2538
    %v2543 = vrcp.pop %v2541
    %v2544 = vmul.f32 %v2533, %v2542
    %v2545 = vmul.f32 %v2535, %v2543
    %v2546 = vpack.c.bf16 %v2545, %v2544
    %2547 = vrot.lane.b32.xlu0 %v1709, 48
    %v2548 = vpop.permute.xlu0 %2547
    %v2551 = vsel %vm234, %v2546, 0
    %2553 = vmatprep.subr.bf16.mxu0 0
    %2554 = vmatpush1.bf16.msra.mxu0 %v2548
    %2555 = vmatprep.subr.bf16.mxu0 0
    %2556 = vmatpush1.bf16.msra.mxu0 0
    %2557 = vmatprep.subr.bf16.mxu0 0
    %2558 = vmatpush1.bf16.msra.mxu0 0
    %2559 = vmatprep.subr.bf16.mxu0 0
    %2560 = vmatpush1.bf16.msra.mxu0 0
    %2561 = vmatprep.subr.bf16.mxu0 0
    %2562 = vmatpush1.bf16.msra.mxu0 0
    %2563 = vmatprep.subr.bf16.mxu0 0
    %2564 = vmatpush1.bf16.msra.mxu0 0
    %2565 = vmatprep.subr.bf16.mxu0 0
    %2566 = vmatpush1.bf16.msra.mxu0 0
    %2567 = vmatprep.subr.bf16.mxu0 0
    %2568 = vmatpush1.bf16.msra.mxu0 0
    %2569 = vmatprep.subr.bf16.mxu0 0
    %2570 = vmatpush1.bf16.msra.mxu0 0
    %2571 = vmatprep.subr.bf16.mxu0 0
    %2572 = vmatpush1.bf16.msra.mxu0 0
    %2573 = vmatprep.subr.bf16.mxu0 0
    %2574 = vmatpush1.bf16.msra.mxu0 0
    %2575 = vmatprep.subr.bf16.mxu0 0
    %2576 = vmatpush1.bf16.msra.mxu0 0
    %2577 = vmatprep.subr.bf16.mxu0 0
    %2578 = vmatpush1.bf16.msra.mxu0 0
    %2579 = vmatprep.subr.bf16.mxu0 0
    %2580 = vmatpush1.bf16.msra.mxu0 0
    %2581 = vmatprep.subr.bf16.mxu0 0
    %2582 = vmatpush1.bf16.msra.mxu0 0
    %2583 = vmatprep.subr.bf16.mxu0 0
    %2584 = vmatpush1.bf16.msra.mxu0 0
    %2585 = vmatprep.mubr.bf16.mxu0 0
    %2586 = vmatmul.mubr.bf16.gmra.mrb[0].mxu0 %v2551
    %v2587 = vpop.f32.mrb[0].mxu0
    %v2588 = vadd.f32 0.0, %v2587
    %v2589 = vpop.f32.mrb[0].mxu0
    %v2590 = vpop.f32.mrb[0].mxu0
    %v2591 = vadd.f32 0.0, %v2590
    %v2592 = vpop.f32.mrb[0].mxu0
    %2593 = vdwg.mxu0
    %2594 = vrot.lane.b32.xlu0 %v1709, 104
    %v2595 = vpop.permute.xlu0 %2594
    %2596 = vrot.lane.b32.xlu0 %v1709, 72
    %v2597 = vpop.permute.xlu0 %2596
    %v2599 = vsel %vm182, %v2595, 0
    %v2602 = vsel %vm182, %v2597, 0
    %2604 = vmatprep.subr.bf16.mxu0 0
    %2605 = vmatpush1.bf16.xpose.msra.mxu0 %v2602
    %2606 = vmatprep.subr.bf16.mxu0 0
    %2607 = vmatpush1.bf16.xpose.msra.mxu0 0
    %2608 = vmatprep.subr.bf16.mxu0 0
    %2609 = vmatpush1.bf16.xpose.msra.mxu0 0
    %2610 = vmatprep.subr.bf16.mxu0 0
    %2611 = vmatpush1.bf16.xpose.msra.mxu0 0
    %2612 = vmatprep.subr.bf16.mxu0 0
    %2613 = vmatpush1.bf16.xpose.msra.mxu0 0
    %2614 = vmatprep.subr.bf16.mxu0 0
    %2615 = vmatpush1.bf16.xpose.msra.mxu0 0
    %2616 = vmatprep.subr.bf16.mxu0 0
    %2617 = vmatpush1.bf16.xpose.msra.mxu0 0
    %2618 = vmatprep.subr.bf16.mxu0 0
    %2619 = vmatpush1.bf16.xpose.msra.mxu0 0
    %2620 = vmatprep.subr.bf16.mxu0 0
    %2621 = vmatpush1.bf16.xpose.msra.mxu0 0
    %2622 = vmatprep.subr.bf16.mxu0 0
    %2623 = vmatpush1.bf16.xpose.msra.mxu0 0
    %2624 = vmatprep.subr.bf16.mxu0 0
    %2625 = vmatpush1.bf16.xpose.msra.mxu0 0
    %2626 = vmatprep.subr.bf16.mxu0 0
    %2627 = vmatpush1.bf16.xpose.msra.mxu0 0
    %2628 = vmatprep.subr.bf16.mxu0 0
    %2629 = vmatpush1.bf16.xpose.msra.mxu0 0
    %2630 = vmatprep.subr.bf16.mxu0 0
    %2631 = vmatpush1.bf16.xpose.msra.mxu0 0
    %2632 = vmatprep.subr.bf16.mxu0 0
    %2633 = vmatpush1.bf16.xpose.msra.mxu0 0
    %2634 = vmatprep.subr.bf16.mxu0 0
    %2635 = vmatpush1.bf16.xpose.msra.mxu0 0
    %2636 = vmatprep.mubr.bf16.mxu0 0
    %2637 = vmatmul.mubr.bf16.gmra.mrb[0].mxu0 %v2599
    %v2638 = vpop.f32.mrb[0].mxu0
    %v2639 = vadd.f32 0.0, %v2638
    %v2640 = vpop.f32.mrb[0].mxu0
    %v2641 = vpop.f32.mrb[0].mxu0
    %v2642 = vadd.f32 0.0, %v2641
    %v2643 = vpop.f32.mrb[0].mxu0
    %2644 = vdwg.mxu0
    %v2645 = vmul.f32 %v2639, 0.35355338
    %v2646 = vmul.f32 %v2642, 0.35355338
    %v2647 = vadd.f32 %v2645, %v59
    %v2648 = vadd.f32 %v2646, %v60
    %v2649 = vsel %vm234, %v2647, -inf
    %2650 = vmax.xlane.f32.xlu0 %v2649
    %v2651 = vpop.xlane.xlu0 %2650
    %v2652 = vsel %vm234, %v2648, -inf
    %2653 = vmax.xlane.f32.xlu0 %v2652
    %v2654 = vpop.xlane.xlu0 %2653
    %v2655 = vsub.f32 %v2647, %v2651
    %v2656 = vsub.f32 %v2648, %v2654
    %v2657 = vmul.f32 %v2655, 1.442695
    %v2658 = vpow.pop %v2657
    %v2659 = vmul.f32 %v2656, 1.442695
    %v2660 = vpow.pop %v2659
    %v2661 = vsel %vm234, %v2658, 0.0
    %2662 = vadd.xlane.f32.xlu0 %v2661
    %v2663 = vpop.xlane.xlu0 %2662
    %v2664 = vsel %vm234, %v2660, 0.0
    %2665 = vadd.xlane.f32.xlu0 %v2664
    %v2666 = vpop.xlane.xlu0 %2665
    %v2667 = vrcp.pop %v2663
    %v2668 = vrcp.pop %v2666
    %v2669 = vmul.f32 %v2658, %v2667
    %v2670 = vmul.f32 %v2660, %v2668
    %v2671 = vpack.c.bf16 %v2670, %v2669
    %2672 = vrot.lane.b32.xlu0 %v1709, 40
    %v2673 = vpop.permute.xlu0 %2672
    %v2676 = vsel %vm234, %v2671, 0
    %2678 = vmatprep.subr.bf16.mxu0 0
    %2679 = vmatpush1.bf16.msra.mxu0 %v2673
    %2680 = vmatprep.subr.bf16.mxu0 0
    %2681 = vmatpush1.bf16.msra.mxu0 0
    %2682 = vmatprep.subr.bf16.mxu0 0
    %2683 = vmatpush1.bf16.msra.mxu0 0
    %2684 = vmatprep.subr.bf16.mxu0 0
    %2685 = vmatpush1.bf16.msra.mxu0 0
    %2686 = vmatprep.subr.bf16.mxu0 0
    %2687 = vmatpush1.bf16.msra.mxu0 0
    %2688 = vmatprep.subr.bf16.mxu0 0
    %2689 = vmatpush1.bf16.msra.mxu0 0
    %2690 = vmatprep.subr.bf16.mxu0 0
    %2691 = vmatpush1.bf16.msra.mxu0 0
    %2692 = vmatprep.subr.bf16.mxu0 0
    %2693 = vmatpush1.bf16.msra.mxu0 0
    %2694 = vmatprep.subr.bf16.mxu0 0
    %2695 = vmatpush1.bf16.msra.mxu0 0
    %2696 = vmatprep.subr.bf16.mxu0 0
    %2697 = vmatpush1.bf16.msra.mxu0 0
    %2698 = vmatprep.subr.bf16.mxu0 0
    %2699 = vmatpush1.bf16.msra.mxu0 0
    %2700 = vmatprep.subr.bf16.mxu0 0
    %2701 = vmatpush1.bf16.msra.mxu0 0
    %2702 = vmatprep.subr.bf16.mxu0 0
    %2703 = vmatpush1.bf16.msra.mxu0 0
    %2704 = vmatprep.subr.bf16.mxu0 0
    %2705 = vmatpush1.bf16.msra.mxu0 0
    %2706 = vmatprep.subr.bf16.mxu0 0
    %2707 = vmatpush1.bf16.msra.mxu0 0
    %2708 = vmatprep.subr.bf16.mxu0 0
    %2709 = vmatpush1.bf16.msra.mxu0 0
    %2710 = vmatprep.mubr.bf16.mxu0 0
    %2711 = vmatmul.mubr.bf16.gmra.mrb[0].mxu0 %v2676
    %v2712 = vpop.f32.mrb[0].mxu0
    %v2713 = vadd.f32 0.0, %v2712
    %v2714 = vpop.f32.mrb[0].mxu0
    %v2715 = vpop.f32.mrb[0].mxu0
    %v2716 = vadd.f32 0.0, %v2715
    %v2717 = vpop.f32.mrb[0].mxu0
    %2718 = vdwg.mxu0
    %2721 = vrot.lane.b32.xlu0 %v1964, 8
    %v2722 = vpop.permute.xlu0 %2721
    %2723 = vrot.lane.b32.xlu0 %v1967, 8
    %v2724 = vpop.permute.xlu0 %2723
    %2729 = vrot.lane.b32.xlu0 %v2089, 16
    %v2730 = vpop.permute.xlu0 %2729
    %2731 = vrot.lane.b32.xlu0 %v2092, 16
    %v2732 = vpop.permute.xlu0 %2731
    %2737 = vrot.lane.b32.xlu0 %v2214, 24
    %v2738 = vpop.permute.xlu0 %2737
    %2739 = vrot.lane.b32.xlu0 %v2217, 24
    %v2740 = vpop.permute.xlu0 %2739
    %2745 = vrot.lane.b32.xlu0 %v2338, 32
    %v2746 = vpop.permute.xlu0 %2745
    %2747 = vrot.lane.b32.xlu0 %v2341, 32
    %v2748 = vpop.permute.xlu0 %2747
    %2753 = vrot.lane.b32.xlu0 %v2463, 40
    %v2754 = vpop.permute.xlu0 %2753
    %2755 = vrot.lane.b32.xlu0 %v2466, 40
    %v2756 = vpop.permute.xlu0 %2755
    %2761 = vrot.lane.b32.xlu0 %v2588, 48
    %v2762 = vpop.permute.xlu0 %2761
    %2763 = vrot.lane.b32.xlu0 %v2591, 48
    %v2764 = vpop.permute.xlu0 %2763
    %2769 = vrot.lane.b32.xlu0 %v2713, 56
    %v2770 = vpop.permute.xlu0 %2769
    %2771 = vrot.lane.b32.xlu0 %v2716, 56
    %v2772 = vpop.permute.xlu0 %2771
    %v2775 = vsel %vm182, %v1839, %v2722
    %v2776 = vsel %vm182, %v1842, %v2724
    %v2777 = vsel %vm234, %v2775, %v2730
    %v2778 = vsel %vm234, %v2776, %v2732
    %v2779 = vsel %vm1240, %v2777, %v2738
    %v2780 = vsel %vm1240, %v2778, %v2740
    %v2781 = vsel %vm80, %v2779, %v2746
    %v2782 = vsel %vm80, %v2780, %v2748
    %v2783 = vsel %vm1245, %v2781, %v2754
    %v2784 = vsel %vm1245, %v2782, %v2756
    %v2785 = vsel %vm1248, %v2783, %v2762
    %v2786 = vsel %vm1248, %v2784, %v2764
    %v2787 = vsel %vm1251, %v2785, %v2770
    %v2788 = vsel %vm1251, %v2786, %v2772
    %v2789 = vpack.c.bf16 %v2788, %v2787
    %s2790 = scalar_lea.vmem %s4, 32
    %v2791 = vld [vmem:[%s2790] sm:$0xf]
    %v2792 = vld [vmem:[%s2790 + $0x4] sm:$0xf]
    %v2793 = vld [vmem:[%s2790 + $0x8] sm:$0xf]
    %v2794 = vld [vmem:[%s2790 + $0xc] sm:$0xf]
    %v2795 = vld [vmem:[%s2790 + $0x10] sm:$0xf]
    %v2796 = vld [vmem:[%s2790 + $0x14] sm:$0xf]
    %v2797 = vld [vmem:[%s2790 + $0x18] sm:$0xf]
    %v2798 = vld [vmem:[%s2790 + $0x1c] sm:$0xf]
    %s2799 = scalar_lea.vmem %s5, 1
    %v2800 = vld [vmem:[%s2799] sm:$0x1]
    %v2802 = vlaneseq
    %v2803 = vshrl.u32 %v2802, 7
    %v2804 = vsub.s32 0, %v2803
    %v2805 = vrot.slane %v2800, %v2804
    %v2815 = vunpack.c.l.b16 %v2791
    %v2816 = vunpack.c.l.b16 %v2792
    %v2817 = vunpack.c.l.b16 %v2793
    %v2818 = vunpack.c.l.b16 %v2794
    %v2819 = vunpack.c.l.b16 %v2795
    %v2820 = vunpack.c.l.b16 %v2796
    %v2821 = vunpack.c.l.b16 %v2797
    %v2822 = vunpack.c.l.b16 %v2798
    %v2823 = vpack.c.b16 %v2816, %v2815
    %v2824 = vpack.c.b16 %v2818, %v2817
    %v2825 = vpack.c.b16 %v2820, %v2819
    %v2826 = vpack.c.b16 %v2822, %v2821
    %v2832 = vsel %vm1294, %v2789, 0
    %2834 = vmatprep.subr.bf16.mxu0 0
    %2835 = vmatpush1.bf16.msra.mxu0 %v2823
    %2836 = vmatprep.subr.bf16.mxu0 0
    %2837 = vmatpush1.bf16.msra.mxu0 %v2824
    %2838 = vmatprep.subr.bf16.mxu0 0
    %2839 = vmatpush1.bf16.msra.mxu0 %v2825
    %2840 = vmatprep.subr.bf16.mxu0 0
    %2841 = vmatpush1.bf16.msra.mxu0 %v2826
    %2842 = vmatprep.subr.bf16.mxu0 0
    %2843 = vmatpush1.bf16.msra.mxu0 0
    %2844 = vmatprep.subr.bf16.mxu0 0
    %2845 = vmatpush1.bf16.msra.mxu0 0
    %2846 = vmatprep.subr.bf16.mxu0 0
    %2847 = vmatpush1.bf16.msra.mxu0 0
    %2848 = vmatprep.subr.bf16.mxu0 0
    %2849 = vmatpush1.bf16.msra.mxu0 0
    %2850 = vmatprep.subr.bf16.mxu0 0
    %2851 = vmatpush1.bf16.msra.mxu0 0
    %2852 = vmatprep.subr.bf16.mxu0 0
    %2853 = vmatpush1.bf16.msra.mxu0 0
    %2854 = vmatprep.subr.bf16.mxu0 0
    %2855 = vmatpush1.bf16.msra.mxu0 0
    %2856 = vmatprep.subr.bf16.mxu0 0
    %2857 = vmatpush1.bf16.msra.mxu0 0
    %2858 = vmatprep.subr.bf16.mxu0 0
    %2859 = vmatpush1.bf16.msra.mxu0 0
    %2860 = vmatprep.subr.bf16.mxu0 0
    %2861 = vmatpush1.bf16.msra.mxu0 0
    %2862 = vmatprep.subr.bf16.mxu0 0
    %2863 = vmatpush1.bf16.msra.mxu0 0
    %2864 = vmatprep.subr.bf16.mxu0 0
    %2865 = vmatpush1.bf16.msra.mxu0 0
    %2866 = vmatprep.mubr.bf16.mxu0 0
    %2867 = vmatmul.mubr.bf16.gmra.mrb[0].mxu0 %v2832
    %v2868 = vpop.f32.mrb[0].mxu0
    %v2869 = vadd.f32 %v2805, %v2868
    %v2870 = vpop.f32.mrb[0].mxu0
    %v2871 = vpop.f32.mrb[0].mxu0
    %v2872 = vadd.f32 %v2805, %v2871
    %v2873 = vpop.f32.mrb[0].mxu0
    %2874 = vdwg.mxu0
    %v2875 = vadd.f32 %v2869, %v1600
    %v2876 = vadd.f32 %v2872, %v1601
    %s2877 = scalar_lea.vmem %s6, 1
    %v2878 = vld [vmem:[%s2877] sm:$0x1]
    %s2879 = scalar_lea.vmem %s7, 1
    %v2880 = vld [vmem:[%s2879] sm:$0x1]
    %v2881 = vsel %vm80, %v2875, 0.0
    %2882 = vadd.xlane.f32.xlu0 %v2881
    %v2883 = vpop.xlane.xlu0 %2882
    %v2884 = vsel %vm80, %v2876, 0.0
    %2885 = vadd.xlane.f32.xlu0 %v2884
    %v2886 = vpop.xlane.xlu0 %2885
    %v2887 = vmul.f32 %v2883, %v1349
    %v2888 = vmul.f32 %v2886, %v1349
    %v2889 = vsub.f32 %v2875, %v2887
    %v2890 = vsub.f32 %v2876, %v2888
    %v2891 = vmul.f32 %v2889, %v2889
    %v2892 = vmul.f32 %v2890, %v2890
    %v2893 = vsel %vm80, %v2891, 0.0
    %2894 = vadd.xlane.f32.xlu0 %v2893
    %v2895 = vpop.xlane.xlu0 %2894
    %v2896 = vsel %vm80, %v2892, 0.0
    %2897 = vadd.xlane.f32.xlu0 %v2896
    %v2898 = vpop.xlane.xlu0 %2897
    %v2899 = vmul.f32 %v2895, %v1349
    %v2900 = vmul.f32 %v2898, %v1349
    %v2901 = vadd.f32 %v2899, 1e-12
    %v2902 = vadd.f32 %v2900, 1e-12
    %v2903 = vrsqrt.pop %v2901
    %v2904 = vrsqrt.pop %v2902
    %v2905 = vmul.f32 %v2889, %v2903
    %v2906 = vmul.f32 %v2890, %v2904
    %v2908 = vlaneseq
    %v2909 = vshrl.u32 %v2908, 7
    %v2910 = vsub.s32 0, %v2909
    %v2911 = vrot.slane %v2878, %v2910
    %v2913 = vmul.f32 %v2905, %v2911
    %v2914 = vmul.f32 %v2906, %v2911
    %v2916 = vlaneseq
    %v2917 = vshrl.u32 %v2916, 7
    %v2918 = vsub.s32 0, %v2917
    %v2919 = vrot.slane %v2880, %v2918
    %v2921 = vadd.f32 %v2913, %v2919
    %v2922 = vadd.f32 %v2914, %v2919
    %v2923 = vpack.c.bf16 %v2922, %v2921
    %s2924 = scalar_lea.vmem %s8, 16
    %v2925 = vld [vmem:[%s2924] sm:$0xf]
    %v2926 = vld [vmem:[%s2924 + $0x4] sm:$0xf]
    %v2927 = vld [vmem:[%s2924 + $0x8] sm:$0xf]
    %v2928 = vld [vmem:[%s2924 + $0xc] sm:$0xf]
    %s2929 = scalar_lea.vmem %s9, 1
    %v2930 = vld [vmem:[%s2929] sm:$0x1]
    %v2932 = vlaneseq
    %v2933 = vshrl.u32 %v2932, 7
    %v2934 = vsub.s32 0, %v2933
    %v2935 = vrot.slane %v2930, %v2934
    %v2941 = vunpack.c.l.b16 %v2925
    %v2942 = vunpack.c.l.b16 %v2926
    %v2943 = vunpack.c.l.b16 %v2927
    %v2944 = vunpack.c.l.b16 %v2928
    %v2945 = vpack.c.b16 %v2942, %v2941
    %v2946 = vpack.c.b16 %v2944, %v2943
    %v2950 = vsel %vm80, %v2923, 0
    %2952 = vmatprep.subr.bf16.mxu0 0
    %2953 = vmatpush1.bf16.msra.mxu0 %v2945
    %2954 = vmatprep.subr.bf16.mxu0 0
    %2955 = vmatpush1.bf16.msra.mxu0 %v2946
    %2956 = vmatprep.subr.bf16.mxu0 0
    %2957 = vmatpush1.bf16.msra.mxu0 0
    %2958 = vmatprep.subr.bf16.mxu0 0
    %2959 = vmatpush1.bf16.msra.mxu0 0
    %2960 = vmatprep.subr.bf16.mxu0 0
    %2961 = vmatpush1.bf16.msra.mxu0 0
    %2962 = vmatprep.subr.bf16.mxu0 0
    %2963 = vmatpush1.bf16.msra.mxu0 0
    %2964 = vmatprep.subr.bf16.mxu0 0
    %2965 = vmatpush1.bf16.msra.mxu0 0
    %2966 = vmatprep.subr.bf16.mxu0 0
    %2967 = vmatpush1.bf16.msra.mxu0 0
    %2968 = vmatprep.subr.bf16.mxu0 0
    %2969 = vmatpush1.bf16.msra.mxu0 0
    %2970 = vmatprep.subr.bf16.mxu0 0
    %2971 = vmatpush1.bf16.msra.mxu0 0
    %2972 = vmatprep.subr.bf16.mxu0 0
    %2973 = vmatpush1.bf16.msra.mxu0 0
    %2974 = vmatprep.subr.bf16.mxu0 0
    %2975 = vmatpush1.bf16.msra.mxu0 0
    %2976 = vmatprep.subr.bf16.mxu0 0
    %2977 = vmatpush1.bf16.msra.mxu0 0
    %2978 = vmatprep.subr.bf16.mxu0 0
    %2979 = vmatpush1.bf16.msra.mxu0 0
    %2980 = vmatprep.subr.bf16.mxu0 0
    %2981 = vmatpush1.bf16.msra.mxu0 0
    %2982 = vmatprep.subr.bf16.mxu0 0
    %2983 = vmatpush1.bf16.msra.mxu0 0
    %2984 = vmatprep.mubr.bf16.mxu0 0
    %2985 = vmatmul.mubr.bf16.gmra.mrb[0].mxu0 %v2950
    %v2986 = vpop.f32.mrb[0].mxu0
    %v2987 = vadd.f32 %v2935, %v2986
    %v2988 = vpop.f32.mrb[0].mxu0
    %v2989 = vpop.f32.mrb[0].mxu0
    %v2990 = vadd.f32 %v2935, %v2989
    %v2991 = vpop.f32.mrb[0].mxu0
    %2992 = vdwg.mxu0
    %v2993 = vmul.f32 %v2987, 0.5
    %v2994 = vmul.f32 %v2990, 0.5
    %v2995 = vmul.f32 %v2987, 0.044715
    %v2996 = vmul.f32 %v2990, 0.044715
    %v2997 = vmul.f32 %v2995, %v2987
    %v2998 = vmul.f32 %v2996, %v2990
    %v2999 = vmul.f32 %v2997, %v2987
    %v3000 = vmul.f32 %v2998, %v2990
    %v3001 = vadd.f32 %v2987, %v2999
    %v3002 = vadd.f32 %v2990, %v3000
    %v3003 = vmul.f32 %v3001, 0.7978846
    %v3004 = vmul.f32 %v3002, 0.7978846
    %v3005 = vtanh.pop %v3003
    %v3006 = vtanh.pop %v3004
    %v3007 = vadd.f32 %v3005, 1.0
    %v3008 = vadd.f32 %v3006, 1.0
    %v3009 = vmul.f32 %v2993, %v3007
    %v3010 = vmul.f32 %v2994, %v3008
    %v3011 = vpack.c.bf16 %v3010, %v3009
    %s3012 = scalar_lea.vmem %s10, 32
    %v3013 = vld [vmem:[%s3012] sm:$0xf]
    %v3014 = vld [vmem:[%s3012 + $0x4] sm:$0xf]
    %v3015 = vld [vmem:[%s3012 + $0x8] sm:$0xf]
    %v3016 = vld [vmem:[%s3012 + $0xc] sm:$0xf]
    %v3017 = vld [vmem:[%s3012 + $0x10] sm:$0xf]
    %v3018 = vld [vmem:[%s3012 + $0x14] sm:$0xf]
    %v3019 = vld [vmem:[%s3012 + $0x18] sm:$0xf]
    %v3020 = vld [vmem:[%s3012 + $0x1c] sm:$0xf]
    %s3021 = scalar_lea.vmem %s11, 1
    %v3022 = vld [vmem:[%s3021] sm:$0x1]
    %v3024 = vlaneseq
    %v3025 = vshrl.u32 %v3024, 7
    %v3026 = vsub.s32 0, %v3025
    %v3027 = vrot.slane %v3022, %v3026
    %v3037 = vunpack.c.l.b16 %v3013
    %v3038 = vunpack.c.l.b16 %v3014
    %v3039 = vunpack.c.l.b16 %v3015
    %v3040 = vunpack.c.l.b16 %v3016
    %v3041 = vunpack.c.l.b16 %v3017
    %v3042 = vunpack.c.l.b16 %v3018
    %v3043 = vunpack.c.l.b16 %v3019
    %v3044 = vunpack.c.l.b16 %v3020
    %v3045 = vpack.c.b16 %v3038, %v3037
    %v3046 = vpack.c.b16 %v3040, %v3039
    %v3047 = vpack.c.b16 %v3042, %v3041
    %v3048 = vpack.c.b16 %v3044, %v3043
    %v3054 = vsel %vm1294, %v3011, 0
    %3056 = vmatprep.subr.bf16.mxu0 0
    %3057 = vmatpush1.bf16.msra.mxu0 %v3045
    %3058 = vmatprep.subr.bf16.mxu0 0
    %3059 = vmatpush1.bf16.msra.mxu0 %v3046
    %3060 = vmatprep.subr.bf16.mxu0 0
    %3061 = vmatpush1.bf16.msra.mxu0 %v3047
    %3062 = vmatprep.subr.bf16.mxu0 0
    %3063 = vmatpush1.bf16.msra.mxu0 %v3048
    %3064 = vmatprep.subr.bf16.mxu0 0
    %3065 = vmatpush1.bf16.msra.mxu0 0
    %3066 = vmatprep.subr.bf16.mxu0 0
    %3067 = vmatpush1.bf16.msra.mxu0 0
    %3068 = vmatprep.subr.bf16.mxu0 0
    %3069 = vmatpush1.bf16.msra.mxu0 0
    %3070 = vmatprep.subr.bf16.mxu0 0
    %3071 = vmatpush1.bf16.msra.mxu0 0
    %3072 = vmatprep.subr.bf16.mxu0 0
    %3073 = vmatpush1.bf16.msra.mxu0 0
    %3074 = vmatprep.subr.bf16.mxu0 0
    %3075 = vmatpush1.bf16.msra.mxu0 0
    %3076 = vmatprep.subr.bf16.mxu0 0
    %3077 = vmatpush1.bf16.msra.mxu0 0
    %3078 = vmatprep.subr.bf16.mxu0 0
    %3079 = vmatpush1.bf16.msra.mxu0 0
    %3080 = vmatprep.subr.bf16.mxu0 0
    %3081 = vmatpush1.bf16.msra.mxu0 0
    %3082 = vmatprep.subr.bf16.mxu0 0
    %3083 = vmatpush1.bf16.msra.mxu0 0
    %3084 = vmatprep.subr.bf16.mxu0 0
    %3085 = vmatpush1.bf16.msra.mxu0 0
    %3086 = vmatprep.subr.bf16.mxu0 0
    %3087 = vmatpush1.bf16.msra.mxu0 0
    %3088 = vmatprep.mubr.bf16.mxu0 0
    %3089 = vmatmul.mubr.bf16.gmra.mrb[0].mxu0 %v3054
    %v3090 = vpop.f32.mrb[0].mxu0
    %v3091 = vadd.f32 %v3027, %v3090
    %v3092 = vpop.f32.mrb[0].mxu0
    %v3093 = vpop.f32.mrb[0].mxu0
    %v3094 = vadd.f32 %v3027, %v3093
    %v3095 = vpop.f32.mrb[0].mxu0
    %3096 = vdwg.mxu0
    %v3097 = vadd.f32 %v3091, %v2921
    %v3098 = vadd.f32 %v3094, %v2922
    %s3099 = scalar_lea.vmem %s12, 1
    %v3100 = vld [vmem:[%s3099] sm:$0x1]
    %s3101 = scalar_lea.vmem %s13, 1
    %v3102 = vld [vmem:[%s3101] sm:$0x1]
    %v3103 = vsel %vm80, %v3097, 0.0
    %3104 = vadd.xlane.f32.xlu0 %v3103
    %v3105 = vpop.xlane.xlu0 %3104
    %v3106 = vsel %vm80, %v3098, 0.0
    %3107 = vadd.xlane.f32.xlu0 %v3106
    %v3108 = vpop.xlane.xlu0 %3107
    %v3109 = vmul.f32 %v3105, %v1349
    %v3110 = vmul.f32 %v3108, %v1349
    %v3111 = vsub.f32 %v3097, %v3109
    %v3112 = vsub.f32 %v3098, %v3110
    %v3113 = vmul.f32 %v3111, %v3111
    %v3114 = vmul.f32 %v3112, %v3112
    %v3115 = vsel %vm80, %v3113, 0.0
    %3116 = vadd.xlane.f32.xlu0 %v3115
    %v3117 = vpop.xlane.xlu0 %3116
    %v3118 = vsel %vm80, %v3114, 0.0
    %3119 = vadd.xlane.f32.xlu0 %v3118
    %v3120 = vpop.xlane.xlu0 %3119
    %v3121 = vmul.f32 %v3117, %v1349
    %v3122 = vmul.f32 %v3120, %v1349
    %v3123 = vadd.f32 %v3121, 1e-12
    %v3124 = vadd.f32 %v3122, 1e-12
    %v3125 = vrsqrt.pop %v3123
    %v3126 = vrsqrt.pop %v3124
    %v3127 = vmul.f32 %v3111, %v3125
    %v3128 = vmul.f32 %v3112, %v3126
    %v3130 = vlaneseq
    %v3131 = vshrl.u32 %v3130, 7
    %v3132 = vsub.s32 0, %v3131
    %v3133 = vrot.slane %v3100, %v3132
    %v3135 = vmul.f32 %v3127, %v3133
    %v3136 = vmul.f32 %v3128, %v3133
    %v3138 = vlaneseq
    %v3139 = vshrl.u32 %v3138, 7
    %v3140 = vsub.s32 0, %v3139
    %v3141 = vrot.slane %v3102, %v3140
    %v3143 = vadd.f32 %v3135, %v3141
    %v3144 = vadd.f32 %v3136, %v3141
    %3145 = vst.msk [vmem:[#allocation2] sm:$0xff] %vm80, %v3143
    %3146 = vst.msk [vmem:[#allocation2 + $0x8] sm:$0xff] %vm80, %v3144
    // Predicated region
    $region58: #{bert_encoder_forward.1} parent=1 // pred_check
      _
    $region59: #{bert_encoder_forward.1} parent=1 // pred_check_branch
      %3148 = sbr.rel (0) target = $region61
    $region60: #{bert_encoder_forward.1} parent=1 // pred_region
      %s3150 = ssub.s32 256, 256
      %3151 = vsyncadd [#allocation3], %s3150
      %s3152 = sshll.u32 [#allocation2], 4
      %s3153 = int_to_ptr.vmem [resolvable:$true] %s3152
      %3158 = dma.vmem_to_hbm [thread:$0]  %s3153, 256, %s14, [#allocation3], 128, 128, 8
    $region61: #{bert_encoder_forward.1} parent=1 // pred_fallthru
      _
    // Predicated region
    $region62: #{bert_encoder_forward.1} parent=1 // pred_check
      _
    $region63: #{bert_encoder_forward.1} parent=1 // pred_check_branch
      %3160 = sbr.rel (0) target = $region65
    $region64: #{bert_encoder_forward.1} parent=1 // pred_region
      %3161 = dma.done [#allocation3], 256
    $region65: #{bert_encoder_forward.1} parent=1 // pred_fallthru
      _
    %3162 = vsyncpa [#allocation3], 1

</llo_original>
